<compile_context>
chip_gen: v7x
topology: tpu7x:2x2x1
jax: 0.10.0
libtpu: 0.0.40
codegen_flags: <defaults>
</compile_context>

<pallas_src>
import functools

import numpy as np

import jax
import jax.numpy as jnp
from jax import lax
from jax.experimental import pallas as pl
from jax.experimental.pallas import tpu as pltpu


def _round_up(x, m):
    return (x + m - 1) // m * m


# ---------------------------------------------------------------------------
# Weight-only transforms (done once in the wrapper, outside the kernel).
# ---------------------------------------------------------------------------
def _fuse_conv_avgpool2(w_oihw):
    """conv(3x3, stride 1) followed by AvgPool2d(2) == conv(4x4, stride 2).

    Returns the effective weights with shape (4, 4, Cin, Cout)."""
    w = jnp.transpose(w_oihw, (2, 3, 1, 0))                  # (3, 3, Cin, Cout)
    ci, co = w.shape[2], w.shape[3]
    weff = jnp.zeros((4, 4, ci, co), w.dtype)
    for py in (0, 1):
        for px in (0, 1):
            weff = weff.at[py:py + 3, px:px + 3].add(w)
    return weff * 0.25


def _build_w1_selector():
    """S[iy*10+ix, k2, k1] = 1 iff pixel (iy,ix) of the 10x10 composite window
    is tap k1 of the fused layer-1 4x4/s2 kernel evaluated at layer-2 offset k2."""
    S = np.zeros((100, 16, 16), np.float32)
    for ey2 in range(4):
        for ex2 in range(4):
            k2 = ey2 * 4 + ex2
            for ey1 in range(4):
                for ex1 in range(4):
                    iy, ix = 2 * ey2 + ey1, 2 * ex2 + ex1
                    S[iy * 10 + ix, k2, ey1 * 4 + ex1] = 1.0
    return S


_W1_SELECT = _build_w1_selector()                            # (100, 16, 16) const


# ---------------------------------------------------------------------------
# The fused kernel: one grid step == `bs` samples, everything stays in VMEM.
# Row layout of all activations: row = position * bs + sample_in_block.
# ---------------------------------------------------------------------------
def _netv3_kernel(patch_ref, w1_ref, w2_ref, b2_ref, w3_ref, b3_ref,
                  wfc_ref, bfc_ref, out_ref, z1_ref, a2_ref, acc3_ref, *, bs):
    f32, bf16 = jnp.float32, jnp.bfloat16

    # ---- layers 1+2 (both conv+pool fused to 4x4/s2 convs; k2 loop folded
    # into the contraction): two dense matmuls, K=100 then K=256.
    z1 = jnp.dot(patch_ref[...], w1_ref[...], preferred_element_type=f32)
    z1_ref[...] = jnp.maximum(z1, 0.0).astype(bf16)          # (36*bs, 256)
    z2 = jnp.dot(z1_ref[...], w2_ref[...], preferred_element_type=f32)
    a2_ref[...] = jnp.maximum(z2 + b2_ref[...], 0.0).astype(bf16)   # (36*bs, 32)

    # ---- layer 3: 3x3 VALID conv on the 6x6 map, "extended rows" trick.
    # acc3 row = r*bs + b with r = oi3*6 + oj3 (r < 22); rows with oj3 in
    # {4,5} are wrap-around garbage and are never read by the classifier.
    n3 = 22 * bs
    acc3_ref[...] = jnp.dot(a2_ref[pl.ds(0, n3), :], w3_ref[0],
                            preferred_element_type=f32)
    for tap in range(1, 9):
        dy, dx = divmod(tap, 3)
        shift = (dy * 6 + dx) * bs                           # 8-aligned (bs % 8 == 0)
        acc3_ref[...] += jnp.dot(a2_ref[pl.ds(shift, n3), :], w3_ref[tap],
                                 preferred_element_type=f32)

    # ---- classifier: NCHW flatten folded into wfc; per-position accumulation.
    acc = jnp.zeros((bs, 10), f32)
    for oi in range(4):
        for oj in range(4):
            r, pos = oi * 6 + oj, oi * 4 + oj
            a3p = jnp.maximum(acc3_ref[pl.ds(r * bs, bs), :] + b3_ref[...], 0.0)
            acc = acc + jnp.dot(a3p.astype(bf16), wfc_ref[pos],
                                preferred_element_type=f32)
    logits = acc + bfc_ref[...]

    m = jnp.max(logits, axis=1, keepdims=True)
    e = jnp.exp(logits - m)
    denom = jnp.sum(e, axis=1, keepdims=True)
    out_ref[...] = (e * pl.reciprocal(denom, approx=True)).astype(out_ref.dtype)


def netv3_forward(x_nchw, params, block_b=32):
    B = x_nchw.shape[0]
    bs = min(_round_up(block_b, 8), _round_up(B, 8))         # samples per grid step
    b_pad = _round_up(B, bs)
    nb = b_pad // bs

    # ---- input-side glue (XLA): zero-pad (conv1 padding=1) and extract, per
    # layer-2 output position, the 10x10 composite receptive-field window.
    # Position-major layout: row = ((block, position), sample_in_block).
    # TODO(synk): this window extraction stays in plain JAX; it still re-reads
    # overlapping pixels (~2.9x the padded image) when materializing patches.
    x = x_nchw[:, 0]
    if b_pad != B:
        x = jnp.pad(x, ((0, b_pad - B), (0, 0), (0, 0)))
    x_pad = jnp.pad(x, ((0, 0), (1, 1), (1, 1)))             # (b_pad, 30, 30)
    xb = x_pad.reshape(nb, bs, 30, 30)
    wins = [xb[:, :, 4 * i:4 * i + 10, 4 * j:4 * j + 10]
            for i in range(6) for j in range(6)]
    patches = jnp.stack(wins, axis=1)                        # (nb, 36, bs, 10, 10)
    patches = patches.reshape(nb * 36 * bs, 100).astype(jnp.bfloat16)

    # ---- weight-only transforms (pool fusion, k2 expansion, flatten fold) ----
    w1eff = _fuse_conv_avgpool2(params["w1"]).reshape(16, 16)        # (k1, c1)
    # Expand to (100, 256): column k2*16+c1 holds W1eff shifted to layer-2
    # offset k2, so patches @ w1exp is layer-1's pooled (pre-ReLU) output at
    # every (position, k2) pair -- the k2 loop becomes part of the contraction.
    w1exp = jnp.einsum("pqk,kc->pqc", jnp.asarray(_W1_SELECT), w1eff)
    w1exp = w1exp.reshape(100, 256).astype(jnp.bfloat16)
    w2flat = _fuse_conv_avgpool2(params["w2"]).reshape(256, 32).astype(jnp.bfloat16)
    w3m = jnp.transpose(params["w3"], (2, 3, 1, 0)).reshape(9, 32, 64)
    w3m = w3m.astype(jnp.bfloat16)
    # flat NCHW index = c*16 + (oi3*4 + oj3)  ->  wfc[pos, c, cls]
    wfc = jnp.transpose(params["w_fc"].reshape(10, 64, 16), (2, 1, 0))
    wfc = wfc.astype(jnp.bfloat16)
    b2 = params["b2"].reshape(1, 32).astype(jnp.float32)
    b3 = params["b3"].reshape(1, 64).astype(jnp.float32)
    bfc = params["b_fc"].reshape(1, 10).astype(jnp.float32)

    kernel = functools.partial(_netv3_kernel, bs=bs)
    out = pl.pallas_call(
        kernel,
        out_shape=jax.ShapeDtypeStruct((b_pad, 10), jnp.float32),
        grid=(nb,),
        in_specs=[
            pl.BlockSpec((36 * bs, 100), lambda ib: (ib, 0)),   # per-block patches
            pl.BlockSpec((100, 256), lambda ib: (0, 0)),        # W1 expanded (resident)
            pl.BlockSpec((256, 32), lambda ib: (0, 0)),         # W2eff flat
            pl.BlockSpec((1, 32), lambda ib: (0, 0)),           # b2
            pl.BlockSpec((9, 32, 64), lambda ib: (0, 0, 0)),    # W3 (tap, c2, c3)
            pl.BlockSpec((1, 64), lambda ib: (0, 0)),           # b3
            pl.BlockSpec((16, 64, 10), lambda ib: (0, 0, 0)),   # Wfc (pos, c3, cls)
            pl.BlockSpec((1, 10), lambda ib: (0, 0)),           # b_fc
        ],
        out_specs=pl.BlockSpec((bs, 10), lambda ib: (ib, 0)),
        scratch_shapes=[
            pltpu.VMEM((36 * bs, 256), jnp.bfloat16),           # z1 = relu(layer-1)
            pltpu.VMEM((36 * bs, 32), jnp.bfloat16),            # a2 = relu(layer-2)
            pltpu.VMEM((22 * bs, 64), jnp.float32),             # layer-3 accumulator
        ],
        compiler_params=pltpu.CompilerParams(
            dimension_semantics=("parallel",)),
    )(patches, w1exp, w2flat, b2, w3m, b3, wfc, bfc)
    return out[:B]


# ---------------------------------------------------------------------------
# Pure-JAX reference (correctness check)
# ---------------------------------------------------------------------------
def _avgpool_ref(x_nchw):
    return lax.reduce_window(x_nchw, 0.0, lax.add,
                             (1, 1, 2, 2), (1, 1, 2, 2), "VALID") * 0.25


def netv3_reference(x_nchw, params):
    dn = ("NCHW", "OIHW", "NCHW")
    prec = lax.Precision.HIGHEST
    h = lax.conv_general_dilated(x_nchw, params["w1"], (1, 1), ((1, 1), (1, 1)),
                                 dimension_numbers=dn, precision=prec)
    h = jax.nn.relu(_avgpool_ref(h))
    h = lax.conv_general_dilated(h, params["w2"], (1, 1), "VALID",
                                 dimension_numbers=dn, precision=prec)
    h = h + params["b2"][None, :, None, None]
    h = jax.nn.relu(_avgpool_ref(h))
    h = lax.conv_general_dilated(h, params["w3"], (1, 1), "VALID",
                                 dimension_numbers=dn, precision=prec)
    h = jax.nn.relu(h + params["b3"][None, :, None, None])
    h = h.reshape(h.shape[0], -1)
    logits = jnp.dot(h, params["w_fc"].T, precision=prec) + params["b_fc"]
    return jax.nn.softmax(logits, axis=1)


if __name__ == "__main__":
    key = jax.random.PRNGKey(0)
    kx, k1, k2, k3, k4, k5, k6, k7 = jax.random.split(key, 8)

    # Input must be 28x28 so that the flatten is 64*4*4 (as in the PyTorch module).
    x = jax.random.normal(kx, (2, 1, 28, 28), jnp.float32)

    params = {
        "w1": 0.2 * jax.random.normal(k1, (16, 1, 3, 3), jnp.float32),      # Conv2d(1,16,3,pad=1,bias=False)
        "w2": 0.1 * jax.random.normal(k2, (32, 16, 3, 3), jnp.float32),     # Conv2d(16,32,3)
        "b2": 0.1 * jax.random.normal(k3, (32,), jnp.float32),
        "w3": 0.1 * jax.random.normal(k4, (64, 32, 3, 3), jnp.float32),     # Conv2d(32,64,3)
        "b3": 0.1 * jax.random.normal(k5, (64,), jnp.float32),
        "w_fc": 0.05 * jax.random.normal(k6, (10, 64 * 4 * 4), jnp.float32),  # Linear(1024,10)
        "b_fc": 0.05 * jax.random.normal(k7, (10,), jnp.float32),
    }

    out = jax.block_until_ready(jax.jit(netv3_forward)(x, params))
    ref = netv3_reference(x, params)

    assert out.shape == (2, 10), out.shape
    assert jnp.allclose(jnp.sum(out, axis=1), 1.0, atol=3e-3)
    err = float(jnp.max(jnp.abs(out - ref)))
    assert err < 1e-2, err    # bf16 operands vs. f32 HIGHEST-precision reference
    print("KERNEL_OK")
</pallas_src>

<mosaic_0001>
module attributes {stable_mosaic.version = 11 : i64} {
  func.func @_netv3_kernel(%arg0: i32, %arg1: memref<288x100xbf16, #tpu.memory_space<vmem>>, %arg2: memref<100x256xbf16, #tpu.memory_space<vmem>>, %arg3: memref<256x32xbf16, #tpu.memory_space<vmem>>, %arg4: memref<1x32xf32, #tpu.memory_space<vmem>>, %arg5: memref<9x32x64xbf16, #tpu.memory_space<vmem>>, %arg6: memref<1x64xf32, #tpu.memory_space<vmem>>, %arg7: memref<16x64x10xbf16, #tpu.memory_space<vmem>>, %arg8: memref<1x10xf32, #tpu.memory_space<vmem>>, %arg9: memref<8x10xf32, #tpu.memory_space<vmem>>, %arg10: memref<288x256xbf16, #tpu.memory_space<vmem>>, %arg11: memref<288x32xbf16, #tpu.memory_space<vmem>>, %arg12: memref<176x64xf32, #tpu.memory_space<vmem>>) attributes {dimension_semantics = [#tpu.dimension_semantics<parallel>], iteration_bounds = array<i64: 1>, scalar_prefetch = 0 : i64, scratch_operands = 3 : i64, tpu.core_type = #tpu.core_type<tc>, window_params = [{transform_indices = @transform_0, window_bounds = array<i64: 288, 100>}, {pipeline_mode = #tpu.pipeline_mode<synchronous>, transform_indices = @transform_1, window_bounds = array<i64: 100, 256>}, {pipeline_mode = #tpu.pipeline_mode<synchronous>, transform_indices = @transform_2, window_bounds = array<i64: 256, 32>}, {pipeline_mode = #tpu.pipeline_mode<synchronous>, transform_indices = @transform_3, window_bounds = array<i64: 1, 32>}, {pipeline_mode = #tpu.pipeline_mode<synchronous>, transform_indices = @transform_4, window_bounds = array<i64: 9, 32, 64>}, {pipeline_mode = #tpu.pipeline_mode<synchronous>, transform_indices = @transform_5, window_bounds = array<i64: 1, 64>}, {pipeline_mode = #tpu.pipeline_mode<synchronous>, transform_indices = @transform_6, window_bounds = array<i64: 16, 64, 10>}, {pipeline_mode = #tpu.pipeline_mode<synchronous>, transform_indices = @transform_7, window_bounds = array<i64: 1, 10>}, {transform_indices = @transform_8, window_bounds = array<i64: 8, 10>}]} {
    %c0 = arith.constant 0 : index
    %c0_0 = arith.constant 0 : index
    %0 = vector.load %arg1[%c0, %c0_0] : memref<288x100xbf16, #tpu.memory_space<vmem>>, vector<288x100xbf16>
    %c0_1 = arith.constant 0 : index
    %c0_2 = arith.constant 0 : index
    %1 = vector.load %arg2[%c0_1, %c0_2] : memref<100x256xbf16, #tpu.memory_space<vmem>>, vector<100x256xbf16>
    %cst = arith.constant dense<0.000000e+00> : vector<288x256xf32>
    %2 = tpu.matmul %0, %1, %cst {dimension_numbers = #tpu.dot_dimension_numbers<[1], [0], [0], [1], [0, 0, 1, 1], [], []>} : vector<288x100xbf16>, vector<100x256xbf16>, vector<288x256xf32> -> vector<288x256xf32>
    %cst_3 = arith.constant 0.000000e+00 : f32
    %3 = vector.broadcast %cst_3 : f32 to vector<288x256xf32>
    %4 = arith.maximumf %2, %3 : vector<288x256xf32>
    %5 = arith.truncf %4 : vector<288x256xf32> to vector<288x256xbf16>
    %c0_4 = arith.constant 0 : index
    %c0_5 = arith.constant 0 : index
    %6 = vector.load %arg10[%c0_4, %c0_5] : memref<288x256xbf16, #tpu.memory_space<vmem>>, vector<288x256xbf16>
    tpu.vector_store %arg10[%c0_4, %c0_5], %5 {strides = array<i32>} : memref<288x256xbf16, #tpu.memory_space<vmem>>, vector<288x256xbf16>,
    %c0_6 = arith.constant 0 : index
    %c0_7 = arith.constant 0 : index
    %7 = vector.load %arg10[%c0_6, %c0_7] : memref<288x256xbf16, #tpu.memory_space<vmem>>, vector<288x256xbf16>
    %c0_8 = arith.constant 0 : index
    %c0_9 = arith.constant 0 : index
    %8 = vector.load %arg3[%c0_8, %c0_9] : memref<256x32xbf16, #tpu.memory_space<vmem>>, vector<256x32xbf16>
    %cst_10 = arith.constant dense<0.000000e+00> : vector<288x32xf32>
    %9 = tpu.matmul %7, %8, %cst_10 {dimension_numbers = #tpu.dot_dimension_numbers<[1], [0], [0], [1], [0, 0, 1, 1], [], []>} : vector<288x256xbf16>, vector<256x32xbf16>, vector<288x32xf32> -> vector<288x32xf32>
    %c0_11 = arith.constant 0 : index
    %c0_12 = arith.constant 0 : index
    %10 = vector.load %arg4[%c0_11, %c0_12] : memref<1x32xf32, #tpu.memory_space<vmem>>, vector<1x32xf32>
    %11 = vector.broadcast %10 : vector<1x32xf32> to vector<288x32xf32>
    %12 = arith.addf %9, %11 : vector<288x32xf32>
    %cst_13 = arith.constant 0.000000e+00 : f32
    %13 = vector.broadcast %cst_13 : f32 to vector<288x32xf32>
    %14 = arith.maximumf %12, %13 : vector<288x32xf32>
    %15 = arith.truncf %14 : vector<288x32xf32> to vector<288x32xbf16>
    %c0_14 = arith.constant 0 : index
    %c0_15 = arith.constant 0 : index
    %16 = vector.load %arg11[%c0_14, %c0_15] : memref<288x32xbf16, #tpu.memory_space<vmem>>, vector<288x32xbf16>
    tpu.vector_store %arg11[%c0_14, %c0_15], %15 {strides = array<i32>} : memref<288x32xbf16, #tpu.memory_space<vmem>>, vector<288x32xbf16>,
    %c0_16 = arith.constant 0 : index
    %c0_17 = arith.constant 0 : index
    %17 = vector.load %arg11[%c0_16, %c0_17] : memref<288x32xbf16, #tpu.memory_space<vmem>>, vector<176x32xbf16>
    %c0_18 = arith.constant 0 : index
    %c0_19 = arith.constant 0 : index
    %c0_20 = arith.constant 0 : index
    %18 = vector.load %arg5[%c0_18, %c0_19, %c0_20] : memref<9x32x64xbf16, #tpu.memory_space<vmem>>, vector<1x32x64xbf16>
    %19 = vector.shape_cast %18 : vector<1x32x64xbf16> to vector<32x64xbf16>
    %cst_21 = arith.constant dense<0.000000e+00> : vector<176x64xf32>
    %20 = tpu.matmul %17, %19, %cst_21 {dimension_numbers = #tpu.dot_dimension_numbers<[1], [0], [0], [1], [0, 0, 1, 1], [], []>} : vector<176x32xbf16>, vector<32x64xbf16>, vector<176x64xf32> -> vector<176x64xf32>
    %c0_22 = arith.constant 0 : index
    %c0_23 = arith.constant 0 : index
    %21 = vector.load %arg12[%c0_22, %c0_23] : memref<176x64xf32, #tpu.memory_space<vmem>>, vector<176x64xf32>
    tpu.vector_store %arg12[%c0_22, %c0_23], %20 {strides = array<i32>} : memref<176x64xf32, #tpu.memory_space<vmem>>, vector<176x64xf32>,
    %c0_24 = arith.constant 0 : index
    %c0_25 = arith.constant 0 : index
    %22 = vector.load %arg12[%c0_24, %c0_25] : memref<176x64xf32, #tpu.memory_space<vmem>>, vector<176x64xf32>
    %c8 = arith.constant 8 : index
    %c0_26 = arith.constant 0 : index
    %23 = vector.load %arg11[%c8, %c0_26] : memref<288x32xbf16, #tpu.memory_space<vmem>>, vector<176x32xbf16>
    %c1 = arith.constant 1 : index
    %c0_27 = arith.constant 0 : index
    %c0_28 = arith.constant 0 : index
    %24 = vector.load %arg5[%c1, %c0_27, %c0_28] : memref<9x32x64xbf16, #tpu.memory_space<vmem>>, vector<1x32x64xbf16>
    %25 = vector.shape_cast %24 : vector<1x32x64xbf16> to vector<32x64xbf16>
    %cst_29 = arith.constant dense<0.000000e+00> : vector<176x64xf32>
    %26 = tpu.matmul %23, %25, %cst_29 {dimension_numbers = #tpu.dot_dimension_numbers<[1], [0], [0], [1], [0, 0, 1, 1], [], []>} : vector<176x32xbf16>, vector<32x64xbf16>, vector<176x64xf32> -> vector<176x64xf32>
    %27 = arith.addf %22, %26 : vector<176x64xf32>
    %c0_30 = arith.constant 0 : index
    %c0_31 = arith.constant 0 : index
    %28 = vector.load %arg12[%c0_30, %c0_31] : memref<176x64xf32, #tpu.memory_space<vmem>>, vector<176x64xf32>
    tpu.vector_store %arg12[%c0_30, %c0_31], %27 {strides = array<i32>} : memref<176x64xf32, #tpu.memory_space<vmem>>, vector<176x64xf32>,
    %c0_32 = arith.constant 0 : index
    %c0_33 = arith.constant 0 : index
    %29 = vector.load %arg12[%c0_32, %c0_33] : memref<176x64xf32, #tpu.memory_space<vmem>>, vector<176x64xf32>
    %c16 = arith.constant 16 : index
    %c0_34 = arith.constant 0 : index
    %30 = vector.load %arg11[%c16, %c0_34] : memref<288x32xbf16, #tpu.memory_space<vmem>>, vector<176x32xbf16>
    %c2 = arith.constant 2 : index
    %c0_35 = arith.constant 0 : index
    %c0_36 = arith.constant 0 : index
    %31 = vector.load %arg5[%c2, %c0_35, %c0_36] : memref<9x32x64xbf16, #tpu.memory_space<vmem>>, vector<1x32x64xbf16>
    %32 = vector.shape_cast %31 : vector<1x32x64xbf16> to vector<32x64xbf16>
    %cst_37 = arith.constant dense<0.000000e+00> : vector<176x64xf32>
    %33 = tpu.matmul %30, %32, %cst_37 {dimension_numbers = #tpu.dot_dimension_numbers<[1], [0], [0], [1], [0, 0, 1, 1], [], []>} : vector<176x32xbf16>, vector<32x64xbf16>, vector<176x64xf32> -> vector<176x64xf32>
    %34 = arith.addf %29, %33 : vector<176x64xf32>
    %c0_38 = arith.constant 0 : index
    %c0_39 = arith.constant 0 : index
    %35 = vector.load %arg12[%c0_38, %c0_39] : memref<176x64xf32, #tpu.memory_space<vmem>>, vector<176x64xf32>
    tpu.vector_store %arg12[%c0_38, %c0_39], %34 {strides = array<i32>} : memref<176x64xf32, #tpu.memory_space<vmem>>, vector<176x64xf32>,
    %c0_40 = arith.constant 0 : index
    %c0_41 = arith.constant 0 : index
    %36 = vector.load %arg12[%c0_40, %c0_41] : memref<176x64xf32, #tpu.memory_space<vmem>>, vector<176x64xf32>
    %c48 = arith.constant 48 : index
    %c0_42 = arith.constant 0 : index
    %37 = vector.load %arg11[%c48, %c0_42] : memref<288x32xbf16, #tpu.memory_space<vmem>>, vector<176x32xbf16>
    %c3 = arith.constant 3 : index
    %c0_43 = arith.constant 0 : index
    %c0_44 = arith.constant 0 : index
    %38 = vector.load %arg5[%c3, %c0_43, %c0_44] : memref<9x32x64xbf16, #tpu.memory_space<vmem>>, vector<1x32x64xbf16>
    %39 = vector.shape_cast %38 : vector<1x32x64xbf16> to vector<32x64xbf16>
    %cst_45 = arith.constant dense<0.000000e+00> : vector<176x64xf32>
    %40 = tpu.matmul %37, %39, %cst_45 {dimension_numbers = #tpu.dot_dimension_numbers<[1], [0], [0], [1], [0, 0, 1, 1], [], []>} : vector<176x32xbf16>, vector<32x64xbf16>, vector<176x64xf32> -> vector<176x64xf32>
    %41 = arith.addf %36, %40 : vector<176x64xf32>
    %c0_46 = arith.constant 0 : index
    %c0_47 = arith.constant 0 : index
    %42 = vector.load %arg12[%c0_46, %c0_47] : memref<176x64xf32, #tpu.memory_space<vmem>>, vector<176x64xf32>
    tpu.vector_store %arg12[%c0_46, %c0_47], %41 {strides = array<i32>} : memref<176x64xf32, #tpu.memory_space<vmem>>, vector<176x64xf32>,
    %c0_48 = arith.constant 0 : index
    %c0_49 = arith.constant 0 : index
    %43 = vector.load %arg12[%c0_48, %c0_49] : memref<176x64xf32, #tpu.memory_space<vmem>>, vector<176x64xf32>
    %c56 = arith.constant 56 : index
    %c0_50 = arith.constant 0 : index
    %44 = vector.load %arg11[%c56, %c0_50] : memref<288x32xbf16, #tpu.memory_space<vmem>>, vector<176x32xbf16>
    %c4 = arith.constant 4 : index
    %c0_51 = arith.constant 0 : index
    %c0_52 = arith.constant 0 : index
    %45 = vector.load %arg5[%c4, %c0_51, %c0_52] : memref<9x32x64xbf16, #tpu.memory_space<vmem>>, vector<1x32x64xbf16>
    %46 = vector.shape_cast %45 : vector<1x32x64xbf16> to vector<32x64xbf16>
    %cst_53 = arith.constant dense<0.000000e+00> : vector<176x64xf32>
    %47 = tpu.matmul %44, %46, %cst_53 {dimension_numbers = #tpu.dot_dimension_numbers<[1], [0], [0], [1], [0, 0, 1, 1], [], []>} : vector<176x32xbf16>, vector<32x64xbf16>, vector<176x64xf32> -> vector<176x64xf32>
    %48 = arith.addf %43, %47 : vector<176x64xf32>
    %c0_54 = arith.constant 0 : index
    %c0_55 = arith.constant 0 : index
    %49 = vector.load %arg12[%c0_54, %c0_55] : memref<176x64xf32, #tpu.memory_space<vmem>>, vector<176x64xf32>
    tpu.vector_store %arg12[%c0_54, %c0_55], %48 {strides = array<i32>} : memref<176x64xf32, #tpu.memory_space<vmem>>, vector<176x64xf32>,
    %c0_56 = arith.constant 0 : index
    %c0_57 = arith.constant 0 : index
    %50 = vector.load %arg12[%c0_56, %c0_57] : memref<176x64xf32, #tpu.memory_space<vmem>>, vector<176x64xf32>
    %c64 = arith.constant 64 : index
    %c0_58 = arith.constant 0 : index
    %51 = vector.load %arg11[%c64, %c0_58] : memref<288x32xbf16, #tpu.memory_space<vmem>>, vector<176x32xbf16>
    %c5 = arith.constant 5 : index
    %c0_59 = arith.constant 0 : index
    %c0_60 = arith.constant 0 : index
    %52 = vector.load %arg5[%c5, %c0_59, %c0_60] : memref<9x32x64xbf16, #tpu.memory_space<vmem>>, vector<1x32x64xbf16>
    %53 = vector.shape_cast %52 : vector<1x32x64xbf16> to vector<32x64xbf16>
    %cst_61 = arith.constant dense<0.000000e+00> : vector<176x64xf32>
    %54 = tpu.matmul %51, %53, %cst_61 {dimension_numbers = #tpu.dot_dimension_numbers<[1], [0], [0], [1], [0, 0, 1, 1], [], []>} : vector<176x32xbf16>, vector<32x64xbf16>, vector<176x64xf32> -> vector<176x64xf32>
    %55 = arith.addf %50, %54 : vector<176x64xf32>
    %c0_62 = arith.constant 0 : index
    %c0_63 = arith.constant 0 : index
    %56 = vector.load %arg12[%c0_62, %c0_63] : memref<176x64xf32, #tpu.memory_space<vmem>>, vector<176x64xf32>
    tpu.vector_store %arg12[%c0_62, %c0_63], %55 {strides = array<i32>} : memref<176x64xf32, #tpu.memory_space<vmem>>, vector<176x64xf32>,
    %c0_64 = arith.constant 0 : index
    %c0_65 = arith.constant 0 : index
    %57 = vector.load %arg12[%c0_64, %c0_65] : memref<176x64xf32, #tpu.memory_space<vmem>>, vector<176x64xf32>
    %c96 = arith.constant 96 : index
    %c0_66 = arith.constant 0 : index
    %58 = vector.load %arg11[%c96, %c0_66] : memref<288x32xbf16, #tpu.memory_space<vmem>>, vector<176x32xbf16>
    %c6 = arith.constant 6 : index
    %c0_67 = arith.constant 0 : index
    %c0_68 = arith.constant 0 : index
    %59 = vector.load %arg5[%c6, %c0_67, %c0_68] : memref<9x32x64xbf16, #tpu.memory_space<vmem>>, vector<1x32x64xbf16>
    %60 = vector.shape_cast %59 : vector<1x32x64xbf16> to vector<32x64xbf16>
    %cst_69 = arith.constant dense<0.000000e+00> : vector<176x64xf32>
    %61 = tpu.matmul %58, %60, %cst_69 {dimension_numbers = #tpu.dot_dimension_numbers<[1], [0], [0], [1], [0, 0, 1, 1], [], []>} : vector<176x32xbf16>, vector<32x64xbf16>, vector<176x64xf32> -> vector<176x64xf32>
    %62 = arith.addf %57, %61 : vector<176x64xf32>
    %c0_70 = arith.constant 0 : index
    %c0_71 = arith.constant 0 : index
    %63 = vector.load %arg12[%c0_70, %c0_71] : memref<176x64xf32, #tpu.memory_space<vmem>>, vector<176x64xf32>
    tpu.vector_store %arg12[%c0_70, %c0_71], %62 {strides = array<i32>} : memref<176x64xf32, #tpu.memory_space<vmem>>, vector<176x64xf32>,
    %c0_72 = arith.constant 0 : index
    %c0_73 = arith.constant 0 : index
    %64 = vector.load %arg12[%c0_72, %c0_73] : memref<176x64xf32, #tpu.memory_space<vmem>>, vector<176x64xf32>
    %c104 = arith.constant 104 : index
    %c0_74 = arith.constant 0 : index
    %65 = vector.load %arg11[%c104, %c0_74] : memref<288x32xbf16, #tpu.memory_space<vmem>>, vector<176x32xbf16>
    %c7 = arith.constant 7 : index
    %c0_75 = arith.constant 0 : index
    %c0_76 = arith.constant 0 : index
    %66 = vector.load %arg5[%c7, %c0_75, %c0_76] : memref<9x32x64xbf16, #tpu.memory_space<vmem>>, vector<1x32x64xbf16>
    %67 = vector.shape_cast %66 : vector<1x32x64xbf16> to vector<32x64xbf16>
    %cst_77 = arith.constant dense<0.000000e+00> : vector<176x64xf32>
    %68 = tpu.matmul %65, %67, %cst_77 {dimension_numbers = #tpu.dot_dimension_numbers<[1], [0], [0], [1], [0, 0, 1, 1], [], []>} : vector<176x32xbf16>, vector<32x64xbf16>, vector<176x64xf32> -> vector<176x64xf32>
    %69 = arith.addf %64, %68 : vector<176x64xf32>
    %c0_78 = arith.constant 0 : index
    %c0_79 = arith.constant 0 : index
    %70 = vector.load %arg12[%c0_78, %c0_79] : memref<176x64xf32, #tpu.memory_space<vmem>>, vector<176x64xf32>
    tpu.vector_store %arg12[%c0_78, %c0_79], %69 {strides = array<i32>} : memref<176x64xf32, #tpu.memory_space<vmem>>, vector<176x64xf32>,
    %c0_80 = arith.constant 0 : index
    %c0_81 = arith.constant 0 : index
    %71 = vector.load %arg12[%c0_80, %c0_81] : memref<176x64xf32, #tpu.memory_space<vmem>>, vector<176x64xf32>
    %c112 = arith.constant 112 : index
    %c0_82 = arith.constant 0 : index
    %72 = vector.load %arg11[%c112, %c0_82] : memref<288x32xbf16, #tpu.memory_space<vmem>>, vector<176x32xbf16>
    %c8_83 = arith.constant 8 : index
    %c0_84 = arith.constant 0 : index
    %c0_85 = arith.constant 0 : index
    %73 = vector.load %arg5[%c8_83, %c0_84, %c0_85] : memref<9x32x64xbf16, #tpu.memory_space<vmem>>, vector<1x32x64xbf16>
    %74 = vector.shape_cast %73 : vector<1x32x64xbf16> to vector<32x64xbf16>
    %cst_86 = arith.constant dense<0.000000e+00> : vector<176x64xf32>
    %75 = tpu.matmul %72, %74, %cst_86 {dimension_numbers = #tpu.dot_dimension_numbers<[1], [0], [0], [1], [0, 0, 1, 1], [], []>} : vector<176x32xbf16>, vector<32x64xbf16>, vector<176x64xf32> -> vector<176x64xf32>
    %76 = arith.addf %71, %75 : vector<176x64xf32>
    %c0_87 = arith.constant 0 : index
    %c0_88 = arith.constant 0 : index
    %77 = vector.load %arg12[%c0_87, %c0_88] : memref<176x64xf32, #tpu.memory_space<vmem>>, vector<176x64xf32>
    tpu.vector_store %arg12[%c0_87, %c0_88], %76 {strides = array<i32>} : memref<176x64xf32, #tpu.memory_space<vmem>>, vector<176x64xf32>,
    %cst_89 = arith.constant 0.000000e+00 : f32
    %78 = vector.broadcast %cst_89 : f32 to vector<8x10xf32>
    %c0_90 = arith.constant 0 : index
    %c0_91 = arith.constant 0 : index
    %79 = vector.load %arg12[%c0_90, %c0_91] : memref<176x64xf32, #tpu.memory_space<vmem>>, vector<8x64xf32>
    %c0_92 = arith.constant 0 : index
    %c0_93 = arith.constant 0 : index
    %80 = vector.load %arg6[%c0_92, %c0_93] : memref<1x64xf32, #tpu.memory_space<vmem>>, vector<1x64xf32>
    %81 = vector.broadcast %80 : vector<1x64xf32> to vector<8x64xf32>
    %82 = arith.addf %79, %81 : vector<8x64xf32>
    %cst_94 = arith.constant 0.000000e+00 : f32
    %83 = vector.broadcast %cst_94 : f32 to vector<8x64xf32>
    %84 = arith.maximumf %82, %83 : vector<8x64xf32>
    %85 = arith.truncf %84 : vector<8x64xf32> to vector<8x64xbf16>
    %c0_95 = arith.constant 0 : index
    %c0_96 = arith.constant 0 : index
    %c0_97 = arith.constant 0 : index
    %86 = vector.load %arg7[%c0_95, %c0_96, %c0_97] : memref<16x64x10xbf16, #tpu.memory_space<vmem>>, vector<1x64x10xbf16>
    %87 = vector.shape_cast %86 : vector<1x64x10xbf16> to vector<64x10xbf16>
    %cst_98 = arith.constant dense<0.000000e+00> : vector<8x10xf32>
    %88 = tpu.matmul %85, %87, %cst_98 {dimension_numbers = #tpu.dot_dimension_numbers<[1], [0], [0], [1], [0, 0, 1, 1], [], []>} : vector<8x64xbf16>, vector<64x10xbf16>, vector<8x10xf32> -> vector<8x10xf32>
    %89 = arith.addf %78, %88 : vector<8x10xf32>
    %c8_99 = arith.constant 8 : index
    %c0_100 = arith.constant 0 : index
    %90 = vector.load %arg12[%c8_99, %c0_100] : memref<176x64xf32, #tpu.memory_space<vmem>>, vector<8x64xf32>
    %c0_101 = arith.constant 0 : index
    %c0_102 = arith.constant 0 : index
    %91 = vector.load %arg6[%c0_101, %c0_102] : memref<1x64xf32, #tpu.memory_space<vmem>>, vector<1x64xf32>
    %92 = vector.broadcast %91 : vector<1x64xf32> to vector<8x64xf32>
    %93 = arith.addf %90, %92 : vector<8x64xf32>
    %cst_103 = arith.constant 0.000000e+00 : f32
    %94 = vector.broadcast %cst_103 : f32 to vector<8x64xf32>
    %95 = arith.maximumf %93, %94 : vector<8x64xf32>
    %96 = arith.truncf %95 : vector<8x64xf32> to vector<8x64xbf16>
    %c1_104 = arith.constant 1 : index
    %c0_105 = arith.constant 0 : index
    %c0_106 = arith.constant 0 : index
    %97 = vector.load %arg7[%c1_104, %c0_105, %c0_106] : memref<16x64x10xbf16, #tpu.memory_space<vmem>>, vector<1x64x10xbf16>
    %98 = vector.shape_cast %97 : vector<1x64x10xbf16> to vector<64x10xbf16>
    %cst_107 = arith.constant dense<0.000000e+00> : vector<8x10xf32>
    %99 = tpu.matmul %96, %98, %cst_107 {dimension_numbers = #tpu.dot_dimension_numbers<[1], [0], [0], [1], [0, 0, 1, 1], [], []>} : vector<8x64xbf16>, vector<64x10xbf16>, vector<8x10xf32> -> vector<8x10xf32>
    %100 = arith.addf %89, %99 : vector<8x10xf32>
    %c16_108 = arith.constant 16 : index
    %c0_109 = arith.constant 0 : index
    %101 = vector.load %arg12[%c16_108, %c0_109] : memref<176x64xf32, #tpu.memory_space<vmem>>, vector<8x64xf32>
    %c0_110 = arith.constant 0 : index
    %c0_111 = arith.constant 0 : index
    %102 = vector.load %arg6[%c0_110, %c0_111] : memref<1x64xf32, #tpu.memory_space<vmem>>, vector<1x64xf32>
    %103 = vector.broadcast %102 : vector<1x64xf32> to vector<8x64xf32>
    %104 = arith.addf %101, %103 : vector<8x64xf32>
    %cst_112 = arith.constant 0.000000e+00 : f32
    %105 = vector.broadcast %cst_112 : f32 to vector<8x64xf32>
    %106 = arith.maximumf %104, %105 : vector<8x64xf32>
    %107 = arith.truncf %106 : vector<8x64xf32> to vector<8x64xbf16>
    %c2_113 = arith.constant 2 : index
    %c0_114 = arith.constant 0 : index
    %c0_115 = arith.constant 0 : index
    %108 = vector.load %arg7[%c2_113, %c0_114, %c0_115] : memref<16x64x10xbf16, #tpu.memory_space<vmem>>, vector<1x64x10xbf16>
    %109 = vector.shape_cast %108 : vector<1x64x10xbf16> to vector<64x10xbf16>
    %cst_116 = arith.constant dense<0.000000e+00> : vector<8x10xf32>
    %110 = tpu.matmul %107, %109, %cst_116 {dimension_numbers = #tpu.dot_dimension_numbers<[1], [0], [0], [1], [0, 0, 1, 1], [], []>} : vector<8x64xbf16>, vector<64x10xbf16>, vector<8x10xf32> -> vector<8x10xf32>
    %111 = arith.addf %100, %110 : vector<8x10xf32>
    %c24 = arith.constant 24 : index
    %c0_117 = arith.constant 0 : index
    %112 = vector.load %arg12[%c24, %c0_117] : memref<176x64xf32, #tpu.memory_space<vmem>>, vector<8x64xf32>
    %c0_118 = arith.constant 0 : index
    %c0_119 = arith.constant 0 : index
    %113 = vector.load %arg6[%c0_118, %c0_119] : memref<1x64xf32, #tpu.memory_space<vmem>>, vector<1x64xf32>
    %114 = vector.broadcast %113 : vector<1x64xf32> to vector<8x64xf32>
    %115 = arith.addf %112, %114 : vector<8x64xf32>
    %cst_120 = arith.constant 0.000000e+00 : f32
    %116 = vector.broadcast %cst_120 : f32 to vector<8x64xf32>
    %117 = arith.maximumf %115, %116 : vector<8x64xf32>
    %118 = arith.truncf %117 : vector<8x64xf32> to vector<8x64xbf16>
    %c3_121 = arith.constant 3 : index
    %c0_122 = arith.constant 0 : index
    %c0_123 = arith.constant 0 : index
    %119 = vector.load %arg7[%c3_121, %c0_122, %c0_123] : memref<16x64x10xbf16, #tpu.memory_space<vmem>>, vector<1x64x10xbf16>
    %120 = vector.shape_cast %119 : vector<1x64x10xbf16> to vector<64x10xbf16>
    %cst_124 = arith.constant dense<0.000000e+00> : vector<8x10xf32>
    %121 = tpu.matmul %118, %120, %cst_124 {dimension_numbers = #tpu.dot_dimension_numbers<[1], [0], [0], [1], [0, 0, 1, 1], [], []>} : vector<8x64xbf16>, vector<64x10xbf16>, vector<8x10xf32> -> vector<8x10xf32>
    %122 = arith.addf %111, %121 : vector<8x10xf32>
    %c48_125 = arith.constant 48 : index
    %c0_126 = arith.constant 0 : index
    %123 = vector.load %arg12[%c48_125, %c0_126] : memref<176x64xf32, #tpu.memory_space<vmem>>, vector<8x64xf32>
    %c0_127 = arith.constant 0 : index
    %c0_128 = arith.constant 0 : index
    %124 = vector.load %arg6[%c0_127, %c0_128] : memref<1x64xf32, #tpu.memory_space<vmem>>, vector<1x64xf32>
    %125 = vector.broadcast %124 : vector<1x64xf32> to vector<8x64xf32>
    %126 = arith.addf %123, %125 : vector<8x64xf32>
    %cst_129 = arith.constant 0.000000e+00 : f32
    %127 = vector.broadcast %cst_129 : f32 to vector<8x64xf32>
    %128 = arith.maximumf %126, %127 : vector<8x64xf32>
    %129 = arith.truncf %128 : vector<8x64xf32> to vector<8x64xbf16>
    %c4_130 = arith.constant 4 : index
    %c0_131 = arith.constant 0 : index
    %c0_132 = arith.constant 0 : index
    %130 = vector.load %arg7[%c4_130, %c0_131, %c0_132] : memref<16x64x10xbf16, #tpu.memory_space<vmem>>, vector<1x64x10xbf16>
    %131 = vector.shape_cast %130 : vector<1x64x10xbf16> to vector<64x10xbf16>
    %cst_133 = arith.constant dense<0.000000e+00> : vector<8x10xf32>
    %132 = tpu.matmul %129, %131, %cst_133 {dimension_numbers = #tpu.dot_dimension_numbers<[1], [0], [0], [1], [0, 0, 1, 1], [], []>} : vector<8x64xbf16>, vector<64x10xbf16>, vector<8x10xf32> -> vector<8x10xf32>
    %133 = arith.addf %122, %132 : vector<8x10xf32>
    %c56_134 = arith.constant 56 : index
    %c0_135 = arith.constant 0 : index
    %134 = vector.load %arg12[%c56_134, %c0_135] : memref<176x64xf32, #tpu.memory_space<vmem>>, vector<8x64xf32>
    %c0_136 = arith.constant 0 : index
    %c0_137 = arith.constant 0 : index
    %135 = vector.load %arg6[%c0_136, %c0_137] : memref<1x64xf32, #tpu.memory_space<vmem>>, vector<1x64xf32>
    %136 = vector.broadcast %135 : vector<1x64xf32> to vector<8x64xf32>
    %137 = arith.addf %134, %136 : vector<8x64xf32>
    %cst_138 = arith.constant 0.000000e+00 : f32
    %138 = vector.broadcast %cst_138 : f32 to vector<8x64xf32>
    %139 = arith.maximumf %137, %138 : vector<8x64xf32>
    %140 = arith.truncf %139 : vector<8x64xf32> to vector<8x64xbf16>
    %c5_139 = arith.constant 5 : index
    %c0_140 = arith.constant 0 : index
    %c0_141 = arith.constant 0 : index
    %141 = vector.load %arg7[%c5_139, %c0_140, %c0_141] : memref<16x64x10xbf16, #tpu.memory_space<vmem>>, vector<1x64x10xbf16>
    %142 = vector.shape_cast %141 : vector<1x64x10xbf16> to vector<64x10xbf16>
    %cst_142 = arith.constant dense<0.000000e+00> : vector<8x10xf32>
    %143 = tpu.matmul %140, %142, %cst_142 {dimension_numbers = #tpu.dot_dimension_numbers<[1], [0], [0], [1], [0, 0, 1, 1], [], []>} : vector<8x64xbf16>, vector<64x10xbf16>, vector<8x10xf32> -> vector<8x10xf32>
    %144 = arith.addf %133, %143 : vector<8x10xf32>
    %c64_143 = arith.constant 64 : index
    %c0_144 = arith.constant 0 : index
    %145 = vector.load %arg12[%c64_143, %c0_144] : memref<176x64xf32, #tpu.memory_space<vmem>>, vector<8x64xf32>
    %c0_145 = arith.constant 0 : index
    %c0_146 = arith.constant 0 : index
    %146 = vector.load %arg6[%c0_145, %c0_146] : memref<1x64xf32, #tpu.memory_space<vmem>>, vector<1x64xf32>
    %147 = vector.broadcast %146 : vector<1x64xf32> to vector<8x64xf32>
    %148 = arith.addf %145, %147 : vector<8x64xf32>
    %cst_147 = arith.constant 0.000000e+00 : f32
    %149 = vector.broadcast %cst_147 : f32 to vector<8x64xf32>
    %150 = arith.maximumf %148, %149 : vector<8x64xf32>
    %151 = arith.truncf %150 : vector<8x64xf32> to vector<8x64xbf16>
    %c6_148 = arith.constant 6 : index
    %c0_149 = arith.constant 0 : index
    %c0_150 = arith.constant 0 : index
    %152 = vector.load %arg7[%c6_148, %c0_149, %c0_150] : memref<16x64x10xbf16, #tpu.memory_space<vmem>>, vector<1x64x10xbf16>
    %153 = vector.shape_cast %152 : vector<1x64x10xbf16> to vector<64x10xbf16>
    %cst_151 = arith.constant dense<0.000000e+00> : vector<8x10xf32>
    %154 = tpu.matmul %151, %153, %cst_151 {dimension_numbers = #tpu.dot_dimension_numbers<[1], [0], [0], [1], [0, 0, 1, 1], [], []>} : vector<8x64xbf16>, vector<64x10xbf16>, vector<8x10xf32> -> vector<8x10xf32>
    %155 = arith.addf %144, %154 : vector<8x10xf32>
    %c72 = arith.constant 72 : index
    %c0_152 = arith.constant 0 : index
    %156 = vector.load %arg12[%c72, %c0_152] : memref<176x64xf32, #tpu.memory_space<vmem>>, vector<8x64xf32>
    %c0_153 = arith.constant 0 : index
    %c0_154 = arith.constant 0 : index
    %157 = vector.load %arg6[%c0_153, %c0_154] : memref<1x64xf32, #tpu.memory_space<vmem>>, vector<1x64xf32>
    %158 = vector.broadcast %157 : vector<1x64xf32> to vector<8x64xf32>
    %159 = arith.addf %156, %158 : vector<8x64xf32>
    %cst_155 = arith.constant 0.000000e+00 : f32
    %160 = vector.broadcast %cst_155 : f32 to vector<8x64xf32>
    %161 = arith.maximumf %159, %160 : vector<8x64xf32>
    %162 = arith.truncf %161 : vector<8x64xf32> to vector<8x64xbf16>
    %c7_156 = arith.constant 7 : index
    %c0_157 = arith.constant 0 : index
    %c0_158 = arith.constant 0 : index
    %163 = vector.load %arg7[%c7_156, %c0_157, %c0_158] : memref<16x64x10xbf16, #tpu.memory_space<vmem>>, vector<1x64x10xbf16>
    %164 = vector.shape_cast %163 : vector<1x64x10xbf16> to vector<64x10xbf16>
    %cst_159 = arith.constant dense<0.000000e+00> : vector<8x10xf32>
    %165 = tpu.matmul %162, %164, %cst_159 {dimension_numbers = #tpu.dot_dimension_numbers<[1], [0], [0], [1], [0, 0, 1, 1], [], []>} : vector<8x64xbf16>, vector<64x10xbf16>, vector<8x10xf32> -> vector<8x10xf32>
    %166 = arith.addf %155, %165 : vector<8x10xf32>
    %c96_160 = arith.constant 96 : index
    %c0_161 = arith.constant 0 : index
    %167 = vector.load %arg12[%c96_160, %c0_161] : memref<176x64xf32, #tpu.memory_space<vmem>>, vector<8x64xf32>
    %c0_162 = arith.constant 0 : index
    %c0_163 = arith.constant 0 : index
    %168 = vector.load %arg6[%c0_162, %c0_163] : memref<1x64xf32, #tpu.memory_space<vmem>>, vector<1x64xf32>
    %169 = vector.broadcast %168 : vector<1x64xf32> to vector<8x64xf32>
    %170 = arith.addf %167, %169 : vector<8x64xf32>
    %cst_164 = arith.constant 0.000000e+00 : f32
    %171 = vector.broadcast %cst_164 : f32 to vector<8x64xf32>
    %172 = arith.maximumf %170, %171 : vector<8x64xf32>
    %173 = arith.truncf %172 : vector<8x64xf32> to vector<8x64xbf16>
    %c8_165 = arith.constant 8 : index
    %c0_166 = arith.constant 0 : index
    %c0_167 = arith.constant 0 : index
    %174 = vector.load %arg7[%c8_165, %c0_166, %c0_167] : memref<16x64x10xbf16, #tpu.memory_space<vmem>>, vector<1x64x10xbf16>
    %175 = vector.shape_cast %174 : vector<1x64x10xbf16> to vector<64x10xbf16>
    %cst_168 = arith.constant dense<0.000000e+00> : vector<8x10xf32>
    %176 = tpu.matmul %173, %175, %cst_168 {dimension_numbers = #tpu.dot_dimension_numbers<[1], [0], [0], [1], [0, 0, 1, 1], [], []>} : vector<8x64xbf16>, vector<64x10xbf16>, vector<8x10xf32> -> vector<8x10xf32>
    %177 = arith.addf %166, %176 : vector<8x10xf32>
    %c104_169 = arith.constant 104 : index
    %c0_170 = arith.constant 0 : index
    %178 = vector.load %arg12[%c104_169, %c0_170] : memref<176x64xf32, #tpu.memory_space<vmem>>, vector<8x64xf32>
    %c0_171 = arith.constant 0 : index
    %c0_172 = arith.constant 0 : index
    %179 = vector.load %arg6[%c0_171, %c0_172] : memref<1x64xf32, #tpu.memory_space<vmem>>, vector<1x64xf32>
    %180 = vector.broadcast %179 : vector<1x64xf32> to vector<8x64xf32>
    %181 = arith.addf %178, %180 : vector<8x64xf32>
    %cst_173 = arith.constant 0.000000e+00 : f32
    %182 = vector.broadcast %cst_173 : f32 to vector<8x64xf32>
    %183 = arith.maximumf %181, %182 : vector<8x64xf32>
    %184 = arith.truncf %183 : vector<8x64xf32> to vector<8x64xbf16>
    %c9 = arith.constant 9 : index
    %c0_174 = arith.constant 0 : index
    %c0_175 = arith.constant 0 : index
    %185 = vector.load %arg7[%c9, %c0_174, %c0_175] : memref<16x64x10xbf16, #tpu.memory_space<vmem>>, vector<1x64x10xbf16>
    %186 = vector.shape_cast %185 : vector<1x64x10xbf16> to vector<64x10xbf16>
    %cst_176 = arith.constant dense<0.000000e+00> : vector<8x10xf32>
    %187 = tpu.matmul %184, %186, %cst_176 {dimension_numbers = #tpu.dot_dimension_numbers<[1], [0], [0], [1], [0, 0, 1, 1], [], []>} : vector<8x64xbf16>, vector<64x10xbf16>, vector<8x10xf32> -> vector<8x10xf32>
    %188 = arith.addf %177, %187 : vector<8x10xf32>
    %c112_177 = arith.constant 112 : index
    %c0_178 = arith.constant 0 : index
    %189 = vector.load %arg12[%c112_177, %c0_178] : memref<176x64xf32, #tpu.memory_space<vmem>>, vector<8x64xf32>
    %c0_179 = arith.constant 0 : index
    %c0_180 = arith.constant 0 : index
    %190 = vector.load %arg6[%c0_179, %c0_180] : memref<1x64xf32, #tpu.memory_space<vmem>>, vector<1x64xf32>
    %191 = vector.broadcast %190 : vector<1x64xf32> to vector<8x64xf32>
    %192 = arith.addf %189, %191 : vector<8x64xf32>
    %cst_181 = arith.constant 0.000000e+00 : f32
    %193 = vector.broadcast %cst_181 : f32 to vector<8x64xf32>
    %194 = arith.maximumf %192, %193 : vector<8x64xf32>
    %195 = arith.truncf %194 : vector<8x64xf32> to vector<8x64xbf16>
    %c10 = arith.constant 10 : index
    %c0_182 = arith.constant 0 : index
    %c0_183 = arith.constant 0 : index
    %196 = vector.load %arg7[%c10, %c0_182, %c0_183] : memref<16x64x10xbf16, #tpu.memory_space<vmem>>, vector<1x64x10xbf16>
    %197 = vector.shape_cast %196 : vector<1x64x10xbf16> to vector<64x10xbf16>
    %cst_184 = arith.constant dense<0.000000e+00> : vector<8x10xf32>
    %198 = tpu.matmul %195, %197, %cst_184 {dimension_numbers = #tpu.dot_dimension_numbers<[1], [0], [0], [1], [0, 0, 1, 1], [], []>} : vector<8x64xbf16>, vector<64x10xbf16>, vector<8x10xf32> -> vector<8x10xf32>
    %199 = arith.addf %188, %198 : vector<8x10xf32>
    %c120 = arith.constant 120 : index
    %c0_185 = arith.constant 0 : index
    %200 = vector.load %arg12[%c120, %c0_185] : memref<176x64xf32, #tpu.memory_space<vmem>>, vector<8x64xf32>
    %c0_186 = arith.constant 0 : index
    %c0_187 = arith.constant 0 : index
    %201 = vector.load %arg6[%c0_186, %c0_187] : memref<1x64xf32, #tpu.memory_space<vmem>>, vector<1x64xf32>
    %202 = vector.broadcast %201 : vector<1x64xf32> to vector<8x64xf32>
    %203 = arith.addf %200, %202 : vector<8x64xf32>
    %cst_188 = arith.constant 0.000000e+00 : f32
    %204 = vector.broadcast %cst_188 : f32 to vector<8x64xf32>
    %205 = arith.maximumf %203, %204 : vector<8x64xf32>
    %206 = arith.truncf %205 : vector<8x64xf32> to vector<8x64xbf16>
    %c11 = arith.constant 11 : index
    %c0_189 = arith.constant 0 : index
    %c0_190 = arith.constant 0 : index
    %207 = vector.load %arg7[%c11, %c0_189, %c0_190] : memref<16x64x10xbf16, #tpu.memory_space<vmem>>, vector<1x64x10xbf16>
    %208 = vector.shape_cast %207 : vector<1x64x10xbf16> to vector<64x10xbf16>
    %cst_191 = arith.constant dense<0.000000e+00> : vector<8x10xf32>
    %209 = tpu.matmul %206, %208, %cst_191 {dimension_numbers = #tpu.dot_dimension_numbers<[1], [0], [0], [1], [0, 0, 1, 1], [], []>} : vector<8x64xbf16>, vector<64x10xbf16>, vector<8x10xf32> -> vector<8x10xf32>
    %210 = arith.addf %199, %209 : vector<8x10xf32>
    %c144 = arith.constant 144 : index
    %c0_192 = arith.constant 0 : index
    %211 = vector.load %arg12[%c144, %c0_192] : memref<176x64xf32, #tpu.memory_space<vmem>>, vector<8x64xf32>
    %c0_193 = arith.constant 0 : index
    %c0_194 = arith.constant 0 : index
    %212 = vector.load %arg6[%c0_193, %c0_194] : memref<1x64xf32, #tpu.memory_space<vmem>>, vector<1x64xf32>
    %213 = vector.broadcast %212 : vector<1x64xf32> to vector<8x64xf32>
    %214 = arith.addf %211, %213 : vector<8x64xf32>
    %cst_195 = arith.constant 0.000000e+00 : f32
    %215 = vector.broadcast %cst_195 : f32 to vector<8x64xf32>
    %216 = arith.maximumf %214, %215 : vector<8x64xf32>
    %217 = arith.truncf %216 : vector<8x64xf32> to vector<8x64xbf16>
    %c12 = arith.constant 12 : index
    %c0_196 = arith.constant 0 : index
    %c0_197 = arith.constant 0 : index
    %218 = vector.load %arg7[%c12, %c0_196, %c0_197] : memref<16x64x10xbf16, #tpu.memory_space<vmem>>, vector<1x64x10xbf16>
    %219 = vector.shape_cast %218 : vector<1x64x10xbf16> to vector<64x10xbf16>
    %cst_198 = arith.constant dense<0.000000e+00> : vector<8x10xf32>
    %220 = tpu.matmul %217, %219, %cst_198 {dimension_numbers = #tpu.dot_dimension_numbers<[1], [0], [0], [1], [0, 0, 1, 1], [], []>} : vector<8x64xbf16>, vector<64x10xbf16>, vector<8x10xf32> -> vector<8x10xf32>
    %221 = arith.addf %210, %220 : vector<8x10xf32>
    %c152 = arith.constant 152 : index
    %c0_199 = arith.constant 0 : index
    %222 = vector.load %arg12[%c152, %c0_199] : memref<176x64xf32, #tpu.memory_space<vmem>>, vector<8x64xf32>
    %c0_200 = arith.constant 0 : index
    %c0_201 = arith.constant 0 : index
    %223 = vector.load %arg6[%c0_200, %c0_201] : memref<1x64xf32, #tpu.memory_space<vmem>>, vector<1x64xf32>
    %224 = vector.broadcast %223 : vector<1x64xf32> to vector<8x64xf32>
    %225 = arith.addf %222, %224 : vector<8x64xf32>
    %cst_202 = arith.constant 0.000000e+00 : f32
    %226 = vector.broadcast %cst_202 : f32 to vector<8x64xf32>
    %227 = arith.maximumf %225, %226 : vector<8x64xf32>
    %228 = arith.truncf %227 : vector<8x64xf32> to vector<8x64xbf16>
    %c13 = arith.constant 13 : index
    %c0_203 = arith.constant 0 : index
    %c0_204 = arith.constant 0 : index
    %229 = vector.load %arg7[%c13, %c0_203, %c0_204] : memref<16x64x10xbf16, #tpu.memory_space<vmem>>, vector<1x64x10xbf16>
    %230 = vector.shape_cast %229 : vector<1x64x10xbf16> to vector<64x10xbf16>
    %cst_205 = arith.constant dense<0.000000e+00> : vector<8x10xf32>
    %231 = tpu.matmul %228, %230, %cst_205 {dimension_numbers = #tpu.dot_dimension_numbers<[1], [0], [0], [1], [0, 0, 1, 1], [], []>} : vector<8x64xbf16>, vector<64x10xbf16>, vector<8x10xf32> -> vector<8x10xf32>
    %232 = arith.addf %221, %231 : vector<8x10xf32>
    %c160 = arith.constant 160 : index
    %c0_206 = arith.constant 0 : index
    %233 = vector.load %arg12[%c160, %c0_206] : memref<176x64xf32, #tpu.memory_space<vmem>>, vector<8x64xf32>
    %c0_207 = arith.constant 0 : index
    %c0_208 = arith.constant 0 : index
    %234 = vector.load %arg6[%c0_207, %c0_208] : memref<1x64xf32, #tpu.memory_space<vmem>>, vector<1x64xf32>
    %235 = vector.broadcast %234 : vector<1x64xf32> to vector<8x64xf32>
    %236 = arith.addf %233, %235 : vector<8x64xf32>
    %cst_209 = arith.constant 0.000000e+00 : f32
    %237 = vector.broadcast %cst_209 : f32 to vector<8x64xf32>
    %238 = arith.maximumf %236, %237 : vector<8x64xf32>
    %239 = arith.truncf %238 : vector<8x64xf32> to vector<8x64xbf16>
    %c14 = arith.constant 14 : index
    %c0_210 = arith.constant 0 : index
    %c0_211 = arith.constant 0 : index
    %240 = vector.load %arg7[%c14, %c0_210, %c0_211] : memref<16x64x10xbf16, #tpu.memory_space<vmem>>, vector<1x64x10xbf16>
    %241 = vector.shape_cast %240 : vector<1x64x10xbf16> to vector<64x10xbf16>
    %cst_212 = arith.constant dense<0.000000e+00> : vector<8x10xf32>
    %242 = tpu.matmul %239, %241, %cst_212 {dimension_numbers = #tpu.dot_dimension_numbers<[1], [0], [0], [1], [0, 0, 1, 1], [], []>} : vector<8x64xbf16>, vector<64x10xbf16>, vector<8x10xf32> -> vector<8x10xf32>
    %243 = arith.addf %232, %242 : vector<8x10xf32>
    %c168 = arith.constant 168 : index
    %c0_213 = arith.constant 0 : index
    %244 = vector.load %arg12[%c168, %c0_213] : memref<176x64xf32, #tpu.memory_space<vmem>>, vector<8x64xf32>
    %c0_214 = arith.constant 0 : index
    %c0_215 = arith.constant 0 : index
    %245 = vector.load %arg6[%c0_214, %c0_215] : memref<1x64xf32, #tpu.memory_space<vmem>>, vector<1x64xf32>
    %246 = vector.broadcast %245 : vector<1x64xf32> to vector<8x64xf32>
    %247 = arith.addf %244, %246 : vector<8x64xf32>
    %cst_216 = arith.constant 0.000000e+00 : f32
    %248 = vector.broadcast %cst_216 : f32 to vector<8x64xf32>
    %249 = arith.maximumf %247, %248 : vector<8x64xf32>
    %250 = arith.truncf %249 : vector<8x64xf32> to vector<8x64xbf16>
    %c15 = arith.constant 15 : index
    %c0_217 = arith.constant 0 : index
    %c0_218 = arith.constant 0 : index
    %251 = vector.load %arg7[%c15, %c0_217, %c0_218] : memref<16x64x10xbf16, #tpu.memory_space<vmem>>, vector<1x64x10xbf16>
    %252 = vector.shape_cast %251 : vector<1x64x10xbf16> to vector<64x10xbf16>
    %cst_219 = arith.constant dense<0.000000e+00> : vector<8x10xf32>
    %253 = tpu.matmul %250, %252, %cst_219 {dimension_numbers = #tpu.dot_dimension_numbers<[1], [0], [0], [1], [0, 0, 1, 1], [], []>} : vector<8x64xbf16>, vector<64x10xbf16>, vector<8x10xf32> -> vector<8x10xf32>
    %254 = arith.addf %243, %253 : vector<8x10xf32>
    %c0_220 = arith.constant 0 : index
    %c0_221 = arith.constant 0 : index
    %255 = vector.load %arg8[%c0_220, %c0_221] : memref<1x10xf32, #tpu.memory_space<vmem>>, vector<1x10xf32>
    %256 = vector.broadcast %255 : vector<1x10xf32> to vector<8x10xf32>
    %257 = arith.addf %254, %256 : vector<8x10xf32>
    %cst_222 = arith.constant dense<0xFF800000> : vector<8xf32>
    %258 = vector.multi_reduction <maximumf>, %257, %cst_222 [1] : vector<8x10xf32> to vector<8xf32>
    %259 = vector.shape_cast %258 : vector<8xf32> to vector<8x1xf32>
    %260 = vector.broadcast %259 : vector<8x1xf32> to vector<8x10xf32>
    %261 = arith.subf %257, %260 : vector<8x10xf32>
    %262 = math.exp %261 : vector<8x10xf32>
    %cst_223 = arith.constant dense<0.000000e+00> : vector<8xf32>
    %263 = vector.multi_reduction <add>, %262, %cst_223 [1] : vector<8x10xf32> to vector<8xf32>
    %264 = vector.shape_cast %263 : vector<8xf32> to vector<8x1xf32>
    %265 = tpu.reciprocal %264 {approx = true} : vector<8x1xf32> -> vector<8x1xf32>
    %266 = vector.broadcast %265 : vector<8x1xf32> to vector<8x10xf32>
    %267 = arith.mulf %262, %266 : vector<8x10xf32>
    %c0_224 = arith.constant 0 : index
    %c0_225 = arith.constant 0 : index
    %268 = vector.load %arg9[%c0_224, %c0_225] : memref<8x10xf32, #tpu.memory_space<vmem>>, vector<8x10xf32>
    tpu.vector_store %arg9[%c0_224, %c0_225], %267 {strides = array<i32>} : memref<8x10xf32, #tpu.memory_space<vmem>>, vector<8x10xf32>,
    return
  }
  func.func @transform_0(%arg0: i32) -> (i32, i32) {
    %c0_i32 = arith.constant 0 : i32
    %c0_i32_0 = arith.constant 0 : i32
    return %arg0, %c0_i32 : i32, i32
  }
  func.func @transform_1(%arg0: i32) -> (i32, i32) {
    %c0_i32 = arith.constant 0 : i32
    %c0_i32_0 = arith.constant 0 : i32
    %c0_i32_1 = arith.constant 0 : i32
    return %c0_i32, %c0_i32_0 : i32, i32
  }
  func.func @transform_2(%arg0: i32) -> (i32, i32) {
    %c0_i32 = arith.constant 0 : i32
    %c0_i32_0 = arith.constant 0 : i32
    %c0_i32_1 = arith.constant 0 : i32
    return %c0_i32, %c0_i32_0 : i32, i32
  }
  func.func @transform_3(%arg0: i32) -> (i32, i32) {
    %c0_i32 = arith.constant 0 : i32
    %c0_i32_0 = arith.constant 0 : i32
    %c0_i32_1 = arith.constant 0 : i32
    return %c0_i32, %c0_i32_0 : i32, i32
  }
  func.func @transform_4(%arg0: i32) -> (i32, i32, i32) {
    %c0_i32 = arith.constant 0 : i32
    %c0_i32_0 = arith.constant 0 : i32
    %c0_i32_1 = arith.constant 0 : i32
    %c0_i32_2 = arith.constant 0 : i32
    return %c0_i32, %c0_i32_0, %c0_i32_1 : i32, i32, i32
  }
  func.func @transform_5(%arg0: i32) -> (i32, i32) {
    %c0_i32 = arith.constant 0 : i32
    %c0_i32_0 = arith.constant 0 : i32
    %c0_i32_1 = arith.constant 0 : i32
    return %c0_i32, %c0_i32_0 : i32, i32
  }
  func.func @transform_6(%arg0: i32) -> (i32, i32, i32) {
    %c0_i32 = arith.constant 0 : i32
    %c0_i32_0 = arith.constant 0 : i32
    %c0_i32_1 = arith.constant 0 : i32
    %c0_i32_2 = arith.constant 0 : i32
    return %c0_i32, %c0_i32_0, %c0_i32_1 : i32, i32, i32
  }
  func.func @transform_7(%arg0: i32) -> (i32, i32) {
    %c0_i32 = arith.constant 0 : i32
    %c0_i32_0 = arith.constant 0 : i32
    %c0_i32_1 = arith.constant 0 : i32
    return %c0_i32, %c0_i32_0 : i32, i32
  }
  func.func @transform_8(%arg0: i32) -> (i32, i32) {
    %c0_i32 = arith.constant 0 : i32
    %c0_i32_0 = arith.constant 0 : i32
    return %arg0, %c0_i32 : i32, i32
  }
}

</mosaic_0001>

<llo_original>
// kernel: netv3_forward.1
$region0: #{netv3_forward.1}
  #allocation0 [shape = 'u32[]', space=smem, size = 0x4, offset = 0x4, fixed_abs, tag = 'smem constant byte address 0x4 - core index']
  #allocation1 [shape = 'u32[144,128]{1,0:T(1,128)}', space=vmem, size = 0x12000, scoped, tag = 'internal scratch']
  #allocation2 [shape = 'bf16[288,256]{1,0:T(16,128)(2,1)}', space=vmem, size = 0x24000, scoped, tag = 'scratch operand']
  #allocation3 [shape = 'bf16[288,32]{1,0:T(16,128)(2,1)}', space=vmem, size = 0x12000, scoped, tag = 'scratch operand']
  #allocation4 [shape = 'f32[176,64]{1,0:T(8,128)}', space=vmem, size = 0x16000, scoped, tag = 'scratch operand']
  %s0 = inlined_call_operand.vmem [shape: bf16[288,100], index: 0, kind: input, shape index: {}]
  %s1 = inlined_call_operand.vmem [shape: bf16[100,256], index: 1, kind: input, shape index: {}]
  %s2 = inlined_call_operand.vmem [shape: bf16[256,32], index: 2, kind: input, shape index: {}]
  %s3 = inlined_call_operand.vmem [shape: f32[1,32], index: 3, kind: input, shape index: {}]
  %s4 = inlined_call_operand.vmem [shape: bf16[9,32,64], index: 4, kind: input, shape index: {}]
  %s5 = inlined_call_operand.vmem [shape: f32[1,64], index: 5, kind: input, shape index: {}]
  %s6 = inlined_call_operand.vmem [shape: bf16[16,64,10], index: 6, kind: input, shape index: {}]
  %s7 = inlined_call_operand.vmem [shape: f32[1,10], index: 7, kind: input, shape index: {}]
  %s8 = inlined_call_operand.vmem [shape: f32[8,10], index: 8, kind: output, shape index: {}]
  %s9 = sld [smem:[#allocation0]]
  $region42: #{netv3_forward.1} parent=0
    _
  %s11 = ssub.s32 1, %s9
  %s12 = scalar_select 0, %s11, %s9
  // Predicated region
  $region2: #{netv3_forward.1} parent=0 // pred_check
    _
  $region3: #{netv3_forward.1} parent=0 // pred_check_branch
    %14 = sbr.rel (0) target = $region5
  $region4: #{netv3_forward.1} parent=0 // pred_region
    _
  $region5: #{netv3_forward.1} parent=0 // pred_fallthru
    _
  // Predicated region
  $region6: #{netv3_forward.1} parent=0 // pred_check
    _
  $region7: #{netv3_forward.1} parent=0 // pred_check_branch
    %16 = sbr.rel (0) target = $region9
  $region8: #{netv3_forward.1} parent=0 // pred_region
    _
  $region9: #{netv3_forward.1} parent=0 // pred_fallthru
    _
  // Predicated region
  $region10: #{netv3_forward.1} parent=0 // pred_check
    _
  $region11: #{netv3_forward.1} parent=0 // pred_check_branch
    %18 = sbr.rel (0) target = $region13
  $region12: #{netv3_forward.1} parent=0 // pred_region
    _
  $region13: #{netv3_forward.1} parent=0 // pred_fallthru
    _
  // Predicated region
  $region14: #{netv3_forward.1} parent=0 // pred_check
    _
  $region15: #{netv3_forward.1} parent=0 // pred_check_branch
    %20 = sbr.rel (0) target = $region17
  $region16: #{netv3_forward.1} parent=0 // pred_region
    _
  $region17: #{netv3_forward.1} parent=0 // pred_fallthru
    _
  // Predicated region
  $region18: #{netv3_forward.1} parent=0 // pred_check
    _
  $region19: #{netv3_forward.1} parent=0 // pred_check_branch
    %22 = sbr.rel (0) target = $region21
  $region20: #{netv3_forward.1} parent=0 // pred_region
    _
  $region21: #{netv3_forward.1} parent=0 // pred_fallthru
    _
  // Predicated region
  $region22: #{netv3_forward.1} parent=0 // pred_check
    _
  $region23: #{netv3_forward.1} parent=0 // pred_check_branch
    %24 = sbr.rel (0) target = $region25
  $region24: #{netv3_forward.1} parent=0 // pred_region
    _
  $region25: #{netv3_forward.1} parent=0 // pred_fallthru
    _
  // Predicated region
  $region26: #{netv3_forward.1} parent=0 // pred_check
    _
  $region27: #{netv3_forward.1} parent=0 // pred_check_branch
    %26 = sbr.rel (0) target = $region29
  $region28: #{netv3_forward.1} parent=0 // pred_region
    _
  $region29: #{netv3_forward.1} parent=0 // pred_fallthru
    _
  // Predicated region
  $region30: #{netv3_forward.1} parent=0 // pred_check
    _
  $region31: #{netv3_forward.1} parent=0 // pred_check_branch
    %28 = sbr.rel (0) target = $region33
  $region32: #{netv3_forward.1} parent=0 // pred_region
    _
  $region33: #{netv3_forward.1} parent=0 // pred_fallthru
    _
  %v30 = vld [vmem:[%s0] sm:$0xf]
  %v31 = vld [vmem:[%s0 + $0x4] sm:$0xf]
  %v32 = vld [vmem:[%s0 + $0x8] sm:$0xf]
  %v33 = vld [vmem:[%s0 + $0xc] sm:$0xf]
  %v34 = vld [vmem:[%s0 + $0x10] sm:$0xf]
  %v35 = vld [vmem:[%s0 + $0x14] sm:$0xf]
  %v36 = vld [vmem:[%s0 + $0x18] sm:$0xf]
  %v37 = vld [vmem:[%s0 + $0x1c] sm:$0xf]
  %v38 = vld [vmem:[%s0 + $0x20] sm:$0xf]
  %v39 = vld [vmem:[%s0 + $0x24] sm:$0xf]
  %v40 = vld [vmem:[%s0 + $0x28] sm:$0xf]
  %v41 = vld [vmem:[%s0 + $0x2c] sm:$0xf]
  %v42 = vld [vmem:[%s0 + $0x30] sm:$0xf]
  %v43 = vld [vmem:[%s0 + $0x34] sm:$0xf]
  %v44 = vld [vmem:[%s0 + $0x38] sm:$0xf]
  %v45 = vld [vmem:[%s0 + $0x3c] sm:$0xf]
  %v46 = vld [vmem:[%s0 + $0x40] sm:$0xf]
  %v47 = vld [vmem:[%s0 + $0x44] sm:$0xf]
  %v48 = vld [vmem:[%s0 + $0x48] sm:$0xf]
  %v49 = vld [vmem:[%s0 + $0x4c] sm:$0xf]
  %v50 = vld [vmem:[%s0 + $0x50] sm:$0xf]
  %v51 = vld [vmem:[%s0 + $0x54] sm:$0xf]
  %v52 = vld [vmem:[%s0 + $0x58] sm:$0xf]
  %v53 = vld [vmem:[%s0 + $0x5c] sm:$0xf]
  %v54 = vld [vmem:[%s0 + $0x60] sm:$0xf]
  %v55 = vld [vmem:[%s0 + $0x64] sm:$0xf]
  %v56 = vld [vmem:[%s0 + $0x68] sm:$0xf]
  %v57 = vld [vmem:[%s0 + $0x6c] sm:$0xf]
  %v58 = vld [vmem:[%s0 + $0x70] sm:$0xf]
  %v59 = vld [vmem:[%s0 + $0x74] sm:$0xf]
  %v60 = vld [vmem:[%s0 + $0x78] sm:$0xf]
  %v61 = vld [vmem:[%s0 + $0x7c] sm:$0xf]
  %v62 = vld [vmem:[%s0 + $0x80] sm:$0xf]
  %v63 = vld [vmem:[%s0 + $0x84] sm:$0xf]
  %v64 = vld [vmem:[%s0 + $0x88] sm:$0xf]
  %v65 = vld [vmem:[%s0 + $0x8c] sm:$0xf]
  %v66 = vld [vmem:[%s1] sm:$0xff]
  %v67 = vld [vmem:[%s1 + $0x8] sm:$0xff]
  %v68 = vld [vmem:[%s1 + $0x10] sm:$0xff]
  %v69 = vld [vmem:[%s1 + $0x18] sm:$0xff]
  %v70 = vld [vmem:[%s1 + $0x20] sm:$0xff]
  %v71 = vld [vmem:[%s1 + $0x28] sm:$0xff]
  %v72 = vld [vmem:[%s1 + $0x30] sm:$0xff]
  %v73 = vld [vmem:[%s1 + $0x38] sm:$0xff]
  %v74 = vld [vmem:[%s1 + $0x40] sm:$0xff]
  %v75 = vld [vmem:[%s1 + $0x48] sm:$0xff]
  %v76 = vld [vmem:[%s1 + $0x50] sm:$0xff]
  %v77 = vld [vmem:[%s1 + $0x58] sm:$0xff]
  %v78 = vld [vmem:[%s1 + $0x60] sm:$0x33]
  %v115 = vunpack.c.l.b16 %v30
  %v116 = vunpack.c.l.b16 %v31
  %v117 = vunpack.c.l.b16 %v32
  %v118 = vunpack.c.l.b16 %v33
  %v119 = vunpack.c.l.b16 %v34
  %v120 = vunpack.c.l.b16 %v35
  %v121 = vunpack.c.l.b16 %v36
  %v122 = vunpack.c.l.b16 %v37
  %v123 = vunpack.c.l.b16 %v38
  %v124 = vunpack.c.l.b16 %v39
  %v125 = vunpack.c.l.b16 %v40
  %v126 = vunpack.c.l.b16 %v41
  %v127 = vunpack.c.l.b16 %v42
  %v128 = vunpack.c.l.b16 %v43
  %v129 = vunpack.c.l.b16 %v44
  %v130 = vunpack.c.l.b16 %v45
  %v131 = vunpack.c.l.b16 %v46
  %v132 = vunpack.c.l.b16 %v47
  %v133 = vunpack.c.l.b16 %v48
  %v134 = vunpack.c.l.b16 %v49
  %v135 = vunpack.c.l.b16 %v50
  %v136 = vunpack.c.l.b16 %v51
  %v137 = vunpack.c.l.b16 %v52
  %v138 = vunpack.c.l.b16 %v53
  %v139 = vunpack.c.l.b16 %v54
  %v140 = vunpack.c.l.b16 %v55
  %v141 = vunpack.c.l.b16 %v56
  %v142 = vunpack.c.l.b16 %v57
  %v143 = vunpack.c.l.b16 %v58
  %v144 = vunpack.c.l.b16 %v59
  %v145 = vunpack.c.l.b16 %v60
  %v146 = vunpack.c.l.b16 %v61
  %v147 = vunpack.c.l.b16 %v62
  %v148 = vunpack.c.l.b16 %v63
  %v149 = vunpack.c.l.b16 %v64
  %v150 = vunpack.c.l.b16 %v65
  %v151 = vpack.c.b16 %v116, %v115
  %v152 = vpack.c.b16 %v118, %v117
  %v153 = vpack.c.b16 %v120, %v119
  %v154 = vpack.c.b16 %v122, %v121
  %v155 = vpack.c.b16 %v124, %v123
  %v156 = vpack.c.b16 %v126, %v125
  %v157 = vpack.c.b16 %v128, %v127
  %v158 = vpack.c.b16 %v130, %v129
  %v159 = vpack.c.b16 %v132, %v131
  %v160 = vpack.c.b16 %v134, %v133
  %v161 = vpack.c.b16 %v136, %v135
  %v162 = vpack.c.b16 %v138, %v137
  %v163 = vpack.c.b16 %v140, %v139
  %v164 = vpack.c.b16 %v142, %v141
  %v165 = vpack.c.b16 %v144, %v143
  %v166 = vpack.c.b16 %v146, %v145
  %v167 = vpack.c.b16 %v148, %v147
  %v168 = vpack.c.b16 %v150, %v149
  %v182 = vunpack.c.l.b16 %v66
  %v183 = vunpack.c.h.b16 %v66
  %v184 = vunpack.c.l.b16 %v67
  %v185 = vunpack.c.h.b16 %v67
  %v186 = vunpack.c.l.b16 %v68
  %v187 = vunpack.c.h.b16 %v68
  %v188 = vunpack.c.l.b16 %v69
  %v189 = vunpack.c.h.b16 %v69
  %v190 = vunpack.c.l.b16 %v70
  %v191 = vunpack.c.h.b16 %v70
  %v192 = vunpack.c.l.b16 %v71
  %v193 = vunpack.c.h.b16 %v71
  %v194 = vunpack.c.l.b16 %v72
  %v195 = vunpack.c.h.b16 %v72
  %v196 = vunpack.c.l.b16 %v73
  %v197 = vunpack.c.h.b16 %v73
  %v198 = vunpack.c.l.b16 %v74
  %v199 = vunpack.c.h.b16 %v74
  %v200 = vunpack.c.l.b16 %v75
  %v201 = vunpack.c.h.b16 %v75
  %v202 = vunpack.c.l.b16 %v76
  %v203 = vunpack.c.h.b16 %v76
  %v204 = vunpack.c.l.b16 %v77
  %v205 = vunpack.c.h.b16 %v77
  %v206 = vunpack.c.l.b16 %v78
  %v207 = vunpack.c.h.b16 %v78
  %v208 = vpack.c.b16 %v184, %v182
  %v209 = vpack.c.b16 %v185, %v183
  %v210 = vpack.c.b16 %v188, %v186
  %v211 = vpack.c.b16 %v189, %v187
  %v212 = vpack.c.b16 %v192, %v190
  %v213 = vpack.c.b16 %v193, %v191
  %v214 = vpack.c.b16 %v196, %v194
  %v215 = vpack.c.b16 %v197, %v195
  %v216 = vpack.c.b16 %v200, %v198
  %v217 = vpack.c.b16 %v201, %v199
  %v218 = vpack.c.b16 %v204, %v202
  %v219 = vpack.c.b16 %v205, %v203
  %v220 = vpack.c.b16 %v206, %v206
  %v221 = vpack.c.b16 %v207, %v207
  %vm234 = vcmask 818176
  %v236 = vsel %vm234, %v151, 0
  %v239 = vsel %vm234, %v152, 0
  %v242 = vsel %vm234, %v153, 0
  %v245 = vsel %vm234, %v154, 0
  %v248 = vsel %vm234, %v155, 0
  %v251 = vsel %vm234, %v156, 0
  %v254 = vsel %vm234, %v157, 0
  %v257 = vsel %vm234, %v158, 0
  %v260 = vsel %vm234, %v159, 0
  %v263 = vsel %vm234, %v160, 0
  %v266 = vsel %vm234, %v161, 0
  %v269 = vsel %vm234, %v162, 0
  %v272 = vsel %vm234, %v163, 0
  %v275 = vsel %vm234, %v164, 0
  %v278 = vsel %vm234, %v165, 0
  %v281 = vsel %vm234, %v166, 0
  %v284 = vsel %vm234, %v167, 0
  %v287 = vsel %vm234, %v168, 0
  %vm289 = vcmask 1041408
  %v291 = vsel %vm289, %v220, 0
  %v294 = vsel %vm289, %v221, 0
  %296 = vmatprep.subr.bf16.mxu0 %v209
  %297 = vmatpush1.bf16.msra.mxu0 %v208
  %298 = vmatprep.subr.bf16.mxu0 %v211
  %299 = vmatpush1.bf16.msra.mxu0 %v210
  %300 = vmatprep.subr.bf16.mxu0 %v213
  %301 = vmatpush1.bf16.msra.mxu0 %v212
  %302 = vmatprep.subr.bf16.mxu0 %v215
  %303 = vmatpush1.bf16.msra.mxu0 %v214
  %304 = vmatprep.subr.bf16.mxu0 %v217
  %305 = vmatpush1.bf16.msra.mxu0 %v216
  %306 = vmatprep.subr.bf16.mxu0 %v219
  %307 = vmatpush1.bf16.msra.mxu0 %v218
  %308 = vmatprep.subr.bf16.mxu0 %v294
  %309 = vmatpush1.bf16.msra.mxu0 %v291
  %310 = vmatprep.subr.bf16.mxu0 0
  %311 = vmatpush1.bf16.msra.mxu0 0
  %312 = vmatprep.subr.bf16.mxu0 0
  %313 = vmatpush1.bf16.msra.mxu0 0
  %314 = vmatprep.subr.bf16.mxu0 0
  %315 = vmatpush1.bf16.msra.mxu0 0
  %316 = vmatprep.subr.bf16.mxu0 0
  %317 = vmatpush1.bf16.msra.mxu0 0
  %318 = vmatprep.subr.bf16.mxu0 0
  %319 = vmatpush1.bf16.msra.mxu0 0
  %320 = vmatprep.subr.bf16.mxu0 0
  %321 = vmatpush1.bf16.msra.mxu0 0
  %322 = vmatprep.subr.bf16.mxu0 0
  %323 = vmatpush1.bf16.msra.mxu0 0
  %324 = vmatprep.subr.bf16.mxu0 0
  %325 = vmatpush1.bf16.msra.mxu0 0
  %326 = vmatprep.subr.bf16.mxu0 0
  %327 = vmatpush1.bf16.msra.mxu0 0
  %328 = vmatprep.mubr.bf16.mxu0 0
  %329 = vmatmul.mubr.bf16.gmra.mrb[0].mxu0 %v236
  %v330 = vpop.f32.mrb[0].mxu0
  %v331 = vadd.f32 0.0, %v330
  %v332 = vpop.f32.mrb[0].mxu0
  %v333 = vadd.f32 0.0, %v332
  %v334 = vpop.f32.mrb[0].mxu0
  %v335 = vadd.f32 0.0, %v334
  %v336 = vpop.f32.mrb[0].mxu0
  %v337 = vadd.f32 0.0, %v336
  %338 = vmatprep.mubr.bf16.mxu0 0
  %339 = vmatmul.mubr.bf16.gmra.mrb[0].mxu0 %v239
  %v340 = vpop.f32.mrb[0].mxu0
  %v341 = vadd.f32 0.0, %v340
  %v342 = vpop.f32.mrb[0].mxu0
  %v343 = vadd.f32 0.0, %v342
  %v344 = vpop.f32.mrb[0].mxu0
  %v345 = vadd.f32 0.0, %v344
  %v346 = vpop.f32.mrb[0].mxu0
  %v347 = vadd.f32 0.0, %v346
  %348 = vmatprep.mubr.bf16.mxu0 0
  %349 = vmatmul.mubr.bf16.gmra.mrb[0].mxu0 %v242
  %v350 = vpop.f32.mrb[0].mxu0
  %v351 = vadd.f32 0.0, %v350
  %v352 = vpop.f32.mrb[0].mxu0
  %v353 = vadd.f32 0.0, %v352
  %v354 = vpop.f32.mrb[0].mxu0
  %v355 = vadd.f32 0.0, %v354
  %v356 = vpop.f32.mrb[0].mxu0
  %v357 = vadd.f32 0.0, %v356
  %358 = vmatprep.mubr.bf16.mxu0 0
  %359 = vmatmul.mubr.bf16.gmra.mrb[0].mxu0 %v245
  %v360 = vpop.f32.mrb[0].mxu0
  %v361 = vadd.f32 0.0, %v360
  %v362 = vpop.f32.mrb[0].mxu0
  %v363 = vadd.f32 0.0, %v362
  %v364 = vpop.f32.mrb[0].mxu0
  %v365 = vadd.f32 0.0, %v364
  %v366 = vpop.f32.mrb[0].mxu0
  %v367 = vadd.f32 0.0, %v366
  %368 = vmatprep.mubr.bf16.mxu0 0
  %369 = vmatmul.mubr.bf16.gmra.mrb[0].mxu0 %v248
  %v370 = vpop.f32.mrb[0].mxu0
  %v371 = vadd.f32 0.0, %v370
  %v372 = vpop.f32.mrb[0].mxu0
  %v373 = vadd.f32 0.0, %v372
  %v374 = vpop.f32.mrb[0].mxu0
  %v375 = vadd.f32 0.0, %v374
  %v376 = vpop.f32.mrb[0].mxu0
  %v377 = vadd.f32 0.0, %v376
  %378 = vmatprep.mubr.bf16.mxu0 0
  %379 = vmatmul.mubr.bf16.gmra.mrb[0].mxu0 %v251
  %v380 = vpop.f32.mrb[0].mxu0
  %v381 = vadd.f32 0.0, %v380
  %v382 = vpop.f32.mrb[0].mxu0
  %v383 = vadd.f32 0.0, %v382
  %v384 = vpop.f32.mrb[0].mxu0
  %v385 = vadd.f32 0.0, %v384
  %v386 = vpop.f32.mrb[0].mxu0
  %v387 = vadd.f32 0.0, %v386
  %388 = vmatprep.mubr.bf16.mxu0 0
  %389 = vmatmul.mubr.bf16.gmra.mrb[0].mxu0 %v254
  %v390 = vpop.f32.mrb[0].mxu0
  %v391 = vadd.f32 0.0, %v390
  %v392 = vpop.f32.mrb[0].mxu0
  %v393 = vadd.f32 0.0, %v392
  %v394 = vpop.f32.mrb[0].mxu0
  %v395 = vadd.f32 0.0, %v394
  %v396 = vpop.f32.mrb[0].mxu0
  %v397 = vadd.f32 0.0, %v396
  %398 = vmatprep.mubr.bf16.mxu0 0
  %399 = vmatmul.mubr.bf16.gmra.mrb[0].mxu0 %v257
  %v400 = vpop.f32.mrb[0].mxu0
  %v401 = vadd.f32 0.0, %v400
  %v402 = vpop.f32.mrb[0].mxu0
  %v403 = vadd.f32 0.0, %v402
  %v404 = vpop.f32.mrb[0].mxu0
  %v405 = vadd.f32 0.0, %v404
  %v406 = vpop.f32.mrb[0].mxu0
  %v407 = vadd.f32 0.0, %v406
  %408 = vmatprep.mubr.bf16.mxu0 0
  %409 = vmatmul.mubr.bf16.gmra.mrb[0].mxu0 %v260
  %v410 = vpop.f32.mrb[0].mxu0
  %v411 = vadd.f32 0.0, %v410
  %v412 = vpop.f32.mrb[0].mxu0
  %v413 = vadd.f32 0.0, %v412
  %v414 = vpop.f32.mrb[0].mxu0
  %v415 = vadd.f32 0.0, %v414
  %v416 = vpop.f32.mrb[0].mxu0
  %v417 = vadd.f32 0.0, %v416
  %418 = vmatprep.mubr.bf16.mxu0 0
  %419 = vmatmul.mubr.bf16.gmra.mrb[0].mxu0 %v263
  %v420 = vpop.f32.mrb[0].mxu0
  %v421 = vadd.f32 0.0, %v420
  %v422 = vpop.f32.mrb[0].mxu0
  %v423 = vadd.f32 0.0, %v422
  %v424 = vpop.f32.mrb[0].mxu0
  %v425 = vadd.f32 0.0, %v424
  %v426 = vpop.f32.mrb[0].mxu0
  %v427 = vadd.f32 0.0, %v426
  %428 = vmatprep.mubr.bf16.mxu0 0
  %429 = vmatmul.mubr.bf16.gmra.mrb[0].mxu0 %v266
  %v430 = vpop.f32.mrb[0].mxu0
  %v431 = vadd.f32 0.0, %v430
  %v432 = vpop.f32.mrb[0].mxu0
  %v433 = vadd.f32 0.0, %v432
  %v434 = vpop.f32.mrb[0].mxu0
  %v435 = vadd.f32 0.0, %v434
  %v436 = vpop.f32.mrb[0].mxu0
  %v437 = vadd.f32 0.0, %v436
  %438 = vmatprep.mubr.bf16.mxu0 0
  %439 = vmatmul.mubr.bf16.gmra.mrb[0].mxu0 %v269
  %v440 = vpop.f32.mrb[0].mxu0
  %v441 = vadd.f32 0.0, %v440
  %v442 = vpop.f32.mrb[0].mxu0
  %v443 = vadd.f32 0.0, %v442
  %v444 = vpop.f32.mrb[0].mxu0
  %v445 = vadd.f32 0.0, %v444
  %v446 = vpop.f32.mrb[0].mxu0
  %v447 = vadd.f32 0.0, %v446
  %448 = vmatprep.mubr.bf16.mxu0 0
  %449 = vmatmul.mubr.bf16.gmra.mrb[0].mxu0 %v272
  %v450 = vpop.f32.mrb[0].mxu0
  %v451 = vadd.f32 0.0, %v450
  %v452 = vpop.f32.mrb[0].mxu0
  %v453 = vadd.f32 0.0, %v452
  %v454 = vpop.f32.mrb[0].mxu0
  %v455 = vadd.f32 0.0, %v454
  %v456 = vpop.f32.mrb[0].mxu0
  %v457 = vadd.f32 0.0, %v456
  %458 = vmatprep.mubr.bf16.mxu0 0
  %459 = vmatmul.mubr.bf16.gmra.mrb[0].mxu0 %v275
  %v460 = vpop.f32.mrb[0].mxu0
  %v461 = vadd.f32 0.0, %v460
  %v462 = vpop.f32.mrb[0].mxu0
  %v463 = vadd.f32 0.0, %v462
  %v464 = vpop.f32.mrb[0].mxu0
  %v465 = vadd.f32 0.0, %v464
  %v466 = vpop.f32.mrb[0].mxu0
  %v467 = vadd.f32 0.0, %v466
  %468 = vmatprep.mubr.bf16.mxu0 0
  %469 = vmatmul.mubr.bf16.gmra.mrb[0].mxu0 %v278
  %v470 = vpop.f32.mrb[0].mxu0
  %v471 = vadd.f32 0.0, %v470
  %v472 = vpop.f32.mrb[0].mxu0
  %v473 = vadd.f32 0.0, %v472
  %v474 = vpop.f32.mrb[0].mxu0
  %v475 = vadd.f32 0.0, %v474
  %v476 = vpop.f32.mrb[0].mxu0
  %v477 = vadd.f32 0.0, %v476
  %478 = vmatprep.mubr.bf16.mxu0 0
  %479 = vmatmul.mubr.bf16.gmra.mrb[0].mxu0 %v281
  %v480 = vpop.f32.mrb[0].mxu0
  %v481 = vadd.f32 0.0, %v480
  %v482 = vpop.f32.mrb[0].mxu0
  %v483 = vadd.f32 0.0, %v482
  %v484 = vpop.f32.mrb[0].mxu0
  %v485 = vadd.f32 0.0, %v484
  %v486 = vpop.f32.mrb[0].mxu0
  %v487 = vadd.f32 0.0, %v486
  %488 = vmatprep.mubr.bf16.mxu0 0
  %489 = vmatmul.mubr.bf16.gmra.mrb[0].mxu0 %v284
  %v490 = vpop.f32.mrb[0].mxu0
  %v491 = vadd.f32 0.0, %v490
  %v492 = vpop.f32.mrb[0].mxu0
  %v493 = vadd.f32 0.0, %v492
  %v494 = vpop.f32.mrb[0].mxu0
  %v495 = vadd.f32 0.0, %v494
  %v496 = vpop.f32.mrb[0].mxu0
  %v497 = vadd.f32 0.0, %v496
  %498 = vmatprep.mubr.bf16.mxu0 0
  %499 = vmatmul.mubr.bf16.gmra.mrb[0].mxu0 %v287
  %v500 = vpop.f32.mrb[0].mxu0
  %v501 = vadd.f32 0.0, %v500
  %v502 = vpop.f32.mrb[0].mxu0
  %v503 = vadd.f32 0.0, %v502
  %v504 = vpop.f32.mrb[0].mxu0
  %v505 = vadd.f32 0.0, %v504
  %v506 = vpop.f32.mrb[0].mxu0
  %v507 = vadd.f32 0.0, %v506
  %508 = vdwg.mxu0
  %v509 = vmax.f32 %v331, 0.0
  %v510 = vmax.f32 %v333, 0.0
  %v511 = vmax.f32 %v335, 0.0
  %v512 = vmax.f32 %v337, 0.0
  %v513 = vmax.f32 %v341, 0.0
  %v514 = vmax.f32 %v343, 0.0
  %v515 = vmax.f32 %v345, 0.0
  %v516 = vmax.f32 %v347, 0.0
  %v517 = vmax.f32 %v351, 0.0
  %v518 = vmax.f32 %v353, 0.0
  %v519 = vmax.f32 %v355, 0.0
  %v520 = vmax.f32 %v357, 0.0
  %v521 = vmax.f32 %v361, 0.0
  %v522 = vmax.f32 %v363, 0.0
  %v523 = vmax.f32 %v365, 0.0
  %v524 = vmax.f32 %v367, 0.0
  %v525 = vmax.f32 %v371, 0.0
  %v526 = vmax.f32 %v373, 0.0
  %v527 = vmax.f32 %v375, 0.0
  %v528 = vmax.f32 %v377, 0.0
  %v529 = vmax.f32 %v381, 0.0
  %v530 = vmax.f32 %v383, 0.0
  %v531 = vmax.f32 %v385, 0.0
  %v532 = vmax.f32 %v387, 0.0
  %v533 = vmax.f32 %v391, 0.0
  %v534 = vmax.f32 %v393, 0.0
  %v535 = vmax.f32 %v395, 0.0
  %v536 = vmax.f32 %v397, 0.0
  %v537 = vmax.f32 %v401, 0.0
  %v538 = vmax.f32 %v403, 0.0
  %v539 = vmax.f32 %v405, 0.0
  %v540 = vmax.f32 %v407, 0.0
  %v541 = vmax.f32 %v411, 0.0
  %v542 = vmax.f32 %v413, 0.0
  %v543 = vmax.f32 %v415, 0.0
  %v544 = vmax.f32 %v417, 0.0
  %v545 = vmax.f32 %v421, 0.0
  %v546 = vmax.f32 %v423, 0.0
  %v547 = vmax.f32 %v425, 0.0
  %v548 = vmax.f32 %v427, 0.0
  %v549 = vmax.f32 %v431, 0.0
  %v550 = vmax.f32 %v433, 0.0
  %v551 = vmax.f32 %v435, 0.0
  %v552 = vmax.f32 %v437, 0.0
  %v553 = vmax.f32 %v441, 0.0
  %v554 = vmax.f32 %v443, 0.0
  %v555 = vmax.f32 %v445, 0.0
  %v556 = vmax.f32 %v447, 0.0
  %v557 = vmax.f32 %v451, 0.0
  %v558 = vmax.f32 %v453, 0.0
  %v559 = vmax.f32 %v455, 0.0
  %v560 = vmax.f32 %v457, 0.0
  %v561 = vmax.f32 %v461, 0.0
  %v562 = vmax.f32 %v463, 0.0
  %v563 = vmax.f32 %v465, 0.0
  %v564 = vmax.f32 %v467, 0.0
  %v565 = vmax.f32 %v471, 0.0
  %v566 = vmax.f32 %v473, 0.0
  %v567 = vmax.f32 %v475, 0.0
  %v568 = vmax.f32 %v477, 0.0
  %v569 = vmax.f32 %v481, 0.0
  %v570 = vmax.f32 %v483, 0.0
  %v571 = vmax.f32 %v485, 0.0
  %v572 = vmax.f32 %v487, 0.0
  %v573 = vmax.f32 %v491, 0.0
  %v574 = vmax.f32 %v493, 0.0
  %v575 = vmax.f32 %v495, 0.0
  %v576 = vmax.f32 %v497, 0.0
  %v577 = vmax.f32 %v501, 0.0
  %v578 = vmax.f32 %v503, 0.0
  %v579 = vmax.f32 %v505, 0.0
  %v580 = vmax.f32 %v507, 0.0
  %v581 = vpack.c.bf16 %v511, %v509
  %v582 = vpack.c.bf16 %v512, %v510
  %v583 = vpack.c.bf16 %v515, %v513
  %v584 = vpack.c.bf16 %v516, %v514
  %v585 = vpack.c.bf16 %v519, %v517
  %v586 = vpack.c.bf16 %v520, %v518
  %v587 = vpack.c.bf16 %v523, %v521
  %v588 = vpack.c.bf16 %v524, %v522
  %v589 = vpack.c.bf16 %v527, %v525
  %v590 = vpack.c.bf16 %v528, %v526
  %v591 = vpack.c.bf16 %v531, %v529
  %v592 = vpack.c.bf16 %v532, %v530
  %v593 = vpack.c.bf16 %v535, %v533
  %v594 = vpack.c.bf16 %v536, %v534
  %v595 = vpack.c.bf16 %v539, %v537
  %v596 = vpack.c.bf16 %v540, %v538
  %v597 = vpack.c.bf16 %v543, %v541
  %v598 = vpack.c.bf16 %v544, %v542
  %v599 = vpack.c.bf16 %v547, %v545
  %v600 = vpack.c.bf16 %v548, %v546
  %v601 = vpack.c.bf16 %v551, %v549
  %v602 = vpack.c.bf16 %v552, %v550
  %v603 = vpack.c.bf16 %v555, %v553
  %v604 = vpack.c.bf16 %v556, %v554
  %v605 = vpack.c.bf16 %v559, %v557
  %v606 = vpack.c.bf16 %v560, %v558
  %v607 = vpack.c.bf16 %v563, %v561
  %v608 = vpack.c.bf16 %v564, %v562
  %v609 = vpack.c.bf16 %v567, %v565
  %v610 = vpack.c.bf16 %v568, %v566
  %v611 = vpack.c.bf16 %v571, %v569
  %v612 = vpack.c.bf16 %v572, %v570
  %v613 = vpack.c.bf16 %v575, %v573
  %v614 = vpack.c.bf16 %v576, %v574
  %v615 = vpack.c.bf16 %v579, %v577
  %v616 = vpack.c.bf16 %v580, %v578
  %617 = vst [vmem:[#allocation2] sm:$0xff] %v581
  %618 = vst [vmem:[#allocation2 + $0x8] sm:$0xff] %v582
  %619 = vst [vmem:[#allocation2 + $0x10] sm:$0xff] %v583
  %620 = vst [vmem:[#allocation2 + $0x18] sm:$0xff] %v584
  %621 = vst [vmem:[#allocation2 + $0x20] sm:$0xff] %v585
  %622 = vst [vmem:[#allocation2 + $0x28] sm:$0xff] %v586
  %623 = vst [vmem:[#allocation2 + $0x30] sm:$0xff] %v587
  %624 = vst [vmem:[#allocation2 + $0x38] sm:$0xff] %v588
  %625 = vst [vmem:[#allocation2 + $0x40] sm:$0xff] %v589
  %626 = vst [vmem:[#allocation2 + $0x48] sm:$0xff] %v590
  %627 = vst [vmem:[#allocation2 + $0x50] sm:$0xff] %v591
  %628 = vst [vmem:[#allocation2 + $0x58] sm:$0xff] %v592
  %629 = vst [vmem:[#allocation2 + $0x60] sm:$0xff] %v593
  %630 = vst [vmem:[#allocation2 + $0x68] sm:$0xff] %v594
  %631 = vst [vmem:[#allocation2 + $0x70] sm:$0xff] %v595
  %632 = vst [vmem:[#allocation2 + $0x78] sm:$0xff] %v596
  %633 = vst [vmem:[#allocation2 + $0x80] sm:$0xff] %v597
  %634 = vst [vmem:[#allocation2 + $0x88] sm:$0xff] %v598
  %635 = vst [vmem:[#allocation2 + $0x90] sm:$0xff] %v599
  %636 = vst [vmem:[#allocation2 + $0x98] sm:$0xff] %v600
  %637 = vst [vmem:[#allocation2 + $0xa0] sm:$0xff] %v601
  %638 = vst [vmem:[#allocation2 + $0xa8] sm:$0xff] %v602
  %639 = vst [vmem:[#allocation2 + $0xb0] sm:$0xff] %v603
  %640 = vst [vmem:[#allocation2 + $0xb8] sm:$0xff] %v604
  %641 = vst [vmem:[#allocation2 + $0xc0] sm:$0xff] %v605
  %642 = vst [vmem:[#allocation2 + $0xc8] sm:$0xff] %v606
  %643 = vst [vmem:[#allocation2 + $0xd0] sm:$0xff] %v607
  %644 = vst [vmem:[#allocation2 + $0xd8] sm:$0xff] %v608
  %645 = vst [vmem:[#allocation2 + $0xe0] sm:$0xff] %v609
  %646 = vst [vmem:[#allocation2 + $0xe8] sm:$0xff] %v610
  %647 = vst [vmem:[#allocation2 + $0xf0] sm:$0xff] %v611
  %648 = vst [vmem:[#allocation2 + $0xf8] sm:$0xff] %v612
  %649 = vst [vmem:[#allocation2 + $0x100] sm:$0xff] %v613
  %650 = vst [vmem:[#allocation2 + $0x108] sm:$0xff] %v614
  %651 = vst [vmem:[#allocation2 + $0x110] sm:$0xff] %v615
  %652 = vst [vmem:[#allocation2 + $0x118] sm:$0xff] %v616
  %v653 = vld [vmem:[#allocation2] sm:$0xff]
  %v654 = vld [vmem:[#allocation2 + $0x8] sm:$0xff]
  %v655 = vld [vmem:[#allocation2 + $0x10] sm:$0xff]
  %v656 = vld [vmem:[#allocation2 + $0x18] sm:$0xff]
  %v657 = vld [vmem:[#allocation2 + $0x20] sm:$0xff]
  %v658 = vld [vmem:[#allocation2 + $0x28] sm:$0xff]
  %v659 = vld [vmem:[#allocation2 + $0x30] sm:$0xff]
  %v660 = vld [vmem:[#allocation2 + $0x38] sm:$0xff]
  %v661 = vld [vmem:[#allocation2 + $0x40] sm:$0xff]
  %v662 = vld [vmem:[#allocation2 + $0x48] sm:$0xff]
  %v663 = vld [vmem:[#allocation2 + $0x50] sm:$0xff]
  %v664 = vld [vmem:[#allocation2 + $0x58] sm:$0xff]
  %v665 = vld [vmem:[#allocation2 + $0x60] sm:$0xff]
  %v666 = vld [vmem:[#allocation2 + $0x68] sm:$0xff]
  %v667 = vld [vmem:[#allocation2 + $0x70] sm:$0xff]
  %v668 = vld [vmem:[#allocation2 + $0x78] sm:$0xff]
  %v669 = vld [vmem:[#allocation2 + $0x80] sm:$0xff]
  %v670 = vld [vmem:[#allocation2 + $0x88] sm:$0xff]
  %v671 = vld [vmem:[#allocation2 + $0x90] sm:$0xff]
  %v672 = vld [vmem:[#allocation2 + $0x98] sm:$0xff]
  %v673 = vld [vmem:[#allocation2 + $0xa0] sm:$0xff]
  %v674 = vld [vmem:[#allocation2 + $0xa8] sm:$0xff]
  %v675 = vld [vmem:[#allocation2 + $0xb0] sm:$0xff]
  %v676 = vld [vmem:[#allocation2 + $0xb8] sm:$0xff]
  %v677 = vld [vmem:[#allocation2 + $0xc0] sm:$0xff]
  %v678 = vld [vmem:[#allocation2 + $0xc8] sm:$0xff]
  %v679 = vld [vmem:[#allocation2 + $0xd0] sm:$0xff]
  %v680 = vld [vmem:[#allocation2 + $0xd8] sm:$0xff]
  %v681 = vld [vmem:[#allocation2 + $0xe0] sm:$0xff]
  %v682 = vld [vmem:[#allocation2 + $0xe8] sm:$0xff]
  %v683 = vld [vmem:[#allocation2 + $0xf0] sm:$0xff]
  %v684 = vld [vmem:[#allocation2 + $0xf8] sm:$0xff]
  %v685 = vld [vmem:[#allocation2 + $0x100] sm:$0xff]
  %v686 = vld [vmem:[#allocation2 + $0x108] sm:$0xff]
  %v687 = vld [vmem:[#allocation2 + $0x110] sm:$0xff]
  %v688 = vld [vmem:[#allocation2 + $0x118] sm:$0xff]
  %v689 = vld [vmem:[%s2] sm:$0xf]
  %v690 = vld [vmem:[%s2 + $0x4] sm:$0xf]
  %v691 = vld [vmem:[%s2 + $0x8] sm:$0xf]
  %v692 = vld [vmem:[%s2 + $0xc] sm:$0xf]
  %v693 = vld [vmem:[%s2 + $0x10] sm:$0xf]
  %v694 = vld [vmem:[%s2 + $0x14] sm:$0xf]
  %v695 = vld [vmem:[%s2 + $0x18] sm:$0xf]
  %v696 = vld [vmem:[%s2 + $0x1c] sm:$0xf]
  %v697 = vld [vmem:[%s2 + $0x20] sm:$0xf]
  %v698 = vld [vmem:[%s2 + $0x24] sm:$0xf]
  %v699 = vld [vmem:[%s2 + $0x28] sm:$0xf]
  %v700 = vld [vmem:[%s2 + $0x2c] sm:$0xf]
  %v701 = vld [vmem:[%s2 + $0x30] sm:$0xf]
  %v702 = vld [vmem:[%s2 + $0x34] sm:$0xf]
  %v703 = vld [vmem:[%s2 + $0x38] sm:$0xf]
  %v704 = vld [vmem:[%s2 + $0x3c] sm:$0xf]
  %v705 = vld [vmem:[%s2 + $0x40] sm:$0xf]
  %v706 = vld [vmem:[%s2 + $0x44] sm:$0xf]
  %v707 = vld [vmem:[%s2 + $0x48] sm:$0xf]
  %v708 = vld [vmem:[%s2 + $0x4c] sm:$0xf]
  %v709 = vld [vmem:[%s2 + $0x50] sm:$0xf]
  %v710 = vld [vmem:[%s2 + $0x54] sm:$0xf]
  %v711 = vld [vmem:[%s2 + $0x58] sm:$0xf]
  %v712 = vld [vmem:[%s2 + $0x5c] sm:$0xf]
  %v713 = vld [vmem:[%s2 + $0x60] sm:$0xf]
  %v714 = vld [vmem:[%s2 + $0x64] sm:$0xf]
  %v715 = vld [vmem:[%s2 + $0x68] sm:$0xf]
  %v716 = vld [vmem:[%s2 + $0x6c] sm:$0xf]
  %v717 = vld [vmem:[%s2 + $0x70] sm:$0xf]
  %v718 = vld [vmem:[%s2 + $0x74] sm:$0xf]
  %v719 = vld [vmem:[%s2 + $0x78] sm:$0xf]
  %v720 = vld [vmem:[%s2 + $0x7c] sm:$0xf]
  %v721 = vld [vmem:[%s3] sm:$0x1]
  %v723 = vlaneseq
  %v724 = vshrl.u32 %v723, 7
  %v725 = vsub.s32 0, %v724
  %v726 = vrot.slane %v721, %v725
  %v760 = vunpack.c.l.b16 %v689
  %v761 = vunpack.c.l.b16 %v690
  %v762 = vunpack.c.l.b16 %v691
  %v763 = vunpack.c.l.b16 %v692
  %v764 = vunpack.c.l.b16 %v693
  %v765 = vunpack.c.l.b16 %v694
  %v766 = vunpack.c.l.b16 %v695
  %v767 = vunpack.c.l.b16 %v696
  %v768 = vunpack.c.l.b16 %v697
  %v769 = vunpack.c.l.b16 %v698
  %v770 = vunpack.c.l.b16 %v699
  %v771 = vunpack.c.l.b16 %v700
  %v772 = vunpack.c.l.b16 %v701
  %v773 = vunpack.c.l.b16 %v702
  %v774 = vunpack.c.l.b16 %v703
  %v775 = vunpack.c.l.b16 %v704
  %v776 = vunpack.c.l.b16 %v705
  %v777 = vunpack.c.l.b16 %v706
  %v778 = vunpack.c.l.b16 %v707
  %v779 = vunpack.c.l.b16 %v708
  %v780 = vunpack.c.l.b16 %v709
  %v781 = vunpack.c.l.b16 %v710
  %v782 = vunpack.c.l.b16 %v711
  %v783 = vunpack.c.l.b16 %v712
  %v784 = vunpack.c.l.b16 %v713
  %v785 = vunpack.c.l.b16 %v714
  %v786 = vunpack.c.l.b16 %v715
  %v787 = vunpack.c.l.b16 %v716
  %v788 = vunpack.c.l.b16 %v717
  %v789 = vunpack.c.l.b16 %v718
  %v790 = vunpack.c.l.b16 %v719
  %v791 = vunpack.c.l.b16 %v720
  %v792 = vpack.c.b16 %v761, %v760
  %v793 = vpack.c.b16 %v763, %v762
  %v794 = vpack.c.b16 %v765, %v764
  %v795 = vpack.c.b16 %v767, %v766
  %v796 = vpack.c.b16 %v769, %v768
  %v797 = vpack.c.b16 %v771, %v770
  %v798 = vpack.c.b16 %v773, %v772
  %v799 = vpack.c.b16 %v775, %v774
  %v800 = vpack.c.b16 %v777, %v776
  %v801 = vpack.c.b16 %v779, %v778
  %v802 = vpack.c.b16 %v781, %v780
  %v803 = vpack.c.b16 %v783, %v782
  %v804 = vpack.c.b16 %v785, %v784
  %v805 = vpack.c.b16 %v787, %v786
  %v806 = vpack.c.b16 %v789, %v788
  %v807 = vpack.c.b16 %v791, %v790
  %824 = vmatprep.subr.bf16.mxu0 0
  %825 = vmatpush1.bf16.msra.mxu0 %v792
  %826 = vmatprep.subr.bf16.mxu0 0
  %827 = vmatpush1.bf16.msra.mxu0 %v793
  %828 = vmatprep.subr.bf16.mxu0 0
  %829 = vmatpush1.bf16.msra.mxu0 %v794
  %830 = vmatprep.subr.bf16.mxu0 0
  %831 = vmatpush1.bf16.msra.mxu0 %v795
  %832 = vmatprep.subr.bf16.mxu0 0
  %833 = vmatpush1.bf16.msra.mxu0 %v796
  %834 = vmatprep.subr.bf16.mxu0 0
  %835 = vmatpush1.bf16.msra.mxu0 %v797
  %836 = vmatprep.subr.bf16.mxu0 0
  %837 = vmatpush1.bf16.msra.mxu0 %v798
  %838 = vmatprep.subr.bf16.mxu0 0
  %839 = vmatpush1.bf16.msra.mxu0 %v799
  %840 = vmatprep.subr.bf16.mxu0 0
  %841 = vmatpush1.bf16.msra.mxu0 %v800
  %842 = vmatprep.subr.bf16.mxu0 0
  %843 = vmatpush1.bf16.msra.mxu0 %v801
  %844 = vmatprep.subr.bf16.mxu0 0
  %845 = vmatpush1.bf16.msra.mxu0 %v802
  %846 = vmatprep.subr.bf16.mxu0 0
  %847 = vmatpush1.bf16.msra.mxu0 %v803
  %848 = vmatprep.subr.bf16.mxu0 0
  %849 = vmatpush1.bf16.msra.mxu0 %v804
  %850 = vmatprep.subr.bf16.mxu0 0
  %851 = vmatpush1.bf16.msra.mxu0 %v805
  %852 = vmatprep.subr.bf16.mxu0 0
  %853 = vmatpush1.bf16.msra.mxu0 %v806
  %854 = vmatprep.subr.bf16.mxu0 0
  %855 = vmatpush1.bf16.msra.mxu0 %v807
  %856 = vmatprep.mubr.bf16.mxu0 %v654
  %857 = vmatmul.mubr.bf16.gmra.mrb[0].mxu0 %v653
  %v858 = vpop.f32.mrb[0].mxu0
  %v859 = vadd.f32 %v726, %v858
  %v860 = vpop.f32.mrb[0].mxu0
  %v861 = vpop.f32.mrb[0].mxu0
  %v862 = vadd.f32 %v726, %v861
  %v863 = vpop.f32.mrb[0].mxu0
  %864 = vmatprep.mubr.bf16.mxu0 %v656
  %865 = vmatmul.mubr.bf16.gmra.mrb[0].mxu0 %v655
  %v866 = vpop.f32.mrb[0].mxu0
  %v867 = vadd.f32 %v726, %v866
  %v868 = vpop.f32.mrb[0].mxu0
  %v869 = vpop.f32.mrb[0].mxu0
  %v870 = vadd.f32 %v726, %v869
  %v871 = vpop.f32.mrb[0].mxu0
  %872 = vmatprep.mubr.bf16.mxu0 %v658
  %873 = vmatmul.mubr.bf16.gmra.mrb[0].mxu0 %v657
  %v874 = vpop.f32.mrb[0].mxu0
  %v875 = vadd.f32 %v726, %v874
  %v876 = vpop.f32.mrb[0].mxu0
  %v877 = vpop.f32.mrb[0].mxu0
  %v878 = vadd.f32 %v726, %v877
  %v879 = vpop.f32.mrb[0].mxu0
  %880 = vmatprep.mubr.bf16.mxu0 %v660
  %881 = vmatmul.mubr.bf16.gmra.mrb[0].mxu0 %v659
  %v882 = vpop.f32.mrb[0].mxu0
  %v883 = vadd.f32 %v726, %v882
  %v884 = vpop.f32.mrb[0].mxu0
  %v885 = vpop.f32.mrb[0].mxu0
  %v886 = vadd.f32 %v726, %v885
  %v887 = vpop.f32.mrb[0].mxu0
  %888 = vmatprep.mubr.bf16.mxu0 %v662
  %889 = vmatmul.mubr.bf16.gmra.mrb[0].mxu0 %v661
  %v890 = vpop.f32.mrb[0].mxu0
  %v891 = vadd.f32 %v726, %v890
  %v892 = vpop.f32.mrb[0].mxu0
  %v893 = vpop.f32.mrb[0].mxu0
  %v894 = vadd.f32 %v726, %v893
  %v895 = vpop.f32.mrb[0].mxu0
  %896 = vmatprep.mubr.bf16.mxu0 %v664
  %897 = vmatmul.mubr.bf16.gmra.mrb[0].mxu0 %v663
  %v898 = vpop.f32.mrb[0].mxu0
  %v899 = vadd.f32 %v726, %v898
  %v900 = vpop.f32.mrb[0].mxu0
  %v901 = vpop.f32.mrb[0].mxu0
  %v902 = vadd.f32 %v726, %v901
  %v903 = vpop.f32.mrb[0].mxu0
  %904 = vmatprep.mubr.bf16.mxu0 %v666
  %905 = vmatmul.mubr.bf16.gmra.mrb[0].mxu0 %v665
  %v906 = vpop.f32.mrb[0].mxu0
  %v907 = vadd.f32 %v726, %v906
  %v908 = vpop.f32.mrb[0].mxu0
  %v909 = vpop.f32.mrb[0].mxu0
  %v910 = vadd.f32 %v726, %v909
  %v911 = vpop.f32.mrb[0].mxu0
  %912 = vmatprep.mubr.bf16.mxu0 %v668
  %913 = vmatmul.mubr.bf16.gmra.mrb[0].mxu0 %v667
  %v914 = vpop.f32.mrb[0].mxu0
  %v915 = vadd.f32 %v726, %v914
  %v916 = vpop.f32.mrb[0].mxu0
  %v917 = vpop.f32.mrb[0].mxu0
  %v918 = vadd.f32 %v726, %v917
  %v919 = vpop.f32.mrb[0].mxu0
  %920 = vmatprep.mubr.bf16.mxu0 %v670
  %921 = vmatmul.mubr.bf16.gmra.mrb[0].mxu0 %v669
  %v922 = vpop.f32.mrb[0].mxu0
  %v923 = vadd.f32 %v726, %v922
  %v924 = vpop.f32.mrb[0].mxu0
  %v925 = vpop.f32.mrb[0].mxu0
  %v926 = vadd.f32 %v726, %v925
  %v927 = vpop.f32.mrb[0].mxu0
  %928 = vmatprep.mubr.bf16.mxu0 %v672
  %929 = vmatmul.mubr.bf16.gmra.mrb[0].mxu0 %v671
  %v930 = vpop.f32.mrb[0].mxu0
  %v931 = vadd.f32 %v726, %v930
  %v932 = vpop.f32.mrb[0].mxu0
  %v933 = vpop.f32.mrb[0].mxu0
  %v934 = vadd.f32 %v726, %v933
  %v935 = vpop.f32.mrb[0].mxu0
  %936 = vmatprep.mubr.bf16.mxu0 %v674
  %937 = vmatmul.mubr.bf16.gmra.mrb[0].mxu0 %v673
  %v938 = vpop.f32.mrb[0].mxu0
  %v939 = vadd.f32 %v726, %v938
  %v940 = vpop.f32.mrb[0].mxu0
  %v941 = vpop.f32.mrb[0].mxu0
  %v942 = vadd.f32 %v726, %v941
  %v943 = vpop.f32.mrb[0].mxu0
  %944 = vmatprep.mubr.bf16.mxu0 %v676
  %945 = vmatmul.mubr.bf16.gmra.mrb[0].mxu0 %v675
  %v946 = vpop.f32.mrb[0].mxu0
  %v947 = vadd.f32 %v726, %v946
  %v948 = vpop.f32.mrb[0].mxu0
  %v949 = vpop.f32.mrb[0].mxu0
  %v950 = vadd.f32 %v726, %v949
  %v951 = vpop.f32.mrb[0].mxu0
  %952 = vmatprep.mubr.bf16.mxu0 %v678
  %953 = vmatmul.mubr.bf16.gmra.mrb[0].mxu0 %v677
  %v954 = vpop.f32.mrb[0].mxu0
  %v955 = vadd.f32 %v726, %v954
  %v956 = vpop.f32.mrb[0].mxu0
  %v957 = vpop.f32.mrb[0].mxu0
  %v958 = vadd.f32 %v726, %v957
  %v959 = vpop.f32.mrb[0].mxu0
  %960 = vmatprep.mubr.bf16.mxu0 %v680
  %961 = vmatmul.mubr.bf16.gmra.mrb[0].mxu0 %v679
  %v962 = vpop.f32.mrb[0].mxu0
  %v963 = vadd.f32 %v726, %v962
  %v964 = vpop.f32.mrb[0].mxu0
  %v965 = vpop.f32.mrb[0].mxu0
  %v966 = vadd.f32 %v726, %v965
  %v967 = vpop.f32.mrb[0].mxu0
  %968 = vmatprep.mubr.bf16.mxu0 %v682
  %969 = vmatmul.mubr.bf16.gmra.mrb[0].mxu0 %v681
  %v970 = vpop.f32.mrb[0].mxu0
  %v971 = vadd.f32 %v726, %v970
  %v972 = vpop.f32.mrb[0].mxu0
  %v973 = vpop.f32.mrb[0].mxu0
  %v974 = vadd.f32 %v726, %v973
  %v975 = vpop.f32.mrb[0].mxu0
  %976 = vmatprep.mubr.bf16.mxu0 %v684
  %977 = vmatmul.mubr.bf16.gmra.mrb[0].mxu0 %v683
  %v978 = vpop.f32.mrb[0].mxu0
  %v979 = vadd.f32 %v726, %v978
  %v980 = vpop.f32.mrb[0].mxu0
  %v981 = vpop.f32.mrb[0].mxu0
  %v982 = vadd.f32 %v726, %v981
  %v983 = vpop.f32.mrb[0].mxu0
  %984 = vmatprep.mubr.bf16.mxu0 %v686
  %985 = vmatmul.mubr.bf16.gmra.mrb[0].mxu0 %v685
  %v986 = vpop.f32.mrb[0].mxu0
  %v987 = vadd.f32 %v726, %v986
  %v988 = vpop.f32.mrb[0].mxu0
  %v989 = vpop.f32.mrb[0].mxu0
  %v990 = vadd.f32 %v726, %v989
  %v991 = vpop.f32.mrb[0].mxu0
  %992 = vmatprep.mubr.bf16.mxu0 %v688
  %993 = vmatmul.mubr.bf16.gmra.mrb[0].mxu0 %v687
  %v994 = vpop.f32.mrb[0].mxu0
  %v995 = vadd.f32 %v726, %v994
  %v996 = vpop.f32.mrb[0].mxu0
  %v997 = vpop.f32.mrb[0].mxu0
  %v998 = vadd.f32 %v726, %v997
  %v999 = vpop.f32.mrb[0].mxu0
  %1000 = vdwg.mxu0
  %v1001 = vmax.f32 %v859, 0.0
  %v1002 = vmax.f32 %v862, 0.0
  %v1003 = vmax.f32 %v867, 0.0
  %v1004 = vmax.f32 %v870, 0.0
  %v1005 = vmax.f32 %v875, 0.0
  %v1006 = vmax.f32 %v878, 0.0
  %v1007 = vmax.f32 %v883, 0.0
  %v1008 = vmax.f32 %v886, 0.0
  %v1009 = vmax.f32 %v891, 0.0
  %v1010 = vmax.f32 %v894, 0.0
  %v1011 = vmax.f32 %v899, 0.0
  %v1012 = vmax.f32 %v902, 0.0
  %v1013 = vmax.f32 %v907, 0.0
  %v1014 = vmax.f32 %v910, 0.0
  %v1015 = vmax.f32 %v915, 0.0
  %v1016 = vmax.f32 %v918, 0.0
  %v1017 = vmax.f32 %v923, 0.0
  %v1018 = vmax.f32 %v926, 0.0
  %v1019 = vmax.f32 %v931, 0.0
  %v1020 = vmax.f32 %v934, 0.0
  %v1021 = vmax.f32 %v939, 0.0
  %v1022 = vmax.f32 %v942, 0.0
  %v1023 = vmax.f32 %v947, 0.0
  %v1024 = vmax.f32 %v950, 0.0
  %v1025 = vmax.f32 %v955, 0.0
  %v1026 = vmax.f32 %v958, 0.0
  %v1027 = vmax.f32 %v963, 0.0
  %v1028 = vmax.f32 %v966, 0.0
  %v1029 = vmax.f32 %v971, 0.0
  %v1030 = vmax.f32 %v974, 0.0
  %v1031 = vmax.f32 %v979, 0.0
  %v1032 = vmax.f32 %v982, 0.0
  %v1033 = vmax.f32 %v987, 0.0
  %v1034 = vmax.f32 %v990, 0.0
  %v1035 = vmax.f32 %v995, 0.0
  %v1036 = vmax.f32 %v998, 0.0
  %v1037 = vpack.c.bf16 %v1002, %v1001
  %v1038 = vpack.c.bf16 %v1004, %v1003
  %v1039 = vpack.c.bf16 %v1006, %v1005
  %v1040 = vpack.c.bf16 %v1008, %v1007
  %v1041 = vpack.c.bf16 %v1010, %v1009
  %v1042 = vpack.c.bf16 %v1012, %v1011
  %v1043 = vpack.c.bf16 %v1014, %v1013
  %v1044 = vpack.c.bf16 %v1016, %v1015
  %v1045 = vpack.c.bf16 %v1018, %v1017
  %v1046 = vpack.c.bf16 %v1020, %v1019
  %v1047 = vpack.c.bf16 %v1022, %v1021
  %v1048 = vpack.c.bf16 %v1024, %v1023
  %v1049 = vpack.c.bf16 %v1026, %v1025
  %v1050 = vpack.c.bf16 %v1028, %v1027
  %v1051 = vpack.c.bf16 %v1030, %v1029
  %v1052 = vpack.c.bf16 %v1032, %v1031
  %v1053 = vpack.c.bf16 %v1034, %v1033
  %v1054 = vpack.c.bf16 %v1036, %v1035
  %vm1055 = vcmask 261120
  %1056 = vst.msk [vmem:[#allocation3] sm:$0xff] %vm1055, %v1037
  %1057 = vst.msk [vmem:[#allocation3 + $0x8] sm:$0xff] %vm1055, %v1038
  %1058 = vst.msk [vmem:[#allocation3 + $0x10] sm:$0xff] %vm1055, %v1039
  %1059 = vst.msk [vmem:[#allocation3 + $0x18] sm:$0xff] %vm1055, %v1040
  %1060 = vst.msk [vmem:[#allocation3 + $0x20] sm:$0xff] %vm1055, %v1041
  %1061 = vst.msk [vmem:[#allocation3 + $0x28] sm:$0xff] %vm1055, %v1042
  %1062 = vst.msk [vmem:[#allocation3 + $0x30] sm:$0xff] %vm1055, %v1043
  %1063 = vst.msk [vmem:[#allocation3 + $0x38] sm:$0xff] %vm1055, %v1044
  %1064 = vst.msk [vmem:[#allocation3 + $0x40] sm:$0xff] %vm1055, %v1045
  %1065 = vst.msk [vmem:[#allocation3 + $0x48] sm:$0xff] %vm1055, %v1046
  %1066 = vst.msk [vmem:[#allocation3 + $0x50] sm:$0xff] %vm1055, %v1047
  %1067 = vst.msk [vmem:[#allocation3 + $0x58] sm:$0xff] %vm1055, %v1048
  %1068 = vst.msk [vmem:[#allocation3 + $0x60] sm:$0xff] %vm1055, %v1049
  %1069 = vst.msk [vmem:[#allocation3 + $0x68] sm:$0xff] %vm1055, %v1050
  %1070 = vst.msk [vmem:[#allocation3 + $0x70] sm:$0xff] %vm1055, %v1051
  %1071 = vst.msk [vmem:[#allocation3 + $0x78] sm:$0xff] %vm1055, %v1052
  %1072 = vst.msk [vmem:[#allocation3 + $0x80] sm:$0xff] %vm1055, %v1053
  %1073 = vst.msk [vmem:[#allocation3 + $0x88] sm:$0xff] %vm1055, %v1054
  %v1074 = vld [vmem:[#allocation3] sm:$0xff]
  %v1075 = vld [vmem:[#allocation3 + $0x8] sm:$0xff]
  %v1076 = vld [vmem:[#allocation3 + $0x10] sm:$0xff]
  %v1077 = vld [vmem:[#allocation3 + $0x18] sm:$0xff]
  %v1078 = vld [vmem:[#allocation3 + $0x20] sm:$0xff]
  %v1079 = vld [vmem:[#allocation3 + $0x28] sm:$0xff]
  %v1080 = vld [vmem:[#allocation3 + $0x30] sm:$0xff]
  %v1081 = vld [vmem:[#allocation3 + $0x38] sm:$0xff]
  %v1082 = vld [vmem:[#allocation3 + $0x40] sm:$0xff]
  %v1083 = vld [vmem:[#allocation3 + $0x48] sm:$0xff]
  %v1084 = vld [vmem:[#allocation3 + $0x50] sm:$0xff]
  %v1085 = vld [vmem:[%s4] sm:$0xf]
  %v1086 = vld [vmem:[%s4 + $0x4] sm:$0xf]
  %v1087 = vld [vmem:[%s4 + $0x8] sm:$0xf]
  %v1088 = vld [vmem:[%s4 + $0xc] sm:$0xf]
  %v1093 = vunpack.c.l.b16 %v1085
  %v1094 = vunpack.c.l.b16 %v1086
  %v1095 = vunpack.c.l.b16 %v1087
  %v1096 = vunpack.c.l.b16 %v1088
  %v1097 = vpack.c.b16 %v1094, %v1093
  %v1098 = vpack.c.b16 %v1096, %v1095
  %v1102 = vsel %vm1055, %v1074, 0
  %v1105 = vsel %vm1055, %v1075, 0
  %v1108 = vsel %vm1055, %v1076, 0
  %v1111 = vsel %vm1055, %v1077, 0
  %v1114 = vsel %vm1055, %v1078, 0
  %v1117 = vsel %vm1055, %v1079, 0
  %v1120 = vsel %vm1055, %v1080, 0
  %v1123 = vsel %vm1055, %v1081, 0
  %v1126 = vsel %vm1055, %v1082, 0
  %v1129 = vsel %vm1055, %v1083, 0
  %v1132 = vsel %vm1055, %v1084, 0
  %1134 = vmatprep.subr.bf16.mxu0 0
  %1135 = vmatpush1.bf16.msra.mxu0 %v1097
  %1136 = vmatprep.subr.bf16.mxu0 0
  %1137 = vmatpush1.bf16.msra.mxu0 %v1098
  %1138 = vmatprep.subr.bf16.mxu0 0
  %1139 = vmatpush1.bf16.msra.mxu0 0
  %1140 = vmatprep.subr.bf16.mxu0 0
  %1141 = vmatpush1.bf16.msra.mxu0 0
  %1142 = vmatprep.subr.bf16.mxu0 0
  %1143 = vmatpush1.bf16.msra.mxu0 0
  %1144 = vmatprep.subr.bf16.mxu0 0
  %1145 = vmatpush1.bf16.msra.mxu0 0
  %1146 = vmatprep.subr.bf16.mxu0 0
  %1147 = vmatpush1.bf16.msra.mxu0 0
  %1148 = vmatprep.subr.bf16.mxu0 0
  %1149 = vmatpush1.bf16.msra.mxu0 0
  %1150 = vmatprep.subr.bf16.mxu0 0
  %1151 = vmatpush1.bf16.msra.mxu0 0
  %1152 = vmatprep.subr.bf16.mxu0 0
  %1153 = vmatpush1.bf16.msra.mxu0 0
  %1154 = vmatprep.subr.bf16.mxu0 0
  %1155 = vmatpush1.bf16.msra.mxu0 0
  %1156 = vmatprep.subr.bf16.mxu0 0
  %1157 = vmatpush1.bf16.msra.mxu0 0
  %1158 = vmatprep.subr.bf16.mxu0 0
  %1159 = vmatpush1.bf16.msra.mxu0 0
  %1160 = vmatprep.subr.bf16.mxu0 0
  %1161 = vmatpush1.bf16.msra.mxu0 0
  %1162 = vmatprep.subr.bf16.mxu0 0
  %1163 = vmatpush1.bf16.msra.mxu0 0
  %1164 = vmatprep.subr.bf16.mxu0 0
  %1165 = vmatpush1.bf16.msra.mxu0 0
  %1166 = vmatprep.mubr.bf16.mxu0 0
  %1167 = vmatmul.mubr.bf16.gmra.mrb[0].mxu0 %v1102
  %v1168 = vpop.f32.mrb[0].mxu0
  %v1169 = vadd.f32 0.0, %v1168
  %v1170 = vpop.f32.mrb[0].mxu0
  %v1171 = vpop.f32.mrb[0].mxu0
  %v1172 = vadd.f32 0.0, %v1171
  %v1173 = vpop.f32.mrb[0].mxu0
  %1174 = vmatprep.mubr.bf16.mxu0 0
  %1175 = vmatmul.mubr.bf16.gmra.mrb[0].mxu0 %v1105
  %v1176 = vpop.f32.mrb[0].mxu0
  %v1177 = vadd.f32 0.0, %v1176
  %v1178 = vpop.f32.mrb[0].mxu0
  %v1179 = vpop.f32.mrb[0].mxu0
  %v1180 = vadd.f32 0.0, %v1179
  %v1181 = vpop.f32.mrb[0].mxu0
  %1182 = vmatprep.mubr.bf16.mxu0 0
  %1183 = vmatmul.mubr.bf16.gmra.mrb[0].mxu0 %v1108
  %v1184 = vpop.f32.mrb[0].mxu0
  %v1185 = vadd.f32 0.0, %v1184
  %v1186 = vpop.f32.mrb[0].mxu0
  %v1187 = vpop.f32.mrb[0].mxu0
  %v1188 = vadd.f32 0.0, %v1187
  %v1189 = vpop.f32.mrb[0].mxu0
  %1190 = vmatprep.mubr.bf16.mxu0 0
  %1191 = vmatmul.mubr.bf16.gmra.mrb[0].mxu0 %v1111
  %v1192 = vpop.f32.mrb[0].mxu0
  %v1193 = vadd.f32 0.0, %v1192
  %v1194 = vpop.f32.mrb[0].mxu0
  %v1195 = vpop.f32.mrb[0].mxu0
  %v1196 = vadd.f32 0.0, %v1195
  %v1197 = vpop.f32.mrb[0].mxu0
  %1198 = vmatprep.mubr.bf16.mxu0 0
  %1199 = vmatmul.mubr.bf16.gmra.mrb[0].mxu0 %v1114
  %v1200 = vpop.f32.mrb[0].mxu0
  %v1201 = vadd.f32 0.0, %v1200
  %v1202 = vpop.f32.mrb[0].mxu0
  %v1203 = vpop.f32.mrb[0].mxu0
  %v1204 = vadd.f32 0.0, %v1203
  %v1205 = vpop.f32.mrb[0].mxu0
  %1206 = vmatprep.mubr.bf16.mxu0 0
  %1207 = vmatmul.mubr.bf16.gmra.mrb[0].mxu0 %v1117
  %v1208 = vpop.f32.mrb[0].mxu0
  %v1209 = vadd.f32 0.0, %v1208
  %v1210 = vpop.f32.mrb[0].mxu0
  %v1211 = vpop.f32.mrb[0].mxu0
  %v1212 = vadd.f32 0.0, %v1211
  %v1213 = vpop.f32.mrb[0].mxu0
  %1214 = vmatprep.mubr.bf16.mxu0 0
  %1215 = vmatmul.mubr.bf16.gmra.mrb[0].mxu0 %v1120
  %v1216 = vpop.f32.mrb[0].mxu0
  %v1217 = vadd.f32 0.0, %v1216
  %v1218 = vpop.f32.mrb[0].mxu0
  %v1219 = vpop.f32.mrb[0].mxu0
  %v1220 = vadd.f32 0.0, %v1219
  %v1221 = vpop.f32.mrb[0].mxu0
  %1222 = vmatprep.mubr.bf16.mxu0 0
  %1223 = vmatmul.mubr.bf16.gmra.mrb[0].mxu0 %v1123
  %v1224 = vpop.f32.mrb[0].mxu0
  %v1225 = vadd.f32 0.0, %v1224
  %v1226 = vpop.f32.mrb[0].mxu0
  %v1227 = vpop.f32.mrb[0].mxu0
  %v1228 = vadd.f32 0.0, %v1227
  %v1229 = vpop.f32.mrb[0].mxu0
  %1230 = vmatprep.mubr.bf16.mxu0 0
  %1231 = vmatmul.mubr.bf16.gmra.mrb[0].mxu0 %v1126
  %v1232 = vpop.f32.mrb[0].mxu0
  %v1233 = vadd.f32 0.0, %v1232
  %v1234 = vpop.f32.mrb[0].mxu0
  %v1235 = vpop.f32.mrb[0].mxu0
  %v1236 = vadd.f32 0.0, %v1235
  %v1237 = vpop.f32.mrb[0].mxu0
  %1238 = vmatprep.mubr.bf16.mxu0 0
  %1239 = vmatmul.mubr.bf16.gmra.mrb[0].mxu0 %v1129
  %v1240 = vpop.f32.mrb[0].mxu0
  %v1241 = vadd.f32 0.0, %v1240
  %v1242 = vpop.f32.mrb[0].mxu0
  %v1243 = vpop.f32.mrb[0].mxu0
  %v1244 = vadd.f32 0.0, %v1243
  %v1245 = vpop.f32.mrb[0].mxu0
  %1246 = vmatprep.mubr.bf16.mxu0 0
  %1247 = vmatmul.mubr.bf16.gmra.mrb[0].mxu0 %v1132
  %v1248 = vpop.f32.mrb[0].mxu0
  %v1249 = vadd.f32 0.0, %v1248
  %v1250 = vpop.f32.mrb[0].mxu0
  %v1251 = vpop.f32.mrb[0].mxu0
  %v1252 = vadd.f32 0.0, %v1251
  %v1253 = vpop.f32.mrb[0].mxu0
  %1254 = vdwg.mxu0
  %vm1255 = vcmask 523264
  %1256 = vst.msk [vmem:[#allocation4] sm:$0xff] %vm1255, %v1169
  %1257 = vst.msk [vmem:[#allocation4 + $0x8] sm:$0xff] %vm1255, %v1172
  %1258 = vst.msk [vmem:[#allocation4 + $0x10] sm:$0xff] %vm1255, %v1177
  %1259 = vst.msk [vmem:[#allocation4 + $0x18] sm:$0xff] %vm1255, %v1180
  %1260 = vst.msk [vmem:[#allocation4 + $0x20] sm:$0xff] %vm1255, %v1185
  %1261 = vst.msk [vmem:[#allocation4 + $0x28] sm:$0xff] %vm1255, %v1188
  %1262 = vst.msk [vmem:[#allocation4 + $0x30] sm:$0xff] %vm1255, %v1193
  %1263 = vst.msk [vmem:[#allocation4 + $0x38] sm:$0xff] %vm1255, %v1196
  %1264 = vst.msk [vmem:[#allocation4 + $0x40] sm:$0xff] %vm1255, %v1201
  %1265 = vst.msk [vmem:[#allocation4 + $0x48] sm:$0xff] %vm1255, %v1204
  %1266 = vst.msk [vmem:[#allocation4 + $0x50] sm:$0xff] %vm1255, %v1209
  %1267 = vst.msk [vmem:[#allocation4 + $0x58] sm:$0xff] %vm1255, %v1212
  %1268 = vst.msk [vmem:[#allocation4 + $0x60] sm:$0xff] %vm1255, %v1217
  %1269 = vst.msk [vmem:[#allocation4 + $0x68] sm:$0xff] %vm1255, %v1220
  %1270 = vst.msk [vmem:[#allocation4 + $0x70] sm:$0xff] %vm1255, %v1225
  %1271 = vst.msk [vmem:[#allocation4 + $0x78] sm:$0xff] %vm1255, %v1228
  %1272 = vst.msk [vmem:[#allocation4 + $0x80] sm:$0xff] %vm1255, %v1233
  %1273 = vst.msk [vmem:[#allocation4 + $0x88] sm:$0xff] %vm1255, %v1236
  %1274 = vst.msk [vmem:[#allocation4 + $0x90] sm:$0xff] %vm1255, %v1241
  %1275 = vst.msk [vmem:[#allocation4 + $0x98] sm:$0xff] %vm1255, %v1244
  %1276 = vst.msk [vmem:[#allocation4 + $0xa0] sm:$0xff] %vm1255, %v1249
  %1277 = vst.msk [vmem:[#allocation4 + $0xa8] sm:$0xff] %vm1255, %v1252
  %v1278 = vld [vmem:[#allocation4] sm:$0xff]
  %v1279 = vld [vmem:[#allocation4 + $0x8] sm:$0xff]
  %v1280 = vld [vmem:[#allocation4 + $0x10] sm:$0xff]
  %v1281 = vld [vmem:[#allocation4 + $0x18] sm:$0xff]
  %v1282 = vld [vmem:[#allocation4 + $0x20] sm:$0xff]
  %v1283 = vld [vmem:[#allocation4 + $0x28] sm:$0xff]
  %v1284 = vld [vmem:[#allocation4 + $0x30] sm:$0xff]
  %v1285 = vld [vmem:[#allocation4 + $0x38] sm:$0xff]
  %v1286 = vld [vmem:[#allocation4 + $0x40] sm:$0xff]
  %v1287 = vld [vmem:[#allocation4 + $0x48] sm:$0xff]
  %v1288 = vld [vmem:[#allocation4 + $0x50] sm:$0xff]
  %v1289 = vld [vmem:[#allocation4 + $0x58] sm:$0xff]
  %v1290 = vld [vmem:[#allocation4 + $0x60] sm:$0xff]
  %v1291 = vld [vmem:[#allocation4 + $0x68] sm:$0xff]
  %v1292 = vld [vmem:[#allocation4 + $0x70] sm:$0xff]
  %v1293 = vld [vmem:[#allocation4 + $0x78] sm:$0xff]
  %v1294 = vld [vmem:[#allocation4 + $0x80] sm:$0xff]
  %v1295 = vld [vmem:[#allocation4 + $0x88] sm:$0xff]
  %v1296 = vld [vmem:[#allocation4 + $0x90] sm:$0xff]
  %v1297 = vld [vmem:[#allocation4 + $0x98] sm:$0xff]
  %v1298 = vld [vmem:[#allocation4 + $0xa0] sm:$0xff]
  %v1299 = vld [vmem:[#allocation4 + $0xa8] sm:$0xff]
  %v1300 = vld [vmem:[#allocation3] sm:$0xf0]
  %v1301 = vld [vmem:[#allocation3 + $0x8] sm:$0xff]
  %v1302 = vld [vmem:[#allocation3 + $0x10] sm:$0xff]
  %v1303 = vld [vmem:[#allocation3 + $0x18] sm:$0xff]
  %v1304 = vld [vmem:[#allocation3 + $0x20] sm:$0xff]
  %v1305 = vld [vmem:[#allocation3 + $0x28] sm:$0xff]
  %v1306 = vld [vmem:[#allocation3 + $0x30] sm:$0xff]
  %v1307 = vld [vmem:[#allocation3 + $0x38] sm:$0xff]
  %v1308 = vld [vmem:[#allocation3 + $0x40] sm:$0xff]
  %v1309 = vld [vmem:[#allocation3 + $0x48] sm:$0xff]
  %v1310 = vld [vmem:[#allocation3 + $0x50] sm:$0xff]
  %v1311 = vld [vmem:[#allocation3 + $0x58] sm:$0xf]
  %s1312 = scalar_lea.vmem %s4, 16
  %v1313 = vld [vmem:[%s1312] sm:$0xf]
  %v1314 = vld [vmem:[%s1312 + $0x4] sm:$0xf]
  %v1315 = vld [vmem:[%s1312 + $0x8] sm:$0xf]
  %v1316 = vld [vmem:[%s1312 + $0xc] sm:$0xf]
  %vm1329 = vcmask 1043456
  %v1330 = vrot.slane %v1300, 4
  %v1331 = vrot.slane %v1301, 4
  %v1332 = vsel %vm1329, %v1330, %v1331
  %v1333 = vrot.slane %v1302, 4
  %v1334 = vsel %vm1329, %v1331, %v1333
  %v1335 = vrot.slane %v1303, 4
  %v1336 = vsel %vm1329, %v1333, %v1335
  %v1337 = vrot.slane %v1304, 4
  %v1338 = vsel %vm1329, %v1335, %v1337
  %v1339 = vrot.slane %v1305, 4
  %v1340 = vsel %vm1329, %v1337, %v1339
  %v1341 = vrot.slane %v1306, 4
  %v1342 = vsel %vm1329, %v1339, %v1341
  %v1343 = vrot.slane %v1307, 4
  %v1344 = vsel %vm1329, %v1341, %v1343
  %v1345 = vrot.slane %v1308, 4
  %v1346 = vsel %vm1329, %v1343, %v1345
  %v1347 = vrot.slane %v1309, 4
  %v1348 = vsel %vm1329, %v1345, %v1347
  %v1349 = vrot.slane %v1310, 4
  %v1350 = vsel %vm1329, %v1347, %v1349
  %v1351 = vrot.slane %v1311, 4
  %v1352 = vsel %vm1329, %v1349, %v1351
  %v1357 = vunpack.c.l.b16 %v1313
  %v1358 = vunpack.c.l.b16 %v1314
  %v1359 = vunpack.c.l.b16 %v1315
  %v1360 = vunpack.c.l.b16 %v1316
  %v1361 = vpack.c.b16 %v1358, %v1357
  %v1362 = vpack.c.b16 %v1360, %v1359
  %v1366 = vsel %vm1055, %v1332, 0
  %v1369 = vsel %vm1055, %v1334, 0
  %v1372 = vsel %vm1055, %v1336, 0
  %v1375 = vsel %vm1055, %v1338, 0
  %v1378 = vsel %vm1055, %v1340, 0
  %v1381 = vsel %vm1055, %v1342, 0
  %v1384 = vsel %vm1055, %v1344, 0
  %v1387 = vsel %vm1055, %v1346, 0
  %v1390 = vsel %vm1055, %v1348, 0
  %v1393 = vsel %vm1055, %v1350, 0
  %v1396 = vsel %vm1055, %v1352, 0
  %1398 = vmatprep.subr.bf16.mxu0 0
  %1399 = vmatpush1.bf16.msra.mxu0 %v1361
  %1400 = vmatprep.subr.bf16.mxu0 0
  %1401 = vmatpush1.bf16.msra.mxu0 %v1362
  %1402 = vmatprep.subr.bf16.mxu0 0
  %1403 = vmatpush1.bf16.msra.mxu0 0
  %1404 = vmatprep.subr.bf16.mxu0 0
  %1405 = vmatpush1.bf16.msra.mxu0 0
  %1406 = vmatprep.subr.bf16.mxu0 0
  %1407 = vmatpush1.bf16.msra.mxu0 0
  %1408 = vmatprep.subr.bf16.mxu0 0
  %1409 = vmatpush1.bf16.msra.mxu0 0
  %1410 = vmatprep.subr.bf16.mxu0 0
  %1411 = vmatpush1.bf16.msra.mxu0 0
  %1412 = vmatprep.subr.bf16.mxu0 0
  %1413 = vmatpush1.bf16.msra.mxu0 0
  %1414 = vmatprep.subr.bf16.mxu0 0
  %1415 = vmatpush1.bf16.msra.mxu0 0
  %1416 = vmatprep.subr.bf16.mxu0 0
  %1417 = vmatpush1.bf16.msra.mxu0 0
  %1418 = vmatprep.subr.bf16.mxu0 0
  %1419 = vmatpush1.bf16.msra.mxu0 0
  %1420 = vmatprep.subr.bf16.mxu0 0
  %1421 = vmatpush1.bf16.msra.mxu0 0
  %1422 = vmatprep.subr.bf16.mxu0 0
  %1423 = vmatpush1.bf16.msra.mxu0 0
  %1424 = vmatprep.subr.bf16.mxu0 0
  %1425 = vmatpush1.bf16.msra.mxu0 0
  %1426 = vmatprep.subr.bf16.mxu0 0
  %1427 = vmatpush1.bf16.msra.mxu0 0
  %1428 = vmatprep.subr.bf16.mxu0 0
  %1429 = vmatpush1.bf16.msra.mxu0 0
  %1430 = vmatprep.mubr.bf16.mxu0 0
  %1431 = vmatmul.mubr.bf16.gmra.mrb[0].mxu0 %v1366
  %v1432 = vpop.f32.mrb[0].mxu0
  %v1433 = vadd.f32 0.0, %v1432
  %v1434 = vpop.f32.mrb[0].mxu0
  %v1435 = vpop.f32.mrb[0].mxu0
  %v1436 = vadd.f32 0.0, %v1435
  %v1437 = vpop.f32.mrb[0].mxu0
  %1438 = vmatprep.mubr.bf16.mxu0 0
  %1439 = vmatmul.mubr.bf16.gmra.mrb[0].mxu0 %v1369
  %v1440 = vpop.f32.mrb[0].mxu0
  %v1441 = vadd.f32 0.0, %v1440
  %v1442 = vpop.f32.mrb[0].mxu0
  %v1443 = vpop.f32.mrb[0].mxu0
  %v1444 = vadd.f32 0.0, %v1443
  %v1445 = vpop.f32.mrb[0].mxu0
  %1446 = vmatprep.mubr.bf16.mxu0 0
  %1447 = vmatmul.mubr.bf16.gmra.mrb[0].mxu0 %v1372
  %v1448 = vpop.f32.mrb[0].mxu0
  %v1449 = vadd.f32 0.0, %v1448
  %v1450 = vpop.f32.mrb[0].mxu0
  %v1451 = vpop.f32.mrb[0].mxu0
  %v1452 = vadd.f32 0.0, %v1451
  %v1453 = vpop.f32.mrb[0].mxu0
  %1454 = vmatprep.mubr.bf16.mxu0 0
  %1455 = vmatmul.mubr.bf16.gmra.mrb[0].mxu0 %v1375
  %v1456 = vpop.f32.mrb[0].mxu0
  %v1457 = vadd.f32 0.0, %v1456
  %v1458 = vpop.f32.mrb[0].mxu0
  %v1459 = vpop.f32.mrb[0].mxu0
  %v1460 = vadd.f32 0.0, %v1459
  %v1461 = vpop.f32.mrb[0].mxu0
  %1462 = vmatprep.mubr.bf16.mxu0 0
  %1463 = vmatmul.mubr.bf16.gmra.mrb[0].mxu0 %v1378
  %v1464 = vpop.f32.mrb[0].mxu0
  %v1465 = vadd.f32 0.0, %v1464
  %v1466 = vpop.f32.mrb[0].mxu0
  %v1467 = vpop.f32.mrb[0].mxu0
  %v1468 = vadd.f32 0.0, %v1467
  %v1469 = vpop.f32.mrb[0].mxu0
  %1470 = vmatprep.mubr.bf16.mxu0 0
  %1471 = vmatmul.mubr.bf16.gmra.mrb[0].mxu0 %v1381
  %v1472 = vpop.f32.mrb[0].mxu0
  %v1473 = vadd.f32 0.0, %v1472
  %v1474 = vpop.f32.mrb[0].mxu0
  %v1475 = vpop.f32.mrb[0].mxu0
  %v1476 = vadd.f32 0.0, %v1475
  %v1477 = vpop.f32.mrb[0].mxu0
  %1478 = vmatprep.mubr.bf16.mxu0 0
  %1479 = vmatmul.mubr.bf16.gmra.mrb[0].mxu0 %v1384
  %v1480 = vpop.f32.mrb[0].mxu0
  %v1481 = vadd.f32 0.0, %v1480
  %v1482 = vpop.f32.mrb[0].mxu0
  %v1483 = vpop.f32.mrb[0].mxu0
  %v1484 = vadd.f32 0.0, %v1483
  %v1485 = vpop.f32.mrb[0].mxu0
  %1486 = vmatprep.mubr.bf16.mxu0 0
  %1487 = vmatmul.mubr.bf16.gmra.mrb[0].mxu0 %v1387
  %v1488 = vpop.f32.mrb[0].mxu0
  %v1489 = vadd.f32 0.0, %v1488
  %v1490 = vpop.f32.mrb[0].mxu0
  %v1491 = vpop.f32.mrb[0].mxu0
  %v1492 = vadd.f32 0.0, %v1491
  %v1493 = vpop.f32.mrb[0].mxu0
  %1494 = vmatprep.mubr.bf16.mxu0 0
  %1495 = vmatmul.mubr.bf16.gmra.mrb[0].mxu0 %v1390
  %v1496 = vpop.f32.mrb[0].mxu0
  %v1497 = vadd.f32 0.0, %v1496
  %v1498 = vpop.f32.mrb[0].mxu0
  %v1499 = vpop.f32.mrb[0].mxu0
  %v1500 = vadd.f32 0.0, %v1499
  %v1501 = vpop.f32.mrb[0].mxu0
  %1502 = vmatprep.mubr.bf16.mxu0 0
  %1503 = vmatmul.mubr.bf16.gmra.mrb[0].mxu0 %v1393
  %v1504 = vpop.f32.mrb[0].mxu0
  %v1505 = vadd.f32 0.0, %v1504
  %v1506 = vpop.f32.mrb[0].mxu0
  %v1507 = vpop.f32.mrb[0].mxu0
  %v1508 = vadd.f32 0.0, %v1507
  %v1509 = vpop.f32.mrb[0].mxu0
  %1510 = vmatprep.mubr.bf16.mxu0 0
  %1511 = vmatmul.mubr.bf16.gmra.mrb[0].mxu0 %v1396
  %v1512 = vpop.f32.mrb[0].mxu0
  %v1513 = vadd.f32 0.0, %v1512
  %v1514 = vpop.f32.mrb[0].mxu0
  %v1515 = vpop.f32.mrb[0].mxu0
  %v1516 = vadd.f32 0.0, %v1515
  %v1517 = vpop.f32.mrb[0].mxu0
  %1518 = vdwg.mxu0
  %v1519 = vadd.f32 %v1278, %v1433
  %v1520 = vadd.f32 %v1279, %v1436
  %v1521 = vadd.f32 %v1280, %v1441
  %v1522 = vadd.f32 %v1281, %v1444
  %v1523 = vadd.f32 %v1282, %v1449
  %v1524 = vadd.f32 %v1283, %v1452
  %v1525 = vadd.f32 %v1284, %v1457
  %v1526 = vadd.f32 %v1285, %v1460
  %v1527 = vadd.f32 %v1286, %v1465
  %v1528 = vadd.f32 %v1287, %v1468
  %v1529 = vadd.f32 %v1288, %v1473
  %v1530 = vadd.f32 %v1289, %v1476
  %v1531 = vadd.f32 %v1290, %v1481
  %v1532 = vadd.f32 %v1291, %v1484
  %v1533 = vadd.f32 %v1292, %v1489
  %v1534 = vadd.f32 %v1293, %v1492
  %v1535 = vadd.f32 %v1294, %v1497
  %v1536 = vadd.f32 %v1295, %v1500
  %v1537 = vadd.f32 %v1296, %v1505
  %v1538 = vadd.f32 %v1297, %v1508
  %v1539 = vadd.f32 %v1298, %v1513
  %v1540 = vadd.f32 %v1299, %v1516
  %1541 = vst.msk [vmem:[#allocation4] sm:$0xff] %vm1255, %v1519
  %1542 = vst.msk [vmem:[#allocation4 + $0x8] sm:$0xff] %vm1255, %v1520
  %1543 = vst.msk [vmem:[#allocation4 + $0x10] sm:$0xff] %vm1255, %v1521
  %1544 = vst.msk [vmem:[#allocation4 + $0x18] sm:$0xff] %vm1255, %v1522
  %1545 = vst.msk [vmem:[#allocation4 + $0x20] sm:$0xff] %vm1255, %v1523
  %1546 = vst.msk [vmem:[#allocation4 + $0x28] sm:$0xff] %vm1255, %v1524
  %1547 = vst.msk [vmem:[#allocation4 + $0x30] sm:$0xff] %vm1255, %v1525
  %1548 = vst.msk [vmem:[#allocation4 + $0x38] sm:$0xff] %vm1255, %v1526
  %1549 = vst.msk [vmem:[#allocation4 + $0x40] sm:$0xff] %vm1255, %v1527
  %1550 = vst.msk [vmem:[#allocation4 + $0x48] sm:$0xff] %vm1255, %v1528
  %1551 = vst.msk [vmem:[#allocation4 + $0x50] sm:$0xff] %vm1255, %v1529
  %1552 = vst.msk [vmem:[#allocation4 + $0x58] sm:$0xff] %vm1255, %v1530
  %1553 = vst.msk [vmem:[#allocation4 + $0x60] sm:$0xff] %vm1255, %v1531
  %1554 = vst.msk [vmem:[#allocation4 + $0x68] sm:$0xff] %vm1255, %v1532
  %1555 = vst.msk [vmem:[#allocation4 + $0x70] sm:$0xff] %vm1255, %v1533
  %1556 = vst.msk [vmem:[#allocation4 + $0x78] sm:$0xff] %vm1255, %v1534
  %1557 = vst.msk [vmem:[#allocation4 + $0x80] sm:$0xff] %vm1255, %v1535
  %1558 = vst.msk [vmem:[#allocation4 + $0x88] sm:$0xff] %vm1255, %v1536
  %1559 = vst.msk [vmem:[#allocation4 + $0x90] sm:$0xff] %vm1255, %v1537
  %1560 = vst.msk [vmem:[#allocation4 + $0x98] sm:$0xff] %vm1255, %v1538
  %1561 = vst.msk [vmem:[#allocation4 + $0xa0] sm:$0xff] %vm1255, %v1539
  %1562 = vst.msk [vmem:[#allocation4 + $0xa8] sm:$0xff] %vm1255, %v1540
  %v1563 = vld [vmem:[#allocation4] sm:$0xff]
  %v1564 = vld [vmem:[#allocation4 + $0x8] sm:$0xff]
  %v1565 = vld [vmem:[#allocation4 + $0x10] sm:$0xff]
  %v1566 = vld [vmem:[#allocation4 + $0x18] sm:$0xff]
  %v1567 = vld [vmem:[#allocation4 + $0x20] sm:$0xff]
  %v1568 = vld [vmem:[#allocation4 + $0x28] sm:$0xff]
  %v1569 = vld [vmem:[#allocation4 + $0x30] sm:$0xff]
  %v1570 = vld [vmem:[#allocation4 + $0x38] sm:$0xff]
  %v1571 = vld [vmem:[#allocation4 + $0x40] sm:$0xff]
  %v1572 = vld [vmem:[#allocation4 + $0x48] sm:$0xff]
  %v1573 = vld [vmem:[#allocation4 + $0x50] sm:$0xff]
  %v1574 = vld [vmem:[#allocation4 + $0x58] sm:$0xff]
  %v1575 = vld [vmem:[#allocation4 + $0x60] sm:$0xff]
  %v1576 = vld [vmem:[#allocation4 + $0x68] sm:$0xff]
  %v1577 = vld [vmem:[#allocation4 + $0x70] sm:$0xff]
  %v1578 = vld [vmem:[#allocation4 + $0x78] sm:$0xff]
  %v1579 = vld [vmem:[#allocation4 + $0x80] sm:$0xff]
  %v1580 = vld [vmem:[#allocation4 + $0x88] sm:$0xff]
  %v1581 = vld [vmem:[#allocation4 + $0x90] sm:$0xff]
  %v1582 = vld [vmem:[#allocation4 + $0x98] sm:$0xff]
  %v1583 = vld [vmem:[#allocation4 + $0xa0] sm:$0xff]
  %v1584 = vld [vmem:[#allocation4 + $0xa8] sm:$0xff]
  %v1585 = vld [vmem:[#allocation3 + $0x8] sm:$0xff]
  %v1586 = vld [vmem:[#allocation3 + $0x10] sm:$0xff]
  %v1587 = vld [vmem:[#allocation3 + $0x18] sm:$0xff]
  %v1588 = vld [vmem:[#allocation3 + $0x20] sm:$0xff]
  %v1589 = vld [vmem:[#allocation3 + $0x28] sm:$0xff]
  %v1590 = vld [vmem:[#allocation3 + $0x30] sm:$0xff]
  %v1591 = vld [vmem:[#allocation3 + $0x38] sm:$0xff]
  %v1592 = vld [vmem:[#allocation3 + $0x40] sm:$0xff]
  %v1593 = vld [vmem:[#allocation3 + $0x48] sm:$0xff]
  %v1594 = vld [vmem:[#allocation3 + $0x50] sm:$0xff]
  %v1595 = vld [vmem:[#allocation3 + $0x58] sm:$0xff]
  %s1596 = scalar_lea.vmem %s4, 32
  %v1597 = vld [vmem:[%s1596] sm:$0xf]
  %v1598 = vld [vmem:[%s1596 + $0x4] sm:$0xf]
  %v1599 = vld [vmem:[%s1596 + $0x8] sm:$0xf]
  %v1600 = vld [vmem:[%s1596 + $0xc] sm:$0xf]
  %v1605 = vunpack.c.l.b16 %v1597
  %v1606 = vunpack.c.l.b16 %v1598
  %v1607 = vunpack.c.l.b16 %v1599
  %v1608 = vunpack.c.l.b16 %v1600
  %v1609 = vpack.c.b16 %v1606, %v1605
  %v1610 = vpack.c.b16 %v1608, %v1607
  %v1614 = vsel %vm1055, %v1585, 0
  %v1617 = vsel %vm1055, %v1586, 0
  %v1620 = vsel %vm1055, %v1587, 0
  %v1623 = vsel %vm1055, %v1588, 0
  %v1626 = vsel %vm1055, %v1589, 0
  %v1629 = vsel %vm1055, %v1590, 0
  %v1632 = vsel %vm1055, %v1591, 0
  %v1635 = vsel %vm1055, %v1592, 0
  %v1638 = vsel %vm1055, %v1593, 0
  %v1641 = vsel %vm1055, %v1594, 0
  %v1644 = vsel %vm1055, %v1595, 0
  %1646 = vmatprep.subr.bf16.mxu0 0
  %1647 = vmatpush1.bf16.msra.mxu0 %v1609
  %1648 = vmatprep.subr.bf16.mxu0 0
  %1649 = vmatpush1.bf16.msra.mxu0 %v1610
  %1650 = vmatprep.subr.bf16.mxu0 0
  %1651 = vmatpush1.bf16.msra.mxu0 0
  %1652 = vmatprep.subr.bf16.mxu0 0
  %1653 = vmatpush1.bf16.msra.mxu0 0
  %1654 = vmatprep.subr.bf16.mxu0 0
  %1655 = vmatpush1.bf16.msra.mxu0 0
  %1656 = vmatprep.subr.bf16.mxu0 0
  %1657 = vmatpush1.bf16.msra.mxu0 0
  %1658 = vmatprep.subr.bf16.mxu0 0
  %1659 = vmatpush1.bf16.msra.mxu0 0
  %1660 = vmatprep.subr.bf16.mxu0 0
  %1661 = vmatpush1.bf16.msra.mxu0 0
  %1662 = vmatprep.subr.bf16.mxu0 0
  %1663 = vmatpush1.bf16.msra.mxu0 0
  %1664 = vmatprep.subr.bf16.mxu0 0
  %1665 = vmatpush1.bf16.msra.mxu0 0
  %1666 = vmatprep.subr.bf16.mxu0 0
  %1667 = vmatpush1.bf16.msra.mxu0 0
  %1668 = vmatprep.subr.bf16.mxu0 0
  %1669 = vmatpush1.bf16.msra.mxu0 0
  %1670 = vmatprep.subr.bf16.mxu0 0
  %1671 = vmatpush1.bf16.msra.mxu0 0
  %1672 = vmatprep.subr.bf16.mxu0 0
  %1673 = vmatpush1.bf16.msra.mxu0 0
  %1674 = vmatprep.subr.bf16.mxu0 0
  %1675 = vmatpush1.bf16.msra.mxu0 0
  %1676 = vmatprep.subr.bf16.mxu0 0
  %1677 = vmatpush1.bf16.msra.mxu0 0
  %1678 = vmatprep.mubr.bf16.mxu0 0
  %1679 = vmatmul.mubr.bf16.gmra.mrb[0].mxu0 %v1614
  %v1680 = vpop.f32.mrb[0].mxu0
  %v1681 = vadd.f32 0.0, %v1680
  %v1682 = vpop.f32.mrb[0].mxu0
  %v1683 = vpop.f32.mrb[0].mxu0
  %v1684 = vadd.f32 0.0, %v1683
  %v1685 = vpop.f32.mrb[0].mxu0
  %1686 = vmatprep.mubr.bf16.mxu0 0
  %1687 = vmatmul.mubr.bf16.gmra.mrb[0].mxu0 %v1617
  %v1688 = vpop.f32.mrb[0].mxu0
  %v1689 = vadd.f32 0.0, %v1688
  %v1690 = vpop.f32.mrb[0].mxu0
  %v1691 = vpop.f32.mrb[0].mxu0
  %v1692 = vadd.f32 0.0, %v1691
  %v1693 = vpop.f32.mrb[0].mxu0
  %1694 = vmatprep.mubr.bf16.mxu0 0
  %1695 = vmatmul.mubr.bf16.gmra.mrb[0].mxu0 %v1620
  %v1696 = vpop.f32.mrb[0].mxu0
  %v1697 = vadd.f32 0.0, %v1696
  %v1698 = vpop.f32.mrb[0].mxu0
  %v1699 = vpop.f32.mrb[0].mxu0
  %v1700 = vadd.f32 0.0, %v1699
  %v1701 = vpop.f32.mrb[0].mxu0
  %1702 = vmatprep.mubr.bf16.mxu0 0
  %1703 = vmatmul.mubr.bf16.gmra.mrb[0].mxu0 %v1623
  %v1704 = vpop.f32.mrb[0].mxu0
  %v1705 = vadd.f32 0.0, %v1704
  %v1706 = vpop.f32.mrb[0].mxu0
  %v1707 = vpop.f32.mrb[0].mxu0
  %v1708 = vadd.f32 0.0, %v1707
  %v1709 = vpop.f32.mrb[0].mxu0
  %1710 = vmatprep.mubr.bf16.mxu0 0
  %1711 = vmatmul.mubr.bf16.gmra.mrb[0].mxu0 %v1626
  %v1712 = vpop.f32.mrb[0].mxu0
  %v1713 = vadd.f32 0.0, %v1712
  %v1714 = vpop.f32.mrb[0].mxu0
  %v1715 = vpop.f32.mrb[0].mxu0
  %v1716 = vadd.f32 0.0, %v1715
  %v1717 = vpop.f32.mrb[0].mxu0
  %1718 = vmatprep.mubr.bf16.mxu0 0
  %1719 = vmatmul.mubr.bf16.gmra.mrb[0].mxu0 %v1629
  %v1720 = vpop.f32.mrb[0].mxu0
  %v1721 = vadd.f32 0.0, %v1720
  %v1722 = vpop.f32.mrb[0].mxu0
  %v1723 = vpop.f32.mrb[0].mxu0
  %v1724 = vadd.f32 0.0, %v1723
  %v1725 = vpop.f32.mrb[0].mxu0
  %1726 = vmatprep.mubr.bf16.mxu0 0
  %1727 = vmatmul.mubr.bf16.gmra.mrb[0].mxu0 %v1632
  %v1728 = vpop.f32.mrb[0].mxu0
  %v1729 = vadd.f32 0.0, %v1728
  %v1730 = vpop.f32.mrb[0].mxu0
  %v1731 = vpop.f32.mrb[0].mxu0
  %v1732 = vadd.f32 0.0, %v1731
  %v1733 = vpop.f32.mrb[0].mxu0
  %1734 = vmatprep.mubr.bf16.mxu0 0
  %1735 = vmatmul.mubr.bf16.gmra.mrb[0].mxu0 %v1635
  %v1736 = vpop.f32.mrb[0].mxu0
  %v1737 = vadd.f32 0.0, %v1736
  %v1738 = vpop.f32.mrb[0].mxu0
  %v1739 = vpop.f32.mrb[0].mxu0
  %v1740 = vadd.f32 0.0, %v1739
  %v1741 = vpop.f32.mrb[0].mxu0
  %1742 = vmatprep.mubr.bf16.mxu0 0
  %1743 = vmatmul.mubr.bf16.gmra.mrb[0].mxu0 %v1638
  %v1744 = vpop.f32.mrb[0].mxu0
  %v1745 = vadd.f32 0.0, %v1744
  %v1746 = vpop.f32.mrb[0].mxu0
  %v1747 = vpop.f32.mrb[0].mxu0
  %v1748 = vadd.f32 0.0, %v1747
  %v1749 = vpop.f32.mrb[0].mxu0
  %1750 = vmatprep.mubr.bf16.mxu0 0
  %1751 = vmatmul.mubr.bf16.gmra.mrb[0].mxu0 %v1641
  %v1752 = vpop.f32.mrb[0].mxu0
  %v1753 = vadd.f32 0.0, %v1752
  %v1754 = vpop.f32.mrb[0].mxu0
  %v1755 = vpop.f32.mrb[0].mxu0
  %v1756 = vadd.f32 0.0, %v1755
  %v1757 = vpop.f32.mrb[0].mxu0
  %1758 = vmatprep.mubr.bf16.mxu0 0
  %1759 = vmatmul.mubr.bf16.gmra.mrb[0].mxu0 %v1644
  %v1760 = vpop.f32.mrb[0].mxu0
  %v1761 = vadd.f32 0.0, %v1760
  %v1762 = vpop.f32.mrb[0].mxu0
  %v1763 = vpop.f32.mrb[0].mxu0
  %v1764 = vadd.f32 0.0, %v1763
  %v1765 = vpop.f32.mrb[0].mxu0
  %1766 = vdwg.mxu0
  %v1767 = vadd.f32 %v1563, %v1681
  %v1768 = vadd.f32 %v1564, %v1684
  %v1769 = vadd.f32 %v1565, %v1689
  %v1770 = vadd.f32 %v1566, %v1692
  %v1771 = vadd.f32 %v1567, %v1697
  %v1772 = vadd.f32 %v1568, %v1700
  %v1773 = vadd.f32 %v1569, %v1705
  %v1774 = vadd.f32 %v1570, %v1708
  %v1775 = vadd.f32 %v1571, %v1713
  %v1776 = vadd.f32 %v1572, %v1716
  %v1777 = vadd.f32 %v1573, %v1721
  %v1778 = vadd.f32 %v1574, %v1724
  %v1779 = vadd.f32 %v1575, %v1729
  %v1780 = vadd.f32 %v1576, %v1732
  %v1781 = vadd.f32 %v1577, %v1737
  %v1782 = vadd.f32 %v1578, %v1740
  %v1783 = vadd.f32 %v1579, %v1745
  %v1784 = vadd.f32 %v1580, %v1748
  %v1785 = vadd.f32 %v1581, %v1753
  %v1786 = vadd.f32 %v1582, %v1756
  %v1787 = vadd.f32 %v1583, %v1761
  %v1788 = vadd.f32 %v1584, %v1764
  %1789 = vst.msk [vmem:[#allocation4] sm:$0xff] %vm1255, %v1767
  %1790 = vst.msk [vmem:[#allocation4 + $0x8] sm:$0xff] %vm1255, %v1768
  %1791 = vst.msk [vmem:[#allocation4 + $0x10] sm:$0xff] %vm1255, %v1769
  %1792 = vst.msk [vmem:[#allocation4 + $0x18] sm:$0xff] %vm1255, %v1770
  %1793 = vst.msk [vmem:[#allocation4 + $0x20] sm:$0xff] %vm1255, %v1771
  %1794 = vst.msk [vmem:[#allocation4 + $0x28] sm:$0xff] %vm1255, %v1772
  %1795 = vst.msk [vmem:[#allocation4 + $0x30] sm:$0xff] %vm1255, %v1773
  %1796 = vst.msk [vmem:[#allocation4 + $0x38] sm:$0xff] %vm1255, %v1774
  %1797 = vst.msk [vmem:[#allocation4 + $0x40] sm:$0xff] %vm1255, %v1775
  %1798 = vst.msk [vmem:[#allocation4 + $0x48] sm:$0xff] %vm1255, %v1776
  %1799 = vst.msk [vmem:[#allocation4 + $0x50] sm:$0xff] %vm1255, %v1777
  %1800 = vst.msk [vmem:[#allocation4 + $0x58] sm:$0xff] %vm1255, %v1778
  %1801 = vst.msk [vmem:[#allocation4 + $0x60] sm:$0xff] %vm1255, %v1779
  %1802 = vst.msk [vmem:[#allocation4 + $0x68] sm:$0xff] %vm1255, %v1780
  %1803 = vst.msk [vmem:[#allocation4 + $0x70] sm:$0xff] %vm1255, %v1781
  %1804 = vst.msk [vmem:[#allocation4 + $0x78] sm:$0xff] %vm1255, %v1782
  %1805 = vst.msk [vmem:[#allocation4 + $0x80] sm:$0xff] %vm1255, %v1783
  %1806 = vst.msk [vmem:[#allocation4 + $0x88] sm:$0xff] %vm1255, %v1784
  %1807 = vst.msk [vmem:[#allocation4 + $0x90] sm:$0xff] %vm1255, %v1785
  %1808 = vst.msk [vmem:[#allocation4 + $0x98] sm:$0xff] %vm1255, %v1786
  %1809 = vst.msk [vmem:[#allocation4 + $0xa0] sm:$0xff] %vm1255, %v1787
  %1810 = vst.msk [vmem:[#allocation4 + $0xa8] sm:$0xff] %vm1255, %v1788
  %v1811 = vld [vmem:[#allocation4] sm:$0xff]
  %v1812 = vld [vmem:[#allocation4 + $0x8] sm:$0xff]
  %v1813 = vld [vmem:[#allocation4 + $0x10] sm:$0xff]
  %v1814 = vld [vmem:[#allocation4 + $0x18] sm:$0xff]
  %v1815 = vld [vmem:[#allocation4 + $0x20] sm:$0xff]
  %v1816 = vld [vmem:[#allocation4 + $0x28] sm:$0xff]
  %v1817 = vld [vmem:[#allocation4 + $0x30] sm:$0xff]
  %v1818 = vld [vmem:[#allocation4 + $0x38] sm:$0xff]
  %v1819 = vld [vmem:[#allocation4 + $0x40] sm:$0xff]
  %v1820 = vld [vmem:[#allocation4 + $0x48] sm:$0xff]
  %v1821 = vld [vmem:[#allocation4 + $0x50] sm:$0xff]
  %v1822 = vld [vmem:[#allocation4 + $0x58] sm:$0xff]
  %v1823 = vld [vmem:[#allocation4 + $0x60] sm:$0xff]
  %v1824 = vld [vmem:[#allocation4 + $0x68] sm:$0xff]
  %v1825 = vld [vmem:[#allocation4 + $0x70] sm:$0xff]
  %v1826 = vld [vmem:[#allocation4 + $0x78] sm:$0xff]
  %v1827 = vld [vmem:[#allocation4 + $0x80] sm:$0xff]
  %v1828 = vld [vmem:[#allocation4 + $0x88] sm:$0xff]
  %v1829 = vld [vmem:[#allocation4 + $0x90] sm:$0xff]
  %v1830 = vld [vmem:[#allocation4 + $0x98] sm:$0xff]
  %v1831 = vld [vmem:[#allocation4 + $0xa0] sm:$0xff]
  %v1832 = vld [vmem:[#allocation4 + $0xa8] sm:$0xff]
  %v1833 = vld [vmem:[#allocation3 + $0x18] sm:$0xff]
  %v1834 = vld [vmem:[#allocation3 + $0x20] sm:$0xff]
  %v1835 = vld [vmem:[#allocation3 + $0x28] sm:$0xff]
  %v1836 = vld [vmem:[#allocation3 + $0x30] sm:$0xff]
  %v1837 = vld [vmem:[#allocation3 + $0x38] sm:$0xff]
  %v1838 = vld [vmem:[#allocation3 + $0x40] sm:$0xff]
  %v1839 = vld [vmem:[#allocation3 + $0x48] sm:$0xff]
  %v1840 = vld [vmem:[#allocation3 + $0x50] sm:$0xff]
  %v1841 = vld [vmem:[#allocation3 + $0x58] sm:$0xff]
  %v1842 = vld [vmem:[#allocation3 + $0x60] sm:$0xff]
  %v1843 = vld [vmem:[#allocation3 + $0x68] sm:$0xff]
  %s1844 = scalar_lea.vmem %s4, 48
  %v1845 = vld [vmem:[%s1844] sm:$0xf]
  %v1846 = vld [vmem:[%s1844 + $0x4] sm:$0xf]
  %v1847 = vld [vmem:[%s1844 + $0x8] sm:$0xf]
  %v1848 = vld [vmem:[%s1844 + $0xc] sm:$0xf]
  %v1853 = vunpack.c.l.b16 %v1845
  %v1854 = vunpack.c.l.b16 %v1846
  %v1855 = vunpack.c.l.b16 %v1847
  %v1856 = vunpack.c.l.b16 %v1848
  %v1857 = vpack.c.b16 %v1854, %v1853
  %v1858 = vpack.c.b16 %v1856, %v1855
  %v1862 = vsel %vm1055, %v1833, 0
  %v1865 = vsel %vm1055, %v1834, 0
  %v1868 = vsel %vm1055, %v1835, 0
  %v1871 = vsel %vm1055, %v1836, 0
  %v1874 = vsel %vm1055, %v1837, 0
  %v1877 = vsel %vm1055, %v1838, 0
  %v1880 = vsel %vm1055, %v1839, 0
  %v1883 = vsel %vm1055, %v1840, 0
  %v1886 = vsel %vm1055, %v1841, 0
  %v1889 = vsel %vm1055, %v1842, 0
  %v1892 = vsel %vm1055, %v1843, 0
  %1894 = vmatprep.subr.bf16.mxu0 0
  %1895 = vmatpush1.bf16.msra.mxu0 %v1857
  %1896 = vmatprep.subr.bf16.mxu0 0
  %1897 = vmatpush1.bf16.msra.mxu0 %v1858
  %1898 = vmatprep.subr.bf16.mxu0 0
  %1899 = vmatpush1.bf16.msra.mxu0 0
  %1900 = vmatprep.subr.bf16.mxu0 0
  %1901 = vmatpush1.bf16.msra.mxu0 0
  %1902 = vmatprep.subr.bf16.mxu0 0
  %1903 = vmatpush1.bf16.msra.mxu0 0
  %1904 = vmatprep.subr.bf16.mxu0 0
  %1905 = vmatpush1.bf16.msra.mxu0 0
  %1906 = vmatprep.subr.bf16.mxu0 0
  %1907 = vmatpush1.bf16.msra.mxu0 0
  %1908 = vmatprep.subr.bf16.mxu0 0
  %1909 = vmatpush1.bf16.msra.mxu0 0
  %1910 = vmatprep.subr.bf16.mxu0 0
  %1911 = vmatpush1.bf16.msra.mxu0 0
  %1912 = vmatprep.subr.bf16.mxu0 0
  %1913 = vmatpush1.bf16.msra.mxu0 0
  %1914 = vmatprep.subr.bf16.mxu0 0
  %1915 = vmatpush1.bf16.msra.mxu0 0
  %1916 = vmatprep.subr.bf16.mxu0 0
  %1917 = vmatpush1.bf16.msra.mxu0 0
  %1918 = vmatprep.subr.bf16.mxu0 0
  %1919 = vmatpush1.bf16.msra.mxu0 0
  %1920 = vmatprep.subr.bf16.mxu0 0
  %1921 = vmatpush1.bf16.msra.mxu0 0
  %1922 = vmatprep.subr.bf16.mxu0 0
  %1923 = vmatpush1.bf16.msra.mxu0 0
  %1924 = vmatprep.subr.bf16.mxu0 0
  %1925 = vmatpush1.bf16.msra.mxu0 0
  %1926 = vmatprep.mubr.bf16.mxu0 0
  %1927 = vmatmul.mubr.bf16.gmra.mrb[0].mxu0 %v1862
  %v1928 = vpop.f32.mrb[0].mxu0
  %v1929 = vadd.f32 0.0, %v1928
  %v1930 = vpop.f32.mrb[0].mxu0
  %v1931 = vpop.f32.mrb[0].mxu0
  %v1932 = vadd.f32 0.0, %v1931
  %v1933 = vpop.f32.mrb[0].mxu0
  %1934 = vmatprep.mubr.bf16.mxu0 0
  %1935 = vmatmul.mubr.bf16.gmra.mrb[0].mxu0 %v1865
  %v1936 = vpop.f32.mrb[0].mxu0
  %v1937 = vadd.f32 0.0, %v1936
  %v1938 = vpop.f32.mrb[0].mxu0
  %v1939 = vpop.f32.mrb[0].mxu0
  %v1940 = vadd.f32 0.0, %v1939
  %v1941 = vpop.f32.mrb[0].mxu0
  %1942 = vmatprep.mubr.bf16.mxu0 0
  %1943 = vmatmul.mubr.bf16.gmra.mrb[0].mxu0 %v1868
  %v1944 = vpop.f32.mrb[0].mxu0
  %v1945 = vadd.f32 0.0, %v1944
  %v1946 = vpop.f32.mrb[0].mxu0
  %v1947 = vpop.f32.mrb[0].mxu0
  %v1948 = vadd.f32 0.0, %v1947
  %v1949 = vpop.f32.mrb[0].mxu0
  %1950 = vmatprep.mubr.bf16.mxu0 0
  %1951 = vmatmul.mubr.bf16.gmra.mrb[0].mxu0 %v1871
  %v1952 = vpop.f32.mrb[0].mxu0
  %v1953 = vadd.f32 0.0, %v1952
  %v1954 = vpop.f32.mrb[0].mxu0
  %v1955 = vpop.f32.mrb[0].mxu0
  %v1956 = vadd.f32 0.0, %v1955
  %v1957 = vpop.f32.mrb[0].mxu0
  %1958 = vmatprep.mubr.bf16.mxu0 0
  %1959 = vmatmul.mubr.bf16.gmra.mrb[0].mxu0 %v1874
  %v1960 = vpop.f32.mrb[0].mxu0
  %v1961 = vadd.f32 0.0, %v1960
  %v1962 = vpop.f32.mrb[0].mxu0
  %v1963 = vpop.f32.mrb[0].mxu0
  %v1964 = vadd.f32 0.0, %v1963
  %v1965 = vpop.f32.mrb[0].mxu0
  %1966 = vmatprep.mubr.bf16.mxu0 0
  %1967 = vmatmul.mubr.bf16.gmra.mrb[0].mxu0 %v1877
  %v1968 = vpop.f32.mrb[0].mxu0
  %v1969 = vadd.f32 0.0, %v1968
  %v1970 = vpop.f32.mrb[0].mxu0
  %v1971 = vpop.f32.mrb[0].mxu0
  %v1972 = vadd.f32 0.0, %v1971
  %v1973 = vpop.f32.mrb[0].mxu0
  %1974 = vmatprep.mubr.bf16.mxu0 0
  %1975 = vmatmul.mubr.bf16.gmra.mrb[0].mxu0 %v1880
  %v1976 = vpop.f32.mrb[0].mxu0
  %v1977 = vadd.f32 0.0, %v1976
  %v1978 = vpop.f32.mrb[0].mxu0
  %v1979 = vpop.f32.mrb[0].mxu0
  %v1980 = vadd.f32 0.0, %v1979
  %v1981 = vpop.f32.mrb[0].mxu0
  %1982 = vmatprep.mubr.bf16.mxu0 0
  %1983 = vmatmul.mubr.bf16.gmra.mrb[0].mxu0 %v1883
  %v1984 = vpop.f32.mrb[0].mxu0
  %v1985 = vadd.f32 0.0, %v1984
  %v1986 = vpop.f32.mrb[0].mxu0
  %v1987 = vpop.f32.mrb[0].mxu0
  %v1988 = vadd.f32 0.0, %v1987
  %v1989 = vpop.f32.mrb[0].mxu0
  %1990 = vmatprep.mubr.bf16.mxu0 0
  %1991 = vmatmul.mubr.bf16.gmra.mrb[0].mxu0 %v1886
  %v1992 = vpop.f32.mrb[0].mxu0
  %v1993 = vadd.f32 0.0, %v1992
  %v1994 = vpop.f32.mrb[0].mxu0
  %v1995 = vpop.f32.mrb[0].mxu0
  %v1996 = vadd.f32 0.0, %v1995
  %v1997 = vpop.f32.mrb[0].mxu0
  %1998 = vmatprep.mubr.bf16.mxu0 0
  %1999 = vmatmul.mubr.bf16.gmra.mrb[0].mxu0 %v1889
  %v2000 = vpop.f32.mrb[0].mxu0
  %v2001 = vadd.f32 0.0, %v2000
  %v2002 = vpop.f32.mrb[0].mxu0
  %v2003 = vpop.f32.mrb[0].mxu0
  %v2004 = vadd.f32 0.0, %v2003
  %v2005 = vpop.f32.mrb[0].mxu0
  %2006 = vmatprep.mubr.bf16.mxu0 0
  %2007 = vmatmul.mubr.bf16.gmra.mrb[0].mxu0 %v1892
  %v2008 = vpop.f32.mrb[0].mxu0
  %v2009 = vadd.f32 0.0, %v2008
  %v2010 = vpop.f32.mrb[0].mxu0
  %v2011 = vpop.f32.mrb[0].mxu0
  %v2012 = vadd.f32 0.0, %v2011
  %v2013 = vpop.f32.mrb[0].mxu0
  %2014 = vdwg.mxu0
  %v2015 = vadd.f32 %v1811, %v1929
  %v2016 = vadd.f32 %v1812, %v1932
  %v2017 = vadd.f32 %v1813, %v1937
  %v2018 = vadd.f32 %v1814, %v1940
  %v2019 = vadd.f32 %v1815, %v1945
  %v2020 = vadd.f32 %v1816, %v1948
  %v2021 = vadd.f32 %v1817, %v1953
  %v2022 = vadd.f32 %v1818, %v1956
  %v2023 = vadd.f32 %v1819, %v1961
  %v2024 = vadd.f32 %v1820, %v1964
  %v2025 = vadd.f32 %v1821, %v1969
  %v2026 = vadd.f32 %v1822, %v1972
  %v2027 = vadd.f32 %v1823, %v1977
  %v2028 = vadd.f32 %v1824, %v1980
  %v2029 = vadd.f32 %v1825, %v1985
  %v2030 = vadd.f32 %v1826, %v1988
  %v2031 = vadd.f32 %v1827, %v1993
  %v2032 = vadd.f32 %v1828, %v1996
  %v2033 = vadd.f32 %v1829, %v2001
  %v2034 = vadd.f32 %v1830, %v2004
  %v2035 = vadd.f32 %v1831, %v2009
  %v2036 = vadd.f32 %v1832, %v2012
  %2037 = vst.msk [vmem:[#allocation4] sm:$0xff] %vm1255, %v2015
  %2038 = vst.msk [vmem:[#allocation4 + $0x8] sm:$0xff] %vm1255, %v2016
  %2039 = vst.msk [vmem:[#allocation4 + $0x10] sm:$0xff] %vm1255, %v2017
  %2040 = vst.msk [vmem:[#allocation4 + $0x18] sm:$0xff] %vm1255, %v2018
  %2041 = vst.msk [vmem:[#allocation4 + $0x20] sm:$0xff] %vm1255, %v2019
  %2042 = vst.msk [vmem:[#allocation4 + $0x28] sm:$0xff] %vm1255, %v2020
  %2043 = vst.msk [vmem:[#allocation4 + $0x30] sm:$0xff] %vm1255, %v2021
  %2044 = vst.msk [vmem:[#allocation4 + $0x38] sm:$0xff] %vm1255, %v2022
  %2045 = vst.msk [vmem:[#allocation4 + $0x40] sm:$0xff] %vm1255, %v2023
  %2046 = vst.msk [vmem:[#allocation4 + $0x48] sm:$0xff] %vm1255, %v2024
  %2047 = vst.msk [vmem:[#allocation4 + $0x50] sm:$0xff] %vm1255, %v2025
  %2048 = vst.msk [vmem:[#allocation4 + $0x58] sm:$0xff] %vm1255, %v2026
  %2049 = vst.msk [vmem:[#allocation4 + $0x60] sm:$0xff] %vm1255, %v2027
  %2050 = vst.msk [vmem:[#allocation4 + $0x68] sm:$0xff] %vm1255, %v2028
  %2051 = vst.msk [vmem:[#allocation4 + $0x70] sm:$0xff] %vm1255, %v2029
  %2052 = vst.msk [vmem:[#allocation4 + $0x78] sm:$0xff] %vm1255, %v2030
  %2053 = vst.msk [vmem:[#allocation4 + $0x80] sm:$0xff] %vm1255, %v2031
  %2054 = vst.msk [vmem:[#allocation4 + $0x88] sm:$0xff] %vm1255, %v2032
  %2055 = vst.msk [vmem:[#allocation4 + $0x90] sm:$0xff] %vm1255, %v2033
  %2056 = vst.msk [vmem:[#allocation4 + $0x98] sm:$0xff] %vm1255, %v2034
  %2057 = vst.msk [vmem:[#allocation4 + $0xa0] sm:$0xff] %vm1255, %v2035
  %2058 = vst.msk [vmem:[#allocation4 + $0xa8] sm:$0xff] %vm1255, %v2036
  %v2059 = vld [vmem:[#allocation4] sm:$0xff]
  %v2060 = vld [vmem:[#allocation4 + $0x8] sm:$0xff]
  %v2061 = vld [vmem:[#allocation4 + $0x10] sm:$0xff]
  %v2062 = vld [vmem:[#allocation4 + $0x18] sm:$0xff]
  %v2063 = vld [vmem:[#allocation4 + $0x20] sm:$0xff]
  %v2064 = vld [vmem:[#allocation4 + $0x28] sm:$0xff]
  %v2065 = vld [vmem:[#allocation4 + $0x30] sm:$0xff]
  %v2066 = vld [vmem:[#allocation4 + $0x38] sm:$0xff]
  %v2067 = vld [vmem:[#allocation4 + $0x40] sm:$0xff]
  %v2068 = vld [vmem:[#allocation4 + $0x48] sm:$0xff]
  %v2069 = vld [vmem:[#allocation4 + $0x50] sm:$0xff]
  %v2070 = vld [vmem:[#allocation4 + $0x58] sm:$0xff]
  %v2071 = vld [vmem:[#allocation4 + $0x60] sm:$0xff]
  %v2072 = vld [vmem:[#allocation4 + $0x68] sm:$0xff]
  %v2073 = vld [vmem:[#allocation4 + $0x70] sm:$0xff]
  %v2074 = vld [vmem:[#allocation4 + $0x78] sm:$0xff]
  %v2075 = vld [vmem:[#allocation4 + $0x80] sm:$0xff]
  %v2076 = vld [vmem:[#allocation4 + $0x88] sm:$0xff]
  %v2077 = vld [vmem:[#allocation4 + $0x90] sm:$0xff]
  %v2078 = vld [vmem:[#allocation4 + $0x98] sm:$0xff]
  %v2079 = vld [vmem:[#allocation4 + $0xa0] sm:$0xff]
  %v2080 = vld [vmem:[#allocation4 + $0xa8] sm:$0xff]
  %v2081 = vld [vmem:[#allocation3 + $0x18] sm:$0xf0]
  %v2082 = vld [vmem:[#allocation3 + $0x20] sm:$0xff]
  %v2083 = vld [vmem:[#allocation3 + $0x28] sm:$0xff]
  %v2084 = vld [vmem:[#allocation3 + $0x30] sm:$0xff]
  %v2085 = vld [vmem:[#allocation3 + $0x38] sm:$0xff]
  %v2086 = vld [vmem:[#allocation3 + $0x40] sm:$0xff]
  %v2087 = vld [vmem:[#allocation3 + $0x48] sm:$0xff]
  %v2088 = vld [vmem:[#allocation3 + $0x50] sm:$0xff]
  %v2089 = vld [vmem:[#allocation3 + $0x58] sm:$0xff]
  %v2090 = vld [vmem:[#allocation3 + $0x60] sm:$0xff]
  %v2091 = vld [vmem:[#allocation3 + $0x68] sm:$0xff]
  %v2092 = vld [vmem:[#allocation3 + $0x70] sm:$0xf]
  %s2093 = scalar_lea.vmem %s4, 64
  %v2094 = vld [vmem:[%s2093] sm:$0xf]
  %v2095 = vld [vmem:[%s2093 + $0x4] sm:$0xf]
  %v2096 = vld [vmem:[%s2093 + $0x8] sm:$0xf]
  %v2097 = vld [vmem:[%s2093 + $0xc] sm:$0xf]
  %v2110 = vrot.slane %v2081, 4
  %v2111 = vrot.slane %v2082, 4
  %v2112 = vsel %vm1329, %v2110, %v2111
  %v2113 = vrot.slane %v2083, 4
  %v2114 = vsel %vm1329, %v2111, %v2113
  %v2115 = vrot.slane %v2084, 4
  %v2116 = vsel %vm1329, %v2113, %v2115
  %v2117 = vrot.slane %v2085, 4
  %v2118 = vsel %vm1329, %v2115, %v2117
  %v2119 = vrot.slane %v2086, 4
  %v2120 = vsel %vm1329, %v2117, %v2119
  %v2121 = vrot.slane %v2087, 4
  %v2122 = vsel %vm1329, %v2119, %v2121
  %v2123 = vrot.slane %v2088, 4
  %v2124 = vsel %vm1329, %v2121, %v2123
  %v2125 = vrot.slane %v2089, 4
  %v2126 = vsel %vm1329, %v2123, %v2125
  %v2127 = vrot.slane %v2090, 4
  %v2128 = vsel %vm1329, %v2125, %v2127
  %v2129 = vrot.slane %v2091, 4
  %v2130 = vsel %vm1329, %v2127, %v2129
  %v2131 = vrot.slane %v2092, 4
  %v2132 = vsel %vm1329, %v2129, %v2131
  %v2137 = vunpack.c.l.b16 %v2094
  %v2138 = vunpack.c.l.b16 %v2095
  %v2139 = vunpack.c.l.b16 %v2096
  %v2140 = vunpack.c.l.b16 %v2097
  %v2141 = vpack.c.b16 %v2138, %v2137
  %v2142 = vpack.c.b16 %v2140, %v2139
  %v2146 = vsel %vm1055, %v2112, 0
  %v2149 = vsel %vm1055, %v2114, 0
  %v2152 = vsel %vm1055, %v2116, 0
  %v2155 = vsel %vm1055, %v2118, 0
  %v2158 = vsel %vm1055, %v2120, 0
  %v2161 = vsel %vm1055, %v2122, 0
  %v2164 = vsel %vm1055, %v2124, 0
  %v2167 = vsel %vm1055, %v2126, 0
  %v2170 = vsel %vm1055, %v2128, 0
  %v2173 = vsel %vm1055, %v2130, 0
  %v2176 = vsel %vm1055, %v2132, 0
  %2178 = vmatprep.subr.bf16.mxu0 0
  %2179 = vmatpush1.bf16.msra.mxu0 %v2141
  %2180 = vmatprep.subr.bf16.mxu0 0
  %2181 = vmatpush1.bf16.msra.mxu0 %v2142
  %2182 = vmatprep.subr.bf16.mxu0 0
  %2183 = vmatpush1.bf16.msra.mxu0 0
  %2184 = vmatprep.subr.bf16.mxu0 0
  %2185 = vmatpush1.bf16.msra.mxu0 0
  %2186 = vmatprep.subr.bf16.mxu0 0
  %2187 = vmatpush1.bf16.msra.mxu0 0
  %2188 = vmatprep.subr.bf16.mxu0 0
  %2189 = vmatpush1.bf16.msra.mxu0 0
  %2190 = vmatprep.subr.bf16.mxu0 0
  %2191 = vmatpush1.bf16.msra.mxu0 0
  %2192 = vmatprep.subr.bf16.mxu0 0
  %2193 = vmatpush1.bf16.msra.mxu0 0
  %2194 = vmatprep.subr.bf16.mxu0 0
  %2195 = vmatpush1.bf16.msra.mxu0 0
  %2196 = vmatprep.subr.bf16.mxu0 0
  %2197 = vmatpush1.bf16.msra.mxu0 0
  %2198 = vmatprep.subr.bf16.mxu0 0
  %2199 = vmatpush1.bf16.msra.mxu0 0
  %2200 = vmatprep.subr.bf16.mxu0 0
  %2201 = vmatpush1.bf16.msra.mxu0 0
  %2202 = vmatprep.subr.bf16.mxu0 0
  %2203 = vmatpush1.bf16.msra.mxu0 0
  %2204 = vmatprep.subr.bf16.mxu0 0
  %2205 = vmatpush1.bf16.msra.mxu0 0
  %2206 = vmatprep.subr.bf16.mxu0 0
  %2207 = vmatpush1.bf16.msra.mxu0 0
  %2208 = vmatprep.subr.bf16.mxu0 0
  %2209 = vmatpush1.bf16.msra.mxu0 0
  %2210 = vmatprep.mubr.bf16.mxu0 0
  %2211 = vmatmul.mubr.bf16.gmra.mrb[0].mxu0 %v2146
  %v2212 = vpop.f32.mrb[0].mxu0
  %v2213 = vadd.f32 0.0, %v2212
  %v2214 = vpop.f32.mrb[0].mxu0
  %v2215 = vpop.f32.mrb[0].mxu0
  %v2216 = vadd.f32 0.0, %v2215
  %v2217 = vpop.f32.mrb[0].mxu0
  %2218 = vmatprep.mubr.bf16.mxu0 0
  %2219 = vmatmul.mubr.bf16.gmra.mrb[0].mxu0 %v2149
  %v2220 = vpop.f32.mrb[0].mxu0
  %v2221 = vadd.f32 0.0, %v2220
  %v2222 = vpop.f32.mrb[0].mxu0
  %v2223 = vpop.f32.mrb[0].mxu0
  %v2224 = vadd.f32 0.0, %v2223
  %v2225 = vpop.f32.mrb[0].mxu0
  %2226 = vmatprep.mubr.bf16.mxu0 0
  %2227 = vmatmul.mubr.bf16.gmra.mrb[0].mxu0 %v2152
  %v2228 = vpop.f32.mrb[0].mxu0
  %v2229 = vadd.f32 0.0, %v2228
  %v2230 = vpop.f32.mrb[0].mxu0
  %v2231 = vpop.f32.mrb[0].mxu0
  %v2232 = vadd.f32 0.0, %v2231
  %v2233 = vpop.f32.mrb[0].mxu0
  %2234 = vmatprep.mubr.bf16.mxu0 0
  %2235 = vmatmul.mubr.bf16.gmra.mrb[0].mxu0 %v2155
  %v2236 = vpop.f32.mrb[0].mxu0
  %v2237 = vadd.f32 0.0, %v2236
  %v2238 = vpop.f32.mrb[0].mxu0
  %v2239 = vpop.f32.mrb[0].mxu0
  %v2240 = vadd.f32 0.0, %v2239
  %v2241 = vpop.f32.mrb[0].mxu0
  %2242 = vmatprep.mubr.bf16.mxu0 0
  %2243 = vmatmul.mubr.bf16.gmra.mrb[0].mxu0 %v2158
  %v2244 = vpop.f32.mrb[0].mxu0
  %v2245 = vadd.f32 0.0, %v2244
  %v2246 = vpop.f32.mrb[0].mxu0
  %v2247 = vpop.f32.mrb[0].mxu0
  %v2248 = vadd.f32 0.0, %v2247
  %v2249 = vpop.f32.mrb[0].mxu0
  %2250 = vmatprep.mubr.bf16.mxu0 0
  %2251 = vmatmul.mubr.bf16.gmra.mrb[0].mxu0 %v2161
  %v2252 = vpop.f32.mrb[0].mxu0
  %v2253 = vadd.f32 0.0, %v2252
  %v2254 = vpop.f32.mrb[0].mxu0
  %v2255 = vpop.f32.mrb[0].mxu0
  %v2256 = vadd.f32 0.0, %v2255
  %v2257 = vpop.f32.mrb[0].mxu0
  %2258 = vmatprep.mubr.bf16.mxu0 0
  %2259 = vmatmul.mubr.bf16.gmra.mrb[0].mxu0 %v2164
  %v2260 = vpop.f32.mrb[0].mxu0
  %v2261 = vadd.f32 0.0, %v2260
  %v2262 = vpop.f32.mrb[0].mxu0
  %v2263 = vpop.f32.mrb[0].mxu0
  %v2264 = vadd.f32 0.0, %v2263
  %v2265 = vpop.f32.mrb[0].mxu0
  %2266 = vmatprep.mubr.bf16.mxu0 0
  %2267 = vmatmul.mubr.bf16.gmra.mrb[0].mxu0 %v2167
  %v2268 = vpop.f32.mrb[0].mxu0
  %v2269 = vadd.f32 0.0, %v2268
  %v2270 = vpop.f32.mrb[0].mxu0
  %v2271 = vpop.f32.mrb[0].mxu0
  %v2272 = vadd.f32 0.0, %v2271
  %v2273 = vpop.f32.mrb[0].mxu0
  %2274 = vmatprep.mubr.bf16.mxu0 0
  %2275 = vmatmul.mubr.bf16.gmra.mrb[0].mxu0 %v2170
  %v2276 = vpop.f32.mrb[0].mxu0
  %v2277 = vadd.f32 0.0, %v2276
  %v2278 = vpop.f32.mrb[0].mxu0
  %v2279 = vpop.f32.mrb[0].mxu0
  %v2280 = vadd.f32 0.0, %v2279
  %v2281 = vpop.f32.mrb[0].mxu0
  %2282 = vmatprep.mubr.bf16.mxu0 0
  %2283 = vmatmul.mubr.bf16.gmra.mrb[0].mxu0 %v2173
  %v2284 = vpop.f32.mrb[0].mxu0
  %v2285 = vadd.f32 0.0, %v2284
  %v2286 = vpop.f32.mrb[0].mxu0
  %v2287 = vpop.f32.mrb[0].mxu0
  %v2288 = vadd.f32 0.0, %v2287
  %v2289 = vpop.f32.mrb[0].mxu0
  %2290 = vmatprep.mubr.bf16.mxu0 0
  %2291 = vmatmul.mubr.bf16.gmra.mrb[0].mxu0 %v2176
  %v2292 = vpop.f32.mrb[0].mxu0
  %v2293 = vadd.f32 0.0, %v2292
  %v2294 = vpop.f32.mrb[0].mxu0
  %v2295 = vpop.f32.mrb[0].mxu0
  %v2296 = vadd.f32 0.0, %v2295
  %v2297 = vpop.f32.mrb[0].mxu0
  %2298 = vdwg.mxu0
  %v2299 = vadd.f32 %v2059, %v2213
  %v2300 = vadd.f32 %v2060, %v2216
  %v2301 = vadd.f32 %v2061, %v2221
  %v2302 = vadd.f32 %v2062, %v2224
  %v2303 = vadd.f32 %v2063, %v2229
  %v2304 = vadd.f32 %v2064, %v2232
  %v2305 = vadd.f32 %v2065, %v2237
  %v2306 = vadd.f32 %v2066, %v2240
  %v2307 = vadd.f32 %v2067, %v2245
  %v2308 = vadd.f32 %v2068, %v2248
  %v2309 = vadd.f32 %v2069, %v2253
  %v2310 = vadd.f32 %v2070, %v2256
  %v2311 = vadd.f32 %v2071, %v2261
  %v2312 = vadd.f32 %v2072, %v2264
  %v2313 = vadd.f32 %v2073, %v2269
  %v2314 = vadd.f32 %v2074, %v2272
  %v2315 = vadd.f32 %v2075, %v2277
  %v2316 = vadd.f32 %v2076, %v2280
  %v2317 = vadd.f32 %v2077, %v2285
  %v2318 = vadd.f32 %v2078, %v2288
  %v2319 = vadd.f32 %v2079, %v2293
  %v2320 = vadd.f32 %v2080, %v2296
  %2321 = vst.msk [vmem:[#allocation4] sm:$0xff] %vm1255, %v2299
  %2322 = vst.msk [vmem:[#allocation4 + $0x8] sm:$0xff] %vm1255, %v2300
  %2323 = vst.msk [vmem:[#allocation4 + $0x10] sm:$0xff] %vm1255, %v2301
  %2324 = vst.msk [vmem:[#allocation4 + $0x18] sm:$0xff] %vm1255, %v2302
  %2325 = vst.msk [vmem:[#allocation4 + $0x20] sm:$0xff] %vm1255, %v2303
  %2326 = vst.msk [vmem:[#allocation4 + $0x28] sm:$0xff] %vm1255, %v2304
  %2327 = vst.msk [vmem:[#allocation4 + $0x30] sm:$0xff] %vm1255, %v2305
  %2328 = vst.msk [vmem:[#allocation4 + $0x38] sm:$0xff] %vm1255, %v2306
  %2329 = vst.msk [vmem:[#allocation4 + $0x40] sm:$0xff] %vm1255, %v2307
  %2330 = vst.msk [vmem:[#allocation4 + $0x48] sm:$0xff] %vm1255, %v2308
  %2331 = vst.msk [vmem:[#allocation4 + $0x50] sm:$0xff] %vm1255, %v2309
  %2332 = vst.msk [vmem:[#allocation4 + $0x58] sm:$0xff] %vm1255, %v2310
  %2333 = vst.msk [vmem:[#allocation4 + $0x60] sm:$0xff] %vm1255, %v2311
  %2334 = vst.msk [vmem:[#allocation4 + $0x68] sm:$0xff] %vm1255, %v2312
  %2335 = vst.msk [vmem:[#allocation4 + $0x70] sm:$0xff] %vm1255, %v2313
  %2336 = vst.msk [vmem:[#allocation4 + $0x78] sm:$0xff] %vm1255, %v2314
  %2337 = vst.msk [vmem:[#allocation4 + $0x80] sm:$0xff] %vm1255, %v2315
  %2338 = vst.msk [vmem:[#allocation4 + $0x88] sm:$0xff] %vm1255, %v2316
  %2339 = vst.msk [vmem:[#allocation4 + $0x90] sm:$0xff] %vm1255, %v2317
  %2340 = vst.msk [vmem:[#allocation4 + $0x98] sm:$0xff] %vm1255, %v2318
  %2341 = vst.msk [vmem:[#allocation4 + $0xa0] sm:$0xff] %vm1255, %v2319
  %2342 = vst.msk [vmem:[#allocation4 + $0xa8] sm:$0xff] %vm1255, %v2320
  %v2343 = vld [vmem:[#allocation4] sm:$0xff]
  %v2344 = vld [vmem:[#allocation4 + $0x8] sm:$0xff]
  %v2345 = vld [vmem:[#allocation4 + $0x10] sm:$0xff]
  %v2346 = vld [vmem:[#allocation4 + $0x18] sm:$0xff]
  %v2347 = vld [vmem:[#allocation4 + $0x20] sm:$0xff]
  %v2348 = vld [vmem:[#allocation4 + $0x28] sm:$0xff]
  %v2349 = vld [vmem:[#allocation4 + $0x30] sm:$0xff]
  %v2350 = vld [vmem:[#allocation4 + $0x38] sm:$0xff]
  %v2351 = vld [vmem:[#allocation4 + $0x40] sm:$0xff]
  %v2352 = vld [vmem:[#allocation4 + $0x48] sm:$0xff]
  %v2353 = vld [vmem:[#allocation4 + $0x50] sm:$0xff]
  %v2354 = vld [vmem:[#allocation4 + $0x58] sm:$0xff]
  %v2355 = vld [vmem:[#allocation4 + $0x60] sm:$0xff]
  %v2356 = vld [vmem:[#allocation4 + $0x68] sm:$0xff]
  %v2357 = vld [vmem:[#allocation4 + $0x70] sm:$0xff]
  %v2358 = vld [vmem:[#allocation4 + $0x78] sm:$0xff]
  %v2359 = vld [vmem:[#allocation4 + $0x80] sm:$0xff]
  %v2360 = vld [vmem:[#allocation4 + $0x88] sm:$0xff]
  %v2361 = vld [vmem:[#allocation4 + $0x90] sm:$0xff]
  %v2362 = vld [vmem:[#allocation4 + $0x98] sm:$0xff]
  %v2363 = vld [vmem:[#allocation4 + $0xa0] sm:$0xff]
  %v2364 = vld [vmem:[#allocation4 + $0xa8] sm:$0xff]
  %v2365 = vld [vmem:[#allocation3 + $0x20] sm:$0xff]
  %v2366 = vld [vmem:[#allocation3 + $0x28] sm:$0xff]
  %v2367 = vld [vmem:[#allocation3 + $0x30] sm:$0xff]
  %v2368 = vld [vmem:[#allocation3 + $0x38] sm:$0xff]
  %v2369 = vld [vmem:[#allocation3 + $0x40] sm:$0xff]
  %v2370 = vld [vmem:[#allocation3 + $0x48] sm:$0xff]
  %v2371 = vld [vmem:[#allocation3 + $0x50] sm:$0xff]
  %v2372 = vld [vmem:[#allocation3 + $0x58] sm:$0xff]
  %v2373 = vld [vmem:[#allocation3 + $0x60] sm:$0xff]
  %v2374 = vld [vmem:[#allocation3 + $0x68] sm:$0xff]
  %v2375 = vld [vmem:[#allocation3 + $0x70] sm:$0xff]
  %s2376 = scalar_lea.vmem %s4, 80
  %v2377 = vld [vmem:[%s2376] sm:$0xf]
  %v2378 = vld [vmem:[%s2376 + $0x4] sm:$0xf]
  %v2379 = vld [vmem:[%s2376 + $0x8] sm:$0xf]
  %v2380 = vld [vmem:[%s2376 + $0xc] sm:$0xf]
  %v2385 = vunpack.c.l.b16 %v2377
  %v2386 = vunpack.c.l.b16 %v2378
  %v2387 = vunpack.c.l.b16 %v2379
  %v2388 = vunpack.c.l.b16 %v2380
  %v2389 = vpack.c.b16 %v2386, %v2385
  %v2390 = vpack.c.b16 %v2388, %v2387
  %v2394 = vsel %vm1055, %v2365, 0
  %v2397 = vsel %vm1055, %v2366, 0
  %v2400 = vsel %vm1055, %v2367, 0
  %v2403 = vsel %vm1055, %v2368, 0
  %v2406 = vsel %vm1055, %v2369, 0
  %v2409 = vsel %vm1055, %v2370, 0
  %v2412 = vsel %vm1055, %v2371, 0
  %v2415 = vsel %vm1055, %v2372, 0
  %v2418 = vsel %vm1055, %v2373, 0
  %v2421 = vsel %vm1055, %v2374, 0
  %v2424 = vsel %vm1055, %v2375, 0
  %2426 = vmatprep.subr.bf16.mxu0 0
  %2427 = vmatpush1.bf16.msra.mxu0 %v2389
  %2428 = vmatprep.subr.bf16.mxu0 0
  %2429 = vmatpush1.bf16.msra.mxu0 %v2390
  %2430 = vmatprep.subr.bf16.mxu0 0
  %2431 = vmatpush1.bf16.msra.mxu0 0
  %2432 = vmatprep.subr.bf16.mxu0 0
  %2433 = vmatpush1.bf16.msra.mxu0 0
  %2434 = vmatprep.subr.bf16.mxu0 0
  %2435 = vmatpush1.bf16.msra.mxu0 0
  %2436 = vmatprep.subr.bf16.mxu0 0
  %2437 = vmatpush1.bf16.msra.mxu0 0
  %2438 = vmatprep.subr.bf16.mxu0 0
  %2439 = vmatpush1.bf16.msra.mxu0 0
  %2440 = vmatprep.subr.bf16.mxu0 0
  %2441 = vmatpush1.bf16.msra.mxu0 0
  %2442 = vmatprep.subr.bf16.mxu0 0
  %2443 = vmatpush1.bf16.msra.mxu0 0
  %2444 = vmatprep.subr.bf16.mxu0 0
  %2445 = vmatpush1.bf16.msra.mxu0 0
  %2446 = vmatprep.subr.bf16.mxu0 0
  %2447 = vmatpush1.bf16.msra.mxu0 0
  %2448 = vmatprep.subr.bf16.mxu0 0
  %2449 = vmatpush1.bf16.msra.mxu0 0
  %2450 = vmatprep.subr.bf16.mxu0 0
  %2451 = vmatpush1.bf16.msra.mxu0 0
  %2452 = vmatprep.subr.bf16.mxu0 0
  %2453 = vmatpush1.bf16.msra.mxu0 0
  %2454 = vmatprep.subr.bf16.mxu0 0
  %2455 = vmatpush1.bf16.msra.mxu0 0
  %2456 = vmatprep.subr.bf16.mxu0 0
  %2457 = vmatpush1.bf16.msra.mxu0 0
  %2458 = vmatprep.mubr.bf16.mxu0 0
  %2459 = vmatmul.mubr.bf16.gmra.mrb[0].mxu0 %v2394
  %v2460 = vpop.f32.mrb[0].mxu0
  %v2461 = vadd.f32 0.0, %v2460
  %v2462 = vpop.f32.mrb[0].mxu0
  %v2463 = vpop.f32.mrb[0].mxu0
  %v2464 = vadd.f32 0.0, %v2463
  %v2465 = vpop.f32.mrb[0].mxu0
  %2466 = vmatprep.mubr.bf16.mxu0 0
  %2467 = vmatmul.mubr.bf16.gmra.mrb[0].mxu0 %v2397
  %v2468 = vpop.f32.mrb[0].mxu0
  %v2469 = vadd.f32 0.0, %v2468
  %v2470 = vpop.f32.mrb[0].mxu0
  %v2471 = vpop.f32.mrb[0].mxu0
  %v2472 = vadd.f32 0.0, %v2471
  %v2473 = vpop.f32.mrb[0].mxu0
  %2474 = vmatprep.mubr.bf16.mxu0 0
  %2475 = vmatmul.mubr.bf16.gmra.mrb[0].mxu0 %v2400
  %v2476 = vpop.f32.mrb[0].mxu0
  %v2477 = vadd.f32 0.0, %v2476
  %v2478 = vpop.f32.mrb[0].mxu0
  %v2479 = vpop.f32.mrb[0].mxu0
  %v2480 = vadd.f32 0.0, %v2479
  %v2481 = vpop.f32.mrb[0].mxu0
  %2482 = vmatprep.mubr.bf16.mxu0 0
  %2483 = vmatmul.mubr.bf16.gmra.mrb[0].mxu0 %v2403
  %v2484 = vpop.f32.mrb[0].mxu0
  %v2485 = vadd.f32 0.0, %v2484
  %v2486 = vpop.f32.mrb[0].mxu0
  %v2487 = vpop.f32.mrb[0].mxu0
  %v2488 = vadd.f32 0.0, %v2487
  %v2489 = vpop.f32.mrb[0].mxu0
  %2490 = vmatprep.mubr.bf16.mxu0 0
  %2491 = vmatmul.mubr.bf16.gmra.mrb[0].mxu0 %v2406
  %v2492 = vpop.f32.mrb[0].mxu0
  %v2493 = vadd.f32 0.0, %v2492
  %v2494 = vpop.f32.mrb[0].mxu0
  %v2495 = vpop.f32.mrb[0].mxu0
  %v2496 = vadd.f32 0.0, %v2495
  %v2497 = vpop.f32.mrb[0].mxu0
  %2498 = vmatprep.mubr.bf16.mxu0 0
  %2499 = vmatmul.mubr.bf16.gmra.mrb[0].mxu0 %v2409
  %v2500 = vpop.f32.mrb[0].mxu0
  %v2501 = vadd.f32 0.0, %v2500
  %v2502 = vpop.f32.mrb[0].mxu0
  %v2503 = vpop.f32.mrb[0].mxu0
  %v2504 = vadd.f32 0.0, %v2503
  %v2505 = vpop.f32.mrb[0].mxu0
  %2506 = vmatprep.mubr.bf16.mxu0 0
  %2507 = vmatmul.mubr.bf16.gmra.mrb[0].mxu0 %v2412
  %v2508 = vpop.f32.mrb[0].mxu0
  %v2509 = vadd.f32 0.0, %v2508
  %v2510 = vpop.f32.mrb[0].mxu0
  %v2511 = vpop.f32.mrb[0].mxu0
  %v2512 = vadd.f32 0.0, %v2511
  %v2513 = vpop.f32.mrb[0].mxu0
  %2514 = vmatprep.mubr.bf16.mxu0 0
  %2515 = vmatmul.mubr.bf16.gmra.mrb[0].mxu0 %v2415
  %v2516 = vpop.f32.mrb[0].mxu0
  %v2517 = vadd.f32 0.0, %v2516
  %v2518 = vpop.f32.mrb[0].mxu0
  %v2519 = vpop.f32.mrb[0].mxu0
  %v2520 = vadd.f32 0.0, %v2519
  %v2521 = vpop.f32.mrb[0].mxu0
  %2522 = vmatprep.mubr.bf16.mxu0 0
  %2523 = vmatmul.mubr.bf16.gmra.mrb[0].mxu0 %v2418
  %v2524 = vpop.f32.mrb[0].mxu0
  %v2525 = vadd.f32 0.0, %v2524
  %v2526 = vpop.f32.mrb[0].mxu0
  %v2527 = vpop.f32.mrb[0].mxu0
  %v2528 = vadd.f32 0.0, %v2527
  %v2529 = vpop.f32.mrb[0].mxu0
  %2530 = vmatprep.mubr.bf16.mxu0 0
  %2531 = vmatmul.mubr.bf16.gmra.mrb[0].mxu0 %v2421
  %v2532 = vpop.f32.mrb[0].mxu0
  %v2533 = vadd.f32 0.0, %v2532
  %v2534 = vpop.f32.mrb[0].mxu0
  %v2535 = vpop.f32.mrb[0].mxu0
  %v2536 = vadd.f32 0.0, %v2535
  %v2537 = vpop.f32.mrb[0].mxu0
  %2538 = vmatprep.mubr.bf16.mxu0 0
  %2539 = vmatmul.mubr.bf16.gmra.mrb[0].mxu0 %v2424
  %v2540 = vpop.f32.mrb[0].mxu0
  %v2541 = vadd.f32 0.0, %v2540
  %v2542 = vpop.f32.mrb[0].mxu0
  %v2543 = vpop.f32.mrb[0].mxu0
  %v2544 = vadd.f32 0.0, %v2543
  %v2545 = vpop.f32.mrb[0].mxu0
  %2546 = vdwg.mxu0
  %v2547 = vadd.f32 %v2343, %v2461
  %v2548 = vadd.f32 %v2344, %v2464
  %v2549 = vadd.f32 %v2345, %v2469
  %v2550 = vadd.f32 %v2346, %v2472
  %v2551 = vadd.f32 %v2347, %v2477
  %v2552 = vadd.f32 %v2348, %v2480
  %v2553 = vadd.f32 %v2349, %v2485
  %v2554 = vadd.f32 %v2350, %v2488
  %v2555 = vadd.f32 %v2351, %v2493
  %v2556 = vadd.f32 %v2352, %v2496
  %v2557 = vadd.f32 %v2353, %v2501
  %v2558 = vadd.f32 %v2354, %v2504
  %v2559 = vadd.f32 %v2355, %v2509
  %v2560 = vadd.f32 %v2356, %v2512
  %v2561 = vadd.f32 %v2357, %v2517
  %v2562 = vadd.f32 %v2358, %v2520
  %v2563 = vadd.f32 %v2359, %v2525
  %v2564 = vadd.f32 %v2360, %v2528
  %v2565 = vadd.f32 %v2361, %v2533
  %v2566 = vadd.f32 %v2362, %v2536
  %v2567 = vadd.f32 %v2363, %v2541
  %v2568 = vadd.f32 %v2364, %v2544
  %2569 = vst.msk [vmem:[#allocation4] sm:$0xff] %vm1255, %v2547
  %2570 = vst.msk [vmem:[#allocation4 + $0x8] sm:$0xff] %vm1255, %v2548
  %2571 = vst.msk [vmem:[#allocation4 + $0x10] sm:$0xff] %vm1255, %v2549
  %2572 = vst.msk [vmem:[#allocation4 + $0x18] sm:$0xff] %vm1255, %v2550
  %2573 = vst.msk [vmem:[#allocation4 + $0x20] sm:$0xff] %vm1255, %v2551
  %2574 = vst.msk [vmem:[#allocation4 + $0x28] sm:$0xff] %vm1255, %v2552
  %2575 = vst.msk [vmem:[#allocation4 + $0x30] sm:$0xff] %vm1255, %v2553
  %2576 = vst.msk [vmem:[#allocation4 + $0x38] sm:$0xff] %vm1255, %v2554
  %2577 = vst.msk [vmem:[#allocation4 + $0x40] sm:$0xff] %vm1255, %v2555
  %2578 = vst.msk [vmem:[#allocation4 + $0x48] sm:$0xff] %vm1255, %v2556
  %2579 = vst.msk [vmem:[#allocation4 + $0x50] sm:$0xff] %vm1255, %v2557
  %2580 = vst.msk [vmem:[#allocation4 + $0x58] sm:$0xff] %vm1255, %v2558
  %2581 = vst.msk [vmem:[#allocation4 + $0x60] sm:$0xff] %vm1255, %v2559
  %2582 = vst.msk [vmem:[#allocation4 + $0x68] sm:$0xff] %vm1255, %v2560
  %2583 = vst.msk [vmem:[#allocation4 + $0x70] sm:$0xff] %vm1255, %v2561
  %2584 = vst.msk [vmem:[#allocation4 + $0x78] sm:$0xff] %vm1255, %v2562
  %2585 = vst.msk [vmem:[#allocation4 + $0x80] sm:$0xff] %vm1255, %v2563
  %2586 = vst.msk [vmem:[#allocation4 + $0x88] sm:$0xff] %vm1255, %v2564
  %2587 = vst.msk [vmem:[#allocation4 + $0x90] sm:$0xff] %vm1255, %v2565
  %2588 = vst.msk [vmem:[#allocation4 + $0x98] sm:$0xff] %vm1255, %v2566
  %2589 = vst.msk [vmem:[#allocation4 + $0xa0] sm:$0xff] %vm1255, %v2567
  %2590 = vst.msk [vmem:[#allocation4 + $0xa8] sm:$0xff] %vm1255, %v2568
  %v2591 = vld [vmem:[#allocation4] sm:$0xff]
  %v2592 = vld [vmem:[#allocation4 + $0x8] sm:$0xff]
  %v2593 = vld [vmem:[#allocation4 + $0x10] sm:$0xff]
  %v2594 = vld [vmem:[#allocation4 + $0x18] sm:$0xff]
  %v2595 = vld [vmem:[#allocation4 + $0x20] sm:$0xff]
  %v2596 = vld [vmem:[#allocation4 + $0x28] sm:$0xff]
  %v2597 = vld [vmem:[#allocation4 + $0x30] sm:$0xff]
  %v2598 = vld [vmem:[#allocation4 + $0x38] sm:$0xff]
  %v2599 = vld [vmem:[#allocation4 + $0x40] sm:$0xff]
  %v2600 = vld [vmem:[#allocation4 + $0x48] sm:$0xff]
  %v2601 = vld [vmem:[#allocation4 + $0x50] sm:$0xff]
  %v2602 = vld [vmem:[#allocation4 + $0x58] sm:$0xff]
  %v2603 = vld [vmem:[#allocation4 + $0x60] sm:$0xff]
  %v2604 = vld [vmem:[#allocation4 + $0x68] sm:$0xff]
  %v2605 = vld [vmem:[#allocation4 + $0x70] sm:$0xff]
  %v2606 = vld [vmem:[#allocation4 + $0x78] sm:$0xff]
  %v2607 = vld [vmem:[#allocation4 + $0x80] sm:$0xff]
  %v2608 = vld [vmem:[#allocation4 + $0x88] sm:$0xff]
  %v2609 = vld [vmem:[#allocation4 + $0x90] sm:$0xff]
  %v2610 = vld [vmem:[#allocation4 + $0x98] sm:$0xff]
  %v2611 = vld [vmem:[#allocation4 + $0xa0] sm:$0xff]
  %v2612 = vld [vmem:[#allocation4 + $0xa8] sm:$0xff]
  %v2613 = vld [vmem:[#allocation3 + $0x30] sm:$0xff]
  %v2614 = vld [vmem:[#allocation3 + $0x38] sm:$0xff]
  %v2615 = vld [vmem:[#allocation3 + $0x40] sm:$0xff]
  %v2616 = vld [vmem:[#allocation3 + $0x48] sm:$0xff]
  %v2617 = vld [vmem:[#allocation3 + $0x50] sm:$0xff]
  %v2618 = vld [vmem:[#allocation3 + $0x58] sm:$0xff]
  %v2619 = vld [vmem:[#allocation3 + $0x60] sm:$0xff]
  %v2620 = vld [vmem:[#allocation3 + $0x68] sm:$0xff]
  %v2621 = vld [vmem:[#allocation3 + $0x70] sm:$0xff]
  %v2622 = vld [vmem:[#allocation3 + $0x78] sm:$0xff]
  %v2623 = vld [vmem:[#allocation3 + $0x80] sm:$0xff]
  %s2624 = scalar_lea.vmem %s4, 96
  %v2625 = vld [vmem:[%s2624] sm:$0xf]
  %v2626 = vld [vmem:[%s2624 + $0x4] sm:$0xf]
  %v2627 = vld [vmem:[%s2624 + $0x8] sm:$0xf]
  %v2628 = vld [vmem:[%s2624 + $0xc] sm:$0xf]
  %v2633 = vunpack.c.l.b16 %v2625
  %v2634 = vunpack.c.l.b16 %v2626
  %v2635 = vunpack.c.l.b16 %v2627
  %v2636 = vunpack.c.l.b16 %v2628
  %v2637 = vpack.c.b16 %v2634, %v2633
  %v2638 = vpack.c.b16 %v2636, %v2635
  %v2642 = vsel %vm1055, %v2613, 0
  %v2645 = vsel %vm1055, %v2614, 0
  %v2648 = vsel %vm1055, %v2615, 0
  %v2651 = vsel %vm1055, %v2616, 0
  %v2654 = vsel %vm1055, %v2617, 0
  %v2657 = vsel %vm1055, %v2618, 0
  %v2660 = vsel %vm1055, %v2619, 0
  %v2663 = vsel %vm1055, %v2620, 0
  %v2666 = vsel %vm1055, %v2621, 0
  %v2669 = vsel %vm1055, %v2622, 0
  %v2672 = vsel %vm1055, %v2623, 0
  %2674 = vmatprep.subr.bf16.mxu0 0
  %2675 = vmatpush1.bf16.msra.mxu0 %v2637
  %2676 = vmatprep.subr.bf16.mxu0 0
  %2677 = vmatpush1.bf16.msra.mxu0 %v2638
  %2678 = vmatprep.subr.bf16.mxu0 0
  %2679 = vmatpush1.bf16.msra.mxu0 0
  %2680 = vmatprep.subr.bf16.mxu0 0
  %2681 = vmatpush1.bf16.msra.mxu0 0
  %2682 = vmatprep.subr.bf16.mxu0 0
  %2683 = vmatpush1.bf16.msra.mxu0 0
  %2684 = vmatprep.subr.bf16.mxu0 0
  %2685 = vmatpush1.bf16.msra.mxu0 0
  %2686 = vmatprep.subr.bf16.mxu0 0
  %2687 = vmatpush1.bf16.msra.mxu0 0
  %2688 = vmatprep.subr.bf16.mxu0 0
  %2689 = vmatpush1.bf16.msra.mxu0 0
  %2690 = vmatprep.subr.bf16.mxu0 0
  %2691 = vmatpush1.bf16.msra.mxu0 0
  %2692 = vmatprep.subr.bf16.mxu0 0
  %2693 = vmatpush1.bf16.msra.mxu0 0
  %2694 = vmatprep.subr.bf16.mxu0 0
  %2695 = vmatpush1.bf16.msra.mxu0 0
  %2696 = vmatprep.subr.bf16.mxu0 0
  %2697 = vmatpush1.bf16.msra.mxu0 0
  %2698 = vmatprep.subr.bf16.mxu0 0
  %2699 = vmatpush1.bf16.msra.mxu0 0
  %2700 = vmatprep.subr.bf16.mxu0 0
  %2701 = vmatpush1.bf16.msra.mxu0 0
  %2702 = vmatprep.subr.bf16.mxu0 0
  %2703 = vmatpush1.bf16.msra.mxu0 0
  %2704 = vmatprep.subr.bf16.mxu0 0
  %2705 = vmatpush1.bf16.msra.mxu0 0
  %2706 = vmatprep.mubr.bf16.mxu0 0
  %2707 = vmatmul.mubr.bf16.gmra.mrb[0].mxu0 %v2642
  %v2708 = vpop.f32.mrb[0].mxu0
  %v2709 = vadd.f32 0.0, %v2708
  %v2710 = vpop.f32.mrb[0].mxu0
  %v2711 = vpop.f32.mrb[0].mxu0
  %v2712 = vadd.f32 0.0, %v2711
  %v2713 = vpop.f32.mrb[0].mxu0
  %2714 = vmatprep.mubr.bf16.mxu0 0
  %2715 = vmatmul.mubr.bf16.gmra.mrb[0].mxu0 %v2645
  %v2716 = vpop.f32.mrb[0].mxu0
  %v2717 = vadd.f32 0.0, %v2716
  %v2718 = vpop.f32.mrb[0].mxu0
  %v2719 = vpop.f32.mrb[0].mxu0
  %v2720 = vadd.f32 0.0, %v2719
  %v2721 = vpop.f32.mrb[0].mxu0
  %2722 = vmatprep.mubr.bf16.mxu0 0
  %2723 = vmatmul.mubr.bf16.gmra.mrb[0].mxu0 %v2648
  %v2724 = vpop.f32.mrb[0].mxu0
  %v2725 = vadd.f32 0.0, %v2724
  %v2726 = vpop.f32.mrb[0].mxu0
  %v2727 = vpop.f32.mrb[0].mxu0
  %v2728 = vadd.f32 0.0, %v2727
  %v2729 = vpop.f32.mrb[0].mxu0
  %2730 = vmatprep.mubr.bf16.mxu0 0
  %2731 = vmatmul.mubr.bf16.gmra.mrb[0].mxu0 %v2651
  %v2732 = vpop.f32.mrb[0].mxu0
  %v2733 = vadd.f32 0.0, %v2732
  %v2734 = vpop.f32.mrb[0].mxu0
  %v2735 = vpop.f32.mrb[0].mxu0
  %v2736 = vadd.f32 0.0, %v2735
  %v2737 = vpop.f32.mrb[0].mxu0
  %2738 = vmatprep.mubr.bf16.mxu0 0
  %2739 = vmatmul.mubr.bf16.gmra.mrb[0].mxu0 %v2654
  %v2740 = vpop.f32.mrb[0].mxu0
  %v2741 = vadd.f32 0.0, %v2740
  %v2742 = vpop.f32.mrb[0].mxu0
  %v2743 = vpop.f32.mrb[0].mxu0
  %v2744 = vadd.f32 0.0, %v2743
  %v2745 = vpop.f32.mrb[0].mxu0
  %2746 = vmatprep.mubr.bf16.mxu0 0
  %2747 = vmatmul.mubr.bf16.gmra.mrb[0].mxu0 %v2657
  %v2748 = vpop.f32.mrb[0].mxu0
  %v2749 = vadd.f32 0.0, %v2748
  %v2750 = vpop.f32.mrb[0].mxu0
  %v2751 = vpop.f32.mrb[0].mxu0
  %v2752 = vadd.f32 0.0, %v2751
  %v2753 = vpop.f32.mrb[0].mxu0
  %2754 = vmatprep.mubr.bf16.mxu0 0
  %2755 = vmatmul.mubr.bf16.gmra.mrb[0].mxu0 %v2660
  %v2756 = vpop.f32.mrb[0].mxu0
  %v2757 = vadd.f32 0.0, %v2756
  %v2758 = vpop.f32.mrb[0].mxu0
  %v2759 = vpop.f32.mrb[0].mxu0
  %v2760 = vadd.f32 0.0, %v2759
  %v2761 = vpop.f32.mrb[0].mxu0
  %2762 = vmatprep.mubr.bf16.mxu0 0
  %2763 = vmatmul.mubr.bf16.gmra.mrb[0].mxu0 %v2663
  %v2764 = vpop.f32.mrb[0].mxu0
  %v2765 = vadd.f32 0.0, %v2764
  %v2766 = vpop.f32.mrb[0].mxu0
  %v2767 = vpop.f32.mrb[0].mxu0
  %v2768 = vadd.f32 0.0, %v2767
  %v2769 = vpop.f32.mrb[0].mxu0
  %2770 = vmatprep.mubr.bf16.mxu0 0
  %2771 = vmatmul.mubr.bf16.gmra.mrb[0].mxu0 %v2666
  %v2772 = vpop.f32.mrb[0].mxu0
  %v2773 = vadd.f32 0.0, %v2772
  %v2774 = vpop.f32.mrb[0].mxu0
  %v2775 = vpop.f32.mrb[0].mxu0
  %v2776 = vadd.f32 0.0, %v2775
  %v2777 = vpop.f32.mrb[0].mxu0
  %2778 = vmatprep.mubr.bf16.mxu0 0
  %2779 = vmatmul.mubr.bf16.gmra.mrb[0].mxu0 %v2669
  %v2780 = vpop.f32.mrb[0].mxu0
  %v2781 = vadd.f32 0.0, %v2780
  %v2782 = vpop.f32.mrb[0].mxu0
  %v2783 = vpop.f32.mrb[0].mxu0
  %v2784 = vadd.f32 0.0, %v2783
  %v2785 = vpop.f32.mrb[0].mxu0
  %2786 = vmatprep.mubr.bf16.mxu0 0
  %2787 = vmatmul.mubr.bf16.gmra.mrb[0].mxu0 %v2672
  %v2788 = vpop.f32.mrb[0].mxu0
  %v2789 = vadd.f32 0.0, %v2788
  %v2790 = vpop.f32.mrb[0].mxu0
  %v2791 = vpop.f32.mrb[0].mxu0
  %v2792 = vadd.f32 0.0, %v2791
  %v2793 = vpop.f32.mrb[0].mxu0
  %2794 = vdwg.mxu0
  %v2795 = vadd.f32 %v2591, %v2709
  %v2796 = vadd.f32 %v2592, %v2712
  %v2797 = vadd.f32 %v2593, %v2717
  %v2798 = vadd.f32 %v2594, %v2720
  %v2799 = vadd.f32 %v2595, %v2725
  %v2800 = vadd.f32 %v2596, %v2728
  %v2801 = vadd.f32 %v2597, %v2733
  %v2802 = vadd.f32 %v2598, %v2736
  %v2803 = vadd.f32 %v2599, %v2741
  %v2804 = vadd.f32 %v2600, %v2744
  %v2805 = vadd.f32 %v2601, %v2749
  %v2806 = vadd.f32 %v2602, %v2752
  %v2807 = vadd.f32 %v2603, %v2757
  %v2808 = vadd.f32 %v2604, %v2760
  %v2809 = vadd.f32 %v2605, %v2765
  %v2810 = vadd.f32 %v2606, %v2768
  %v2811 = vadd.f32 %v2607, %v2773
  %v2812 = vadd.f32 %v2608, %v2776
  %v2813 = vadd.f32 %v2609, %v2781
  %v2814 = vadd.f32 %v2610, %v2784
  %v2815 = vadd.f32 %v2611, %v2789
  %v2816 = vadd.f32 %v2612, %v2792
  %2817 = vst.msk [vmem:[#allocation4] sm:$0xff] %vm1255, %v2795
  %2818 = vst.msk [vmem:[#allocation4 + $0x8] sm:$0xff] %vm1255, %v2796
  %2819 = vst.msk [vmem:[#allocation4 + $0x10] sm:$0xff] %vm1255, %v2797
  %2820 = vst.msk [vmem:[#allocation4 + $0x18] sm:$0xff] %vm1255, %v2798
  %2821 = vst.msk [vmem:[#allocation4 + $0x20] sm:$0xff] %vm1255, %v2799
  %2822 = vst.msk [vmem:[#allocation4 + $0x28] sm:$0xff] %vm1255, %v2800
  %2823 = vst.msk [vmem:[#allocation4 + $0x30] sm:$0xff] %vm1255, %v2801
  %2824 = vst.msk [vmem:[#allocation4 + $0x38] sm:$0xff] %vm1255, %v2802
  %2825 = vst.msk [vmem:[#allocation4 + $0x40] sm:$0xff] %vm1255, %v2803
  %2826 = vst.msk [vmem:[#allocation4 + $0x48] sm:$0xff] %vm1255, %v2804
  %2827 = vst.msk [vmem:[#allocation4 + $0x50] sm:$0xff] %vm1255, %v2805
  %2828 = vst.msk [vmem:[#allocation4 + $0x58] sm:$0xff] %vm1255, %v2806
  %2829 = vst.msk [vmem:[#allocation4 + $0x60] sm:$0xff] %vm1255, %v2807
  %2830 = vst.msk [vmem:[#allocation4 + $0x68] sm:$0xff] %vm1255, %v2808
  %2831 = vst.msk [vmem:[#allocation4 + $0x70] sm:$0xff] %vm1255, %v2809
  %2832 = vst.msk [vmem:[#allocation4 + $0x78] sm:$0xff] %vm1255, %v2810
  %2833 = vst.msk [vmem:[#allocation4 + $0x80] sm:$0xff] %vm1255, %v2811
  %2834 = vst.msk [vmem:[#allocation4 + $0x88] sm:$0xff] %vm1255, %v2812
  %2835 = vst.msk [vmem:[#allocation4 + $0x90] sm:$0xff] %vm1255, %v2813
  %2836 = vst.msk [vmem:[#allocation4 + $0x98] sm:$0xff] %vm1255, %v2814
  %2837 = vst.msk [vmem:[#allocation4 + $0xa0] sm:$0xff] %vm1255, %v2815
  %2838 = vst.msk [vmem:[#allocation4 + $0xa8] sm:$0xff] %vm1255, %v2816
  %v2839 = vld [vmem:[#allocation4] sm:$0xff]
  %v2840 = vld [vmem:[#allocation4 + $0x8] sm:$0xff]
  %v2841 = vld [vmem:[#allocation4 + $0x10] sm:$0xff]
  %v2842 = vld [vmem:[#allocation4 + $0x18] sm:$0xff]
  %v2843 = vld [vmem:[#allocation4 + $0x20] sm:$0xff]
  %v2844 = vld [vmem:[#allocation4 + $0x28] sm:$0xff]
  %v2845 = vld [vmem:[#allocation4 + $0x30] sm:$0xff]
  %v2846 = vld [vmem:[#allocation4 + $0x38] sm:$0xff]
  %v2847 = vld [vmem:[#allocation4 + $0x40] sm:$0xff]
  %v2848 = vld [vmem:[#allocation4 + $0x48] sm:$0xff]
  %v2849 = vld [vmem:[#allocation4 + $0x50] sm:$0xff]
  %v2850 = vld [vmem:[#allocation4 + $0x58] sm:$0xff]
  %v2851 = vld [vmem:[#allocation4 + $0x60] sm:$0xff]
  %v2852 = vld [vmem:[#allocation4 + $0x68] sm:$0xff]
  %v2853 = vld [vmem:[#allocation4 + $0x70] sm:$0xff]
  %v2854 = vld [vmem:[#allocation4 + $0x78] sm:$0xff]
  %v2855 = vld [vmem:[#allocation4 + $0x80] sm:$0xff]
  %v2856 = vld [vmem:[#allocation4 + $0x88] sm:$0xff]
  %v2857 = vld [vmem:[#allocation4 + $0x90] sm:$0xff]
  %v2858 = vld [vmem:[#allocation4 + $0x98] sm:$0xff]
  %v2859 = vld [vmem:[#allocation4 + $0xa0] sm:$0xff]
  %v2860 = vld [vmem:[#allocation4 + $0xa8] sm:$0xff]
  %v2861 = vld [vmem:[#allocation3 + $0x30] sm:$0xf0]
  %v2862 = vld [vmem:[#allocation3 + $0x38] sm:$0xff]
  %v2863 = vld [vmem:[#allocation3 + $0x40] sm:$0xff]
  %v2864 = vld [vmem:[#allocation3 + $0x48] sm:$0xff]
  %v2865 = vld [vmem:[#allocation3 + $0x50] sm:$0xff]
  %v2866 = vld [vmem:[#allocation3 + $0x58] sm:$0xff]
  %v2867 = vld [vmem:[#allocation3 + $0x60] sm:$0xff]
  %v2868 = vld [vmem:[#allocation3 + $0x68] sm:$0xff]
  %v2869 = vld [vmem:[#allocation3 + $0x70] sm:$0xff]
  %v2870 = vld [vmem:[#allocation3 + $0x78] sm:$0xff]
  %v2871 = vld [vmem:[#allocation3 + $0x80] sm:$0xff]
  %v2872 = vld [vmem:[#allocation3 + $0x88] sm:$0xf]
  %s2873 = scalar_lea.vmem %s4, 112
  %v2874 = vld [vmem:[%s2873] sm:$0xf]
  %v2875 = vld [vmem:[%s2873 + $0x4] sm:$0xf]
  %v2876 = vld [vmem:[%s2873 + $0x8] sm:$0xf]
  %v2877 = vld [vmem:[%s2873 + $0xc] sm:$0xf]
  %v2890 = vrot.slane %v2861, 4
  %v2891 = vrot.slane %v2862, 4
  %v2892 = vsel %vm1329, %v2890, %v2891
  %v2893 = vrot.slane %v2863, 4
  %v2894 = vsel %vm1329, %v2891, %v2893
  %v2895 = vrot.slane %v2864, 4
  %v2896 = vsel %vm1329, %v2893, %v2895
  %v2897 = vrot.slane %v2865, 4
  %v2898 = vsel %vm1329, %v2895, %v2897
  %v2899 = vrot.slane %v2866, 4
  %v2900 = vsel %vm1329, %v2897, %v2899
  %v2901 = vrot.slane %v2867, 4
  %v2902 = vsel %vm1329, %v2899, %v2901
  %v2903 = vrot.slane %v2868, 4
  %v2904 = vsel %vm1329, %v2901, %v2903
  %v2905 = vrot.slane %v2869, 4
  %v2906 = vsel %vm1329, %v2903, %v2905
  %v2907 = vrot.slane %v2870, 4
  %v2908 = vsel %vm1329, %v2905, %v2907
  %v2909 = vrot.slane %v2871, 4
  %v2910 = vsel %vm1329, %v2907, %v2909
  %v2911 = vrot.slane %v2872, 4
  %v2912 = vsel %vm1329, %v2909, %v2911
  %v2917 = vunpack.c.l.b16 %v2874
  %v2918 = vunpack.c.l.b16 %v2875
  %v2919 = vunpack.c.l.b16 %v2876
  %v2920 = vunpack.c.l.b16 %v2877
  %v2921 = vpack.c.b16 %v2918, %v2917
  %v2922 = vpack.c.b16 %v2920, %v2919
  %v2926 = vsel %vm1055, %v2892, 0
  %v2929 = vsel %vm1055, %v2894, 0
  %v2932 = vsel %vm1055, %v2896, 0
  %v2935 = vsel %vm1055, %v2898, 0
  %v2938 = vsel %vm1055, %v2900, 0
  %v2941 = vsel %vm1055, %v2902, 0
  %v2944 = vsel %vm1055, %v2904, 0
  %v2947 = vsel %vm1055, %v2906, 0
  %v2950 = vsel %vm1055, %v2908, 0
  %v2953 = vsel %vm1055, %v2910, 0
  %v2956 = vsel %vm1055, %v2912, 0
  %2958 = vmatprep.subr.bf16.mxu0 0
  %2959 = vmatpush1.bf16.msra.mxu0 %v2921
  %2960 = vmatprep.subr.bf16.mxu0 0
  %2961 = vmatpush1.bf16.msra.mxu0 %v2922
  %2962 = vmatprep.subr.bf16.mxu0 0
  %2963 = vmatpush1.bf16.msra.mxu0 0
  %2964 = vmatprep.subr.bf16.mxu0 0
  %2965 = vmatpush1.bf16.msra.mxu0 0
  %2966 = vmatprep.subr.bf16.mxu0 0
  %2967 = vmatpush1.bf16.msra.mxu0 0
  %2968 = vmatprep.subr.bf16.mxu0 0
  %2969 = vmatpush1.bf16.msra.mxu0 0
  %2970 = vmatprep.subr.bf16.mxu0 0
  %2971 = vmatpush1.bf16.msra.mxu0 0
  %2972 = vmatprep.subr.bf16.mxu0 0
  %2973 = vmatpush1.bf16.msra.mxu0 0
  %2974 = vmatprep.subr.bf16.mxu0 0
  %2975 = vmatpush1.bf16.msra.mxu0 0
  %2976 = vmatprep.subr.bf16.mxu0 0
  %2977 = vmatpush1.bf16.msra.mxu0 0
  %2978 = vmatprep.subr.bf16.mxu0 0
  %2979 = vmatpush1.bf16.msra.mxu0 0
  %2980 = vmatprep.subr.bf16.mxu0 0
  %2981 = vmatpush1.bf16.msra.mxu0 0
  %2982 = vmatprep.subr.bf16.mxu0 0
  %2983 = vmatpush1.bf16.msra.mxu0 0
  %2984 = vmatprep.subr.bf16.mxu0 0
  %2985 = vmatpush1.bf16.msra.mxu0 0
  %2986 = vmatprep.subr.bf16.mxu0 0
  %2987 = vmatpush1.bf16.msra.mxu0 0
  %2988 = vmatprep.subr.bf16.mxu0 0
  %2989 = vmatpush1.bf16.msra.mxu0 0
  %2990 = vmatprep.mubr.bf16.mxu0 0
  %2991 = vmatmul.mubr.bf16.gmra.mrb[0].mxu0 %v2926
  %v2992 = vpop.f32.mrb[0].mxu0
  %v2993 = vadd.f32 0.0, %v2992
  %v2994 = vpop.f32.mrb[0].mxu0
  %v2995 = vpop.f32.mrb[0].mxu0
  %v2996 = vadd.f32 0.0, %v2995
  %v2997 = vpop.f32.mrb[0].mxu0
  %2998 = vmatprep.mubr.bf16.mxu0 0
  %2999 = vmatmul.mubr.bf16.gmra.mrb[0].mxu0 %v2929
  %v3000 = vpop.f32.mrb[0].mxu0
  %v3001 = vadd.f32 0.0, %v3000
  %v3002 = vpop.f32.mrb[0].mxu0
  %v3003 = vpop.f32.mrb[0].mxu0
  %v3004 = vadd.f32 0.0, %v3003
  %v3005 = vpop.f32.mrb[0].mxu0
  %3006 = vmatprep.mubr.bf16.mxu0 0
  %3007 = vmatmul.mubr.bf16.gmra.mrb[0].mxu0 %v2932
  %v3008 = vpop.f32.mrb[0].mxu0
  %v3009 = vadd.f32 0.0, %v3008
  %v3010 = vpop.f32.mrb[0].mxu0
  %v3011 = vpop.f32.mrb[0].mxu0
  %v3012 = vadd.f32 0.0, %v3011
  %v3013 = vpop.f32.mrb[0].mxu0
  %3014 = vmatprep.mubr.bf16.mxu0 0
  %3015 = vmatmul.mubr.bf16.gmra.mrb[0].mxu0 %v2935
  %v3016 = vpop.f32.mrb[0].mxu0
  %v3017 = vadd.f32 0.0, %v3016
  %v3018 = vpop.f32.mrb[0].mxu0
  %v3019 = vpop.f32.mrb[0].mxu0
  %v3020 = vadd.f32 0.0, %v3019
  %v3021 = vpop.f32.mrb[0].mxu0
  %3022 = vmatprep.mubr.bf16.mxu0 0
  %3023 = vmatmul.mubr.bf16.gmra.mrb[0].mxu0 %v2938
  %v3024 = vpop.f32.mrb[0].mxu0
  %v3025 = vadd.f32 0.0, %v3024
  %v3026 = vpop.f32.mrb[0].mxu0
  %v3027 = vpop.f32.mrb[0].mxu0
  %v3028 = vadd.f32 0.0, %v3027
  %v3029 = vpop.f32.mrb[0].mxu0
  %3030 = vmatprep.mubr.bf16.mxu0 0
  %3031 = vmatmul.mubr.bf16.gmra.mrb[0].mxu0 %v2941
  %v3032 = vpop.f32.mrb[0].mxu0
  %v3033 = vadd.f32 0.0, %v3032
  %v3034 = vpop.f32.mrb[0].mxu0
  %v3035 = vpop.f32.mrb[0].mxu0
  %v3036 = vadd.f32 0.0, %v3035
  %v3037 = vpop.f32.mrb[0].mxu0
  %3038 = vmatprep.mubr.bf16.mxu0 0
  %3039 = vmatmul.mubr.bf16.gmra.mrb[0].mxu0 %v2944
  %v3040 = vpop.f32.mrb[0].mxu0
  %v3041 = vadd.f32 0.0, %v3040
  %v3042 = vpop.f32.mrb[0].mxu0
  %v3043 = vpop.f32.mrb[0].mxu0
  %v3044 = vadd.f32 0.0, %v3043
  %v3045 = vpop.f32.mrb[0].mxu0
  %3046 = vmatprep.mubr.bf16.mxu0 0
  %3047 = vmatmul.mubr.bf16.gmra.mrb[0].mxu0 %v2947
  %v3048 = vpop.f32.mrb[0].mxu0
  %v3049 = vadd.f32 0.0, %v3048
  %v3050 = vpop.f32.mrb[0].mxu0
  %v3051 = vpop.f32.mrb[0].mxu0
  %v3052 = vadd.f32 0.0, %v3051
  %v3053 = vpop.f32.mrb[0].mxu0
  %3054 = vmatprep.mubr.bf16.mxu0 0
  %3055 = vmatmul.mubr.bf16.gmra.mrb[0].mxu0 %v2950
  %v3056 = vpop.f32.mrb[0].mxu0
  %v3057 = vadd.f32 0.0, %v3056
  %v3058 = vpop.f32.mrb[0].mxu0
  %v3059 = vpop.f32.mrb[0].mxu0
  %v3060 = vadd.f32 0.0, %v3059
  %v3061 = vpop.f32.mrb[0].mxu0
  %3062 = vmatprep.mubr.bf16.mxu0 0
  %3063 = vmatmul.mubr.bf16.gmra.mrb[0].mxu0 %v2953
  %v3064 = vpop.f32.mrb[0].mxu0
  %v3065 = vadd.f32 0.0, %v3064
  %v3066 = vpop.f32.mrb[0].mxu0
  %v3067 = vpop.f32.mrb[0].mxu0
  %v3068 = vadd.f32 0.0, %v3067
  %v3069 = vpop.f32.mrb[0].mxu0
  %3070 = vmatprep.mubr.bf16.mxu0 0
  %3071 = vmatmul.mubr.bf16.gmra.mrb[0].mxu0 %v2956
  %v3072 = vpop.f32.mrb[0].mxu0
  %v3073 = vadd.f32 0.0, %v3072
  %v3074 = vpop.f32.mrb[0].mxu0
  %v3075 = vpop.f32.mrb[0].mxu0
  %v3076 = vadd.f32 0.0, %v3075
  %v3077 = vpop.f32.mrb[0].mxu0
  %3078 = vdwg.mxu0
  %v3079 = vadd.f32 %v2839, %v2993
  %v3080 = vadd.f32 %v2840, %v2996
  %v3081 = vadd.f32 %v2841, %v3001
  %v3082 = vadd.f32 %v2842, %v3004
  %v3083 = vadd.f32 %v2843, %v3009
  %v3084 = vadd.f32 %v2844, %v3012
  %v3085 = vadd.f32 %v2845, %v3017
  %v3086 = vadd.f32 %v2846, %v3020
  %v3087 = vadd.f32 %v2847, %v3025
  %v3088 = vadd.f32 %v2848, %v3028
  %v3089 = vadd.f32 %v2849, %v3033
  %v3090 = vadd.f32 %v2850, %v3036
  %v3091 = vadd.f32 %v2851, %v3041
  %v3092 = vadd.f32 %v2852, %v3044
  %v3093 = vadd.f32 %v2853, %v3049
  %v3094 = vadd.f32 %v2854, %v3052
  %v3095 = vadd.f32 %v2855, %v3057
  %v3096 = vadd.f32 %v2856, %v3060
  %v3097 = vadd.f32 %v2857, %v3065
  %v3098 = vadd.f32 %v2858, %v3068
  %v3099 = vadd.f32 %v2859, %v3073
  %v3100 = vadd.f32 %v2860, %v3076
  %3101 = vst.msk [vmem:[#allocation4] sm:$0xff] %vm1255, %v3079
  %3102 = vst.msk [vmem:[#allocation4 + $0x8] sm:$0xff] %vm1255, %v3080
  %3103 = vst.msk [vmem:[#allocation4 + $0x10] sm:$0xff] %vm1255, %v3081
  %3104 = vst.msk [vmem:[#allocation4 + $0x18] sm:$0xff] %vm1255, %v3082
  %3105 = vst.msk [vmem:[#allocation4 + $0x20] sm:$0xff] %vm1255, %v3083
  %3106 = vst.msk [vmem:[#allocation4 + $0x28] sm:$0xff] %vm1255, %v3084
  %3107 = vst.msk [vmem:[#allocation4 + $0x30] sm:$0xff] %vm1255, %v3085
  %3108 = vst.msk [vmem:[#allocation4 + $0x38] sm:$0xff] %vm1255, %v3086
  %3109 = vst.msk [vmem:[#allocation4 + $0x40] sm:$0xff] %vm1255, %v3087
  %3110 = vst.msk [vmem:[#allocation4 + $0x48] sm:$0xff] %vm1255, %v3088
  %3111 = vst.msk [vmem:[#allocation4 + $0x50] sm:$0xff] %vm1255, %v3089
  %3112 = vst.msk [vmem:[#allocation4 + $0x58] sm:$0xff] %vm1255, %v3090
  %3113 = vst.msk [vmem:[#allocation4 + $0x60] sm:$0xff] %vm1255, %v3091
  %3114 = vst.msk [vmem:[#allocation4 + $0x68] sm:$0xff] %vm1255, %v3092
  %3115 = vst.msk [vmem:[#allocation4 + $0x70] sm:$0xff] %vm1255, %v3093
  %3116 = vst.msk [vmem:[#allocation4 + $0x78] sm:$0xff] %vm1255, %v3094
  %3117 = vst.msk [vmem:[#allocation4 + $0x80] sm:$0xff] %vm1255, %v3095
  %3118 = vst.msk [vmem:[#allocation4 + $0x88] sm:$0xff] %vm1255, %v3096
  %3119 = vst.msk [vmem:[#allocation4 + $0x90] sm:$0xff] %vm1255, %v3097
  %3120 = vst.msk [vmem:[#allocation4 + $0x98] sm:$0xff] %vm1255, %v3098
  %3121 = vst.msk [vmem:[#allocation4 + $0xa0] sm:$0xff] %vm1255, %v3099
  %3122 = vst.msk [vmem:[#allocation4 + $0xa8] sm:$0xff] %vm1255, %v3100
  %v3123 = vld [vmem:[#allocation4] sm:$0xff]
  %v3124 = vld [vmem:[#allocation4 + $0x8] sm:$0xff]
  %v3125 = vld [vmem:[#allocation4 + $0x10] sm:$0xff]
  %v3126 = vld [vmem:[#allocation4 + $0x18] sm:$0xff]
  %v3127 = vld [vmem:[#allocation4 + $0x20] sm:$0xff]
  %v3128 = vld [vmem:[#allocation4 + $0x28] sm:$0xff]
  %v3129 = vld [vmem:[#allocation4 + $0x30] sm:$0xff]
  %v3130 = vld [vmem:[#allocation4 + $0x38] sm:$0xff]
  %v3131 = vld [vmem:[#allocation4 + $0x40] sm:$0xff]
  %v3132 = vld [vmem:[#allocation4 + $0x48] sm:$0xff]
  %v3133 = vld [vmem:[#allocation4 + $0x50] sm:$0xff]
  %v3134 = vld [vmem:[#allocation4 + $0x58] sm:$0xff]
  %v3135 = vld [vmem:[#allocation4 + $0x60] sm:$0xff]
  %v3136 = vld [vmem:[#allocation4 + $0x68] sm:$0xff]
  %v3137 = vld [vmem:[#allocation4 + $0x70] sm:$0xff]
  %v3138 = vld [vmem:[#allocation4 + $0x78] sm:$0xff]
  %v3139 = vld [vmem:[#allocation4 + $0x80] sm:$0xff]
  %v3140 = vld [vmem:[#allocation4 + $0x88] sm:$0xff]
  %v3141 = vld [vmem:[#allocation4 + $0x90] sm:$0xff]
  %v3142 = vld [vmem:[#allocation4 + $0x98] sm:$0xff]
  %v3143 = vld [vmem:[#allocation4 + $0xa0] sm:$0xff]
  %v3144 = vld [vmem:[#allocation4 + $0xa8] sm:$0xff]
  %v3145 = vld [vmem:[#allocation3 + $0x38] sm:$0xff]
  %v3146 = vld [vmem:[#allocation3 + $0x40] sm:$0xff]
  %v3147 = vld [vmem:[#allocation3 + $0x48] sm:$0xff]
  %v3148 = vld [vmem:[#allocation3 + $0x50] sm:$0xff]
  %v3149 = vld [vmem:[#allocation3 + $0x58] sm:$0xff]
  %v3150 = vld [vmem:[#allocation3 + $0x60] sm:$0xff]
  %v3151 = vld [vmem:[#allocation3 + $0x68] sm:$0xff]
  %v3152 = vld [vmem:[#allocation3 + $0x70] sm:$0xff]
  %v3153 = vld [vmem:[#allocation3 + $0x78] sm:$0xff]
  %v3154 = vld [vmem:[#allocation3 + $0x80] sm:$0xff]
  %v3155 = vld [vmem:[#allocation3 + $0x88] sm:$0xff]
  %s3156 = scalar_lea.vmem %s4, 128
  %v3157 = vld [vmem:[%s3156] sm:$0xf]
  %v3158 = vld [vmem:[%s3156 + $0x4] sm:$0xf]
  %v3159 = vld [vmem:[%s3156 + $0x8] sm:$0xf]
  %v3160 = vld [vmem:[%s3156 + $0xc] sm:$0xf]
  %v3165 = vunpack.c.l.b16 %v3157
  %v3166 = vunpack.c.l.b16 %v3158
  %v3167 = vunpack.c.l.b16 %v3159
  %v3168 = vunpack.c.l.b16 %v3160
  %v3169 = vpack.c.b16 %v3166, %v3165
  %v3170 = vpack.c.b16 %v3168, %v3167
  %v3174 = vsel %vm1055, %v3145, 0
  %v3177 = vsel %vm1055, %v3146, 0
  %v3180 = vsel %vm1055, %v3147, 0
  %v3183 = vsel %vm1055, %v3148, 0
  %v3186 = vsel %vm1055, %v3149, 0
  %v3189 = vsel %vm1055, %v3150, 0
  %v3192 = vsel %vm1055, %v3151, 0
  %v3195 = vsel %vm1055, %v3152, 0
  %v3198 = vsel %vm1055, %v3153, 0
  %v3201 = vsel %vm1055, %v3154, 0
  %v3204 = vsel %vm1055, %v3155, 0
  %3206 = vmatprep.subr.bf16.mxu0 0
  %3207 = vmatpush1.bf16.msra.mxu0 %v3169
  %3208 = vmatprep.subr.bf16.mxu0 0
  %3209 = vmatpush1.bf16.msra.mxu0 %v3170
  %3210 = vmatprep.subr.bf16.mxu0 0
  %3211 = vmatpush1.bf16.msra.mxu0 0
  %3212 = vmatprep.subr.bf16.mxu0 0
  %3213 = vmatpush1.bf16.msra.mxu0 0
  %3214 = vmatprep.subr.bf16.mxu0 0
  %3215 = vmatpush1.bf16.msra.mxu0 0
  %3216 = vmatprep.subr.bf16.mxu0 0
  %3217 = vmatpush1.bf16.msra.mxu0 0
  %3218 = vmatprep.subr.bf16.mxu0 0
  %3219 = vmatpush1.bf16.msra.mxu0 0
  %3220 = vmatprep.subr.bf16.mxu0 0
  %3221 = vmatpush1.bf16.msra.mxu0 0
  %3222 = vmatprep.subr.bf16.mxu0 0
  %3223 = vmatpush1.bf16.msra.mxu0 0
  %3224 = vmatprep.subr.bf16.mxu0 0
  %3225 = vmatpush1.bf16.msra.mxu0 0
  %3226 = vmatprep.subr.bf16.mxu0 0
  %3227 = vmatpush1.bf16.msra.mxu0 0
  %3228 = vmatprep.subr.bf16.mxu0 0
  %3229 = vmatpush1.bf16.msra.mxu0 0
  %3230 = vmatprep.subr.bf16.mxu0 0
  %3231 = vmatpush1.bf16.msra.mxu0 0
  %3232 = vmatprep.subr.bf16.mxu0 0
  %3233 = vmatpush1.bf16.msra.mxu0 0
  %3234 = vmatprep.subr.bf16.mxu0 0
  %3235 = vmatpush1.bf16.msra.mxu0 0
  %3236 = vmatprep.subr.bf16.mxu0 0
  %3237 = vmatpush1.bf16.msra.mxu0 0
  %3238 = vmatprep.mubr.bf16.mxu0 0
  %3239 = vmatmul.mubr.bf16.gmra.mrb[0].mxu0 %v3174
  %v3240 = vpop.f32.mrb[0].mxu0
  %v3241 = vadd.f32 0.0, %v3240
  %v3242 = vpop.f32.mrb[0].mxu0
  %v3243 = vpop.f32.mrb[0].mxu0
  %v3244 = vadd.f32 0.0, %v3243
  %v3245 = vpop.f32.mrb[0].mxu0
  %3246 = vmatprep.mubr.bf16.mxu0 0
  %3247 = vmatmul.mubr.bf16.gmra.mrb[0].mxu0 %v3177
  %v3248 = vpop.f32.mrb[0].mxu0
  %v3249 = vadd.f32 0.0, %v3248
  %v3250 = vpop.f32.mrb[0].mxu0
  %v3251 = vpop.f32.mrb[0].mxu0
  %v3252 = vadd.f32 0.0, %v3251
  %v3253 = vpop.f32.mrb[0].mxu0
  %3254 = vmatprep.mubr.bf16.mxu0 0
  %3255 = vmatmul.mubr.bf16.gmra.mrb[0].mxu0 %v3180
  %v3256 = vpop.f32.mrb[0].mxu0
  %v3257 = vadd.f32 0.0, %v3256
  %v3258 = vpop.f32.mrb[0].mxu0
  %v3259 = vpop.f32.mrb[0].mxu0
  %v3260 = vadd.f32 0.0, %v3259
  %v3261 = vpop.f32.mrb[0].mxu0
  %3262 = vmatprep.mubr.bf16.mxu0 0
  %3263 = vmatmul.mubr.bf16.gmra.mrb[0].mxu0 %v3183
  %v3264 = vpop.f32.mrb[0].mxu0
  %v3265 = vadd.f32 0.0, %v3264
  %v3266 = vpop.f32.mrb[0].mxu0
  %v3267 = vpop.f32.mrb[0].mxu0
  %v3268 = vadd.f32 0.0, %v3267
  %v3269 = vpop.f32.mrb[0].mxu0
  %3270 = vmatprep.mubr.bf16.mxu0 0
  %3271 = vmatmul.mubr.bf16.gmra.mrb[0].mxu0 %v3186
  %v3272 = vpop.f32.mrb[0].mxu0
  %v3273 = vadd.f32 0.0, %v3272
  %v3274 = vpop.f32.mrb[0].mxu0
  %v3275 = vpop.f32.mrb[0].mxu0
  %v3276 = vadd.f32 0.0, %v3275
  %v3277 = vpop.f32.mrb[0].mxu0
  %3278 = vmatprep.mubr.bf16.mxu0 0
  %3279 = vmatmul.mubr.bf16.gmra.mrb[0].mxu0 %v3189
  %v3280 = vpop.f32.mrb[0].mxu0
  %v3281 = vadd.f32 0.0, %v3280
  %v3282 = vpop.f32.mrb[0].mxu0
  %v3283 = vpop.f32.mrb[0].mxu0
  %v3284 = vadd.f32 0.0, %v3283
  %v3285 = vpop.f32.mrb[0].mxu0
  %3286 = vmatprep.mubr.bf16.mxu0 0
  %3287 = vmatmul.mubr.bf16.gmra.mrb[0].mxu0 %v3192
  %v3288 = vpop.f32.mrb[0].mxu0
  %v3289 = vadd.f32 0.0, %v3288
  %v3290 = vpop.f32.mrb[0].mxu0
  %v3291 = vpop.f32.mrb[0].mxu0
  %v3292 = vadd.f32 0.0, %v3291
  %v3293 = vpop.f32.mrb[0].mxu0
  %3294 = vmatprep.mubr.bf16.mxu0 0
  %3295 = vmatmul.mubr.bf16.gmra.mrb[0].mxu0 %v3195
  %v3296 = vpop.f32.mrb[0].mxu0
  %v3297 = vadd.f32 0.0, %v3296
  %v3298 = vpop.f32.mrb[0].mxu0
  %v3299 = vpop.f32.mrb[0].mxu0
  %v3300 = vadd.f32 0.0, %v3299
  %v3301 = vpop.f32.mrb[0].mxu0
  %3302 = vmatprep.mubr.bf16.mxu0 0
  %3303 = vmatmul.mubr.bf16.gmra.mrb[0].mxu0 %v3198
  %v3304 = vpop.f32.mrb[0].mxu0
  %v3305 = vadd.f32 0.0, %v3304
  %v3306 = vpop.f32.mrb[0].mxu0
  %v3307 = vpop.f32.mrb[0].mxu0
  %v3308 = vadd.f32 0.0, %v3307
  %v3309 = vpop.f32.mrb[0].mxu0
  %3310 = vmatprep.mubr.bf16.mxu0 0
  %3311 = vmatmul.mubr.bf16.gmra.mrb[0].mxu0 %v3201
  %v3312 = vpop.f32.mrb[0].mxu0
  %v3313 = vadd.f32 0.0, %v3312
  %v3314 = vpop.f32.mrb[0].mxu0
  %v3315 = vpop.f32.mrb[0].mxu0
  %v3316 = vadd.f32 0.0, %v3315
  %v3317 = vpop.f32.mrb[0].mxu0
  %3318 = vmatprep.mubr.bf16.mxu0 0
  %3319 = vmatmul.mubr.bf16.gmra.mrb[0].mxu0 %v3204
  %v3320 = vpop.f32.mrb[0].mxu0
  %v3321 = vadd.f32 0.0, %v3320
  %v3322 = vpop.f32.mrb[0].mxu0
  %v3323 = vpop.f32.mrb[0].mxu0
  %v3324 = vadd.f32 0.0, %v3323
  %v3325 = vpop.f32.mrb[0].mxu0
  %3326 = vdwg.mxu0
  %v3327 = vadd.f32 %v3123, %v3241
  %v3328 = vadd.f32 %v3124, %v3244
  %v3329 = vadd.f32 %v3125, %v3249
  %v3330 = vadd.f32 %v3126, %v3252
  %v3331 = vadd.f32 %v3127, %v3257
  %v3332 = vadd.f32 %v3128, %v3260
  %v3333 = vadd.f32 %v3129, %v3265
  %v3334 = vadd.f32 %v3130, %v3268
  %v3335 = vadd.f32 %v3131, %v3273
  %v3336 = vadd.f32 %v3132, %v3276
  %v3337 = vadd.f32 %v3133, %v3281
  %v3338 = vadd.f32 %v3134, %v3284
  %v3339 = vadd.f32 %v3135, %v3289
  %v3340 = vadd.f32 %v3136, %v3292
  %v3341 = vadd.f32 %v3137, %v3297
  %v3342 = vadd.f32 %v3138, %v3300
  %v3343 = vadd.f32 %v3139, %v3305
  %v3344 = vadd.f32 %v3140, %v3308
  %v3345 = vadd.f32 %v3141, %v3313
  %v3346 = vadd.f32 %v3142, %v3316
  %v3347 = vadd.f32 %v3143, %v3321
  %v3348 = vadd.f32 %v3144, %v3324
  %3349 = vst.msk [vmem:[#allocation4] sm:$0xff] %vm1255, %v3327
  %3350 = vst.msk [vmem:[#allocation4 + $0x8] sm:$0xff] %vm1255, %v3328
  %3351 = vst.msk [vmem:[#allocation4 + $0x10] sm:$0xff] %vm1255, %v3329
  %3352 = vst.msk [vmem:[#allocation4 + $0x18] sm:$0xff] %vm1255, %v3330
  %3353 = vst.msk [vmem:[#allocation4 + $0x20] sm:$0xff] %vm1255, %v3331
  %3354 = vst.msk [vmem:[#allocation4 + $0x28] sm:$0xff] %vm1255, %v3332
  %3355 = vst.msk [vmem:[#allocation4 + $0x30] sm:$0xff] %vm1255, %v3333
  %3356 = vst.msk [vmem:[#allocation4 + $0x38] sm:$0xff] %vm1255, %v3334
  %3357 = vst.msk [vmem:[#allocation4 + $0x40] sm:$0xff] %vm1255, %v3335
  %3358 = vst.msk [vmem:[#allocation4 + $0x48] sm:$0xff] %vm1255, %v3336
  %3359 = vst.msk [vmem:[#allocation4 + $0x50] sm:$0xff] %vm1255, %v3337
  %3360 = vst.msk [vmem:[#allocation4 + $0x58] sm:$0xff] %vm1255, %v3338
  %3361 = vst.msk [vmem:[#allocation4 + $0x60] sm:$0xff] %vm1255, %v3339
  %3362 = vst.msk [vmem:[#allocation4 + $0x68] sm:$0xff] %vm1255, %v3340
  %3363 = vst.msk [vmem:[#allocation4 + $0x70] sm:$0xff] %vm1255, %v3341
  %3364 = vst.msk [vmem:[#allocation4 + $0x78] sm:$0xff] %vm1255, %v3342
  %3365 = vst.msk [vmem:[#allocation4 + $0x80] sm:$0xff] %vm1255, %v3343
  %3366 = vst.msk [vmem:[#allocation4 + $0x88] sm:$0xff] %vm1255, %v3344
  %3367 = vst.msk [vmem:[#allocation4 + $0x90] sm:$0xff] %vm1255, %v3345
  %3368 = vst.msk [vmem:[#allocation4 + $0x98] sm:$0xff] %vm1255, %v3346
  %3369 = vst.msk [vmem:[#allocation4 + $0xa0] sm:$0xff] %vm1255, %v3347
  %3370 = vst.msk [vmem:[#allocation4 + $0xa8] sm:$0xff] %vm1255, %v3348
  %v3371 = vld [vmem:[#allocation4] sm:$0xff]
  %v3372 = vld [vmem:[%s5] sm:$0x1]
  %v3374 = vlaneseq
  %v3375 = vshrl.u32 %v3374, 7
  %v3376 = vsub.s32 0, %v3375
  %v3377 = vrot.slane %v3372, %v3376
  %v3379 = vadd.f32 %v3371, %v3377
  %v3380 = vmax.f32 %v3379, 0.0
  %v3381 = vpack.c.bf16 %v3380, %v3380
  %v3382 = vld [vmem:[%s6] sm:$0xf]
  %v3383 = vld [vmem:[%s6 + $0x4] sm:$0xf]
  %v3384 = vld [vmem:[%s6 + $0x8] sm:$0xf]
  %v3385 = vld [vmem:[%s6 + $0xc] sm:$0xf]
  %v3386 = vld [vmem:[%s6 + $0x10] sm:$0xf]
  %v3387 = vld [vmem:[%s6 + $0x14] sm:$0xf]
  %v3388 = vld [vmem:[%s6 + $0x18] sm:$0xf]
  %v3389 = vld [vmem:[%s6 + $0x1c] sm:$0xf]
  %v3390 = vld [vmem:[#allocation4 + $0x8] sm:$0xff]
  %v3391 = vadd.f32 %v3390, %v3377
  %v3392 = vmax.f32 %v3391, 0.0
  %v3393 = vpack.c.bf16 %v3392, %v3392
  %s3394 = scalar_lea.vmem %s6, 32
  %v3395 = vld [vmem:[%s3394] sm:$0xf]
  %v3396 = vld [vmem:[%s3394 + $0x4] sm:$0xf]
  %v3397 = vld [vmem:[%s3394 + $0x8] sm:$0xf]
  %v3398 = vld [vmem:[%s3394 + $0xc] sm:$0xf]
  %v3399 = vld [vmem:[%s3394 + $0x10] sm:$0xf]
  %v3400 = vld [vmem:[%s3394 + $0x14] sm:$0xf]
  %v3401 = vld [vmem:[%s3394 + $0x18] sm:$0xf]
  %v3402 = vld [vmem:[%s3394 + $0x1c] sm:$0xf]
  %v3411 = vunpack.c.l.b16 %v3395
  %v3412 = vunpack.c.l.b16 %v3396
  %v3413 = vunpack.c.l.b16 %v3397
  %v3414 = vunpack.c.l.b16 %v3398
  %v3415 = vunpack.c.l.b16 %v3399
  %v3416 = vunpack.c.l.b16 %v3400
  %v3417 = vunpack.c.l.b16 %v3401
  %v3418 = vunpack.c.l.b16 %v3402
  %v3419 = vpack.c.b16 %v3412, %v3411
  %v3420 = vpack.c.b16 %v3414, %v3413
  %v3421 = vpack.c.b16 %v3416, %v3415
  %v3422 = vpack.c.b16 %v3418, %v3417
  %v3428 = vsel %vm1255, %v3393, 0
  %3430 = vmatprep.subr.bf16.mxu0 0
  %3431 = vmatpush1.bf16.msra.mxu0 %v3419
  %3432 = vmatprep.subr.bf16.mxu0 0
  %3433 = vmatpush1.bf16.msra.mxu0 %v3420
  %3434 = vmatprep.subr.bf16.mxu0 0
  %3435 = vmatpush1.bf16.msra.mxu0 %v3421
  %3436 = vmatprep.subr.bf16.mxu0 0
  %3437 = vmatpush1.bf16.msra.mxu0 %v3422
  %3438 = vmatprep.subr.bf16.mxu0 0
  %3439 = vmatpush1.bf16.msra.mxu0 0
  %3440 = vmatprep.subr.bf16.mxu0 0
  %3441 = vmatpush1.bf16.msra.mxu0 0
  %3442 = vmatprep.subr.bf16.mxu0 0
  %3443 = vmatpush1.bf16.msra.mxu0 0
  %3444 = vmatprep.subr.bf16.mxu0 0
  %3445 = vmatpush1.bf16.msra.mxu0 0
  %3446 = vmatprep.subr.bf16.mxu0 0
  %3447 = vmatpush1.bf16.msra.mxu0 0
  %3448 = vmatprep.subr.bf16.mxu0 0
  %3449 = vmatpush1.bf16.msra.mxu0 0
  %3450 = vmatprep.subr.bf16.mxu0 0
  %3451 = vmatpush1.bf16.msra.mxu0 0
  %3452 = vmatprep.subr.bf16.mxu0 0
  %3453 = vmatpush1.bf16.msra.mxu0 0
  %3454 = vmatprep.subr.bf16.mxu0 0
  %3455 = vmatpush1.bf16.msra.mxu0 0
  %3456 = vmatprep.subr.bf16.mxu0 0
  %3457 = vmatpush1.bf16.msra.mxu0 0
  %3458 = vmatprep.subr.bf16.mxu0 0
  %3459 = vmatpush1.bf16.msra.mxu0 0
  %3460 = vmatprep.subr.bf16.mxu0 0
  %3461 = vmatpush1.bf16.msra.mxu0 0
  %3462 = vmatprep.mubr.bf16.mxu0 0
  %3463 = vmatmul.mubr.bf16.gmra.mrb[0].mxu0 %v3428
  %v3464 = vpop.f32.mrb[0].mxu0
  %v3465 = vadd.f32 0.0, %v3464
  %v3466 = vpop.f32.mrb[0].mxu0
  %v3467 = vpop.f32.mrb[0].mxu0
  %v3468 = vpop.f32.mrb[0].mxu0
  %3469 = vdwg.mxu0
  %v3478 = vunpack.c.l.b16 %v3382
  %v3479 = vunpack.c.l.b16 %v3383
  %v3480 = vunpack.c.l.b16 %v3384
  %v3481 = vunpack.c.l.b16 %v3385
  %v3482 = vunpack.c.l.b16 %v3386
  %v3483 = vunpack.c.l.b16 %v3387
  %v3484 = vunpack.c.l.b16 %v3388
  %v3485 = vunpack.c.l.b16 %v3389
  %v3486 = vpack.c.b16 %v3479, %v3478
  %v3487 = vpack.c.b16 %v3481, %v3480
  %v3488 = vpack.c.b16 %v3483, %v3482
  %v3489 = vpack.c.b16 %v3485, %v3484
  %v3495 = vsel %vm1255, %v3381, 0
  %3497 = vmatprep.subr.bf16.mxu0 0
  %3498 = vmatpush1.bf16.msra.mxu0 %v3486
  %3499 = vmatprep.subr.bf16.mxu0 0
  %3500 = vmatpush1.bf16.msra.mxu0 %v3487
  %3501 = vmatprep.subr.bf16.mxu0 0
  %3502 = vmatpush1.bf16.msra.mxu0 %v3488
  %3503 = vmatprep.subr.bf16.mxu0 0
  %3504 = vmatpush1.bf16.msra.mxu0 %v3489
  %3505 = vmatprep.subr.bf16.mxu0 0
  %3506 = vmatpush1.bf16.msra.mxu0 0
  %3507 = vmatprep.subr.bf16.mxu0 0
  %3508 = vmatpush1.bf16.msra.mxu0 0
  %3509 = vmatprep.subr.bf16.mxu0 0
  %3510 = vmatpush1.bf16.msra.mxu0 0
  %3511 = vmatprep.subr.bf16.mxu0 0
  %3512 = vmatpush1.bf16.msra.mxu0 0
  %3513 = vmatprep.subr.bf16.mxu0 0
  %3514 = vmatpush1.bf16.msra.mxu0 0
  %3515 = vmatprep.subr.bf16.mxu0 0
  %3516 = vmatpush1.bf16.msra.mxu0 0
  %3517 = vmatprep.subr.bf16.mxu0 0
  %3518 = vmatpush1.bf16.msra.mxu0 0
  %3519 = vmatprep.subr.bf16.mxu0 0
  %3520 = vmatpush1.bf16.msra.mxu0 0
  %3521 = vmatprep.subr.bf16.mxu0 0
  %3522 = vmatpush1.bf16.msra.mxu0 0
  %3523 = vmatprep.subr.bf16.mxu0 0
  %3524 = vmatpush1.bf16.msra.mxu0 0
  %3525 = vmatprep.subr.bf16.mxu0 0
  %3526 = vmatpush1.bf16.msra.mxu0 0
  %3527 = vmatprep.subr.bf16.mxu0 0
  %3528 = vmatpush1.bf16.msra.mxu0 0
  %3529 = vmatprep.mubr.bf16.mxu0 0
  %3530 = vmatmul.mubr.bf16.gmra.mrb[0].mxu0 %v3495
  %v3531 = vpop.f32.mrb[0].mxu0
  %v3532 = vadd.f32 %v3465, %v3531
  %v3533 = vpop.f32.mrb[0].mxu0
  %v3534 = vpop.f32.mrb[0].mxu0
  %v3535 = vpop.f32.mrb[0].mxu0
  %3536 = vdwg.mxu0
  %v3537 = vld [vmem:[#allocation4 + $0x10] sm:$0xff]
  %v3538 = vadd.f32 %v3537, %v3377
  %v3539 = vmax.f32 %v3538, 0.0
  %v3540 = vpack.c.bf16 %v3539, %v3539
  %s3541 = scalar_lea.vmem %s6, 64
  %v3542 = vld [vmem:[%s3541] sm:$0xf]
  %v3543 = vld [vmem:[%s3541 + $0x4] sm:$0xf]
  %v3544 = vld [vmem:[%s3541 + $0x8] sm:$0xf]
  %v3545 = vld [vmem:[%s3541 + $0xc] sm:$0xf]
  %v3546 = vld [vmem:[%s3541 + $0x10] sm:$0xf]
  %v3547 = vld [vmem:[%s3541 + $0x14] sm:$0xf]
  %v3548 = vld [vmem:[%s3541 + $0x18] sm:$0xf]
  %v3549 = vld [vmem:[%s3541 + $0x1c] sm:$0xf]
  %v3558 = vunpack.c.l.b16 %v3542
  %v3559 = vunpack.c.l.b16 %v3543
  %v3560 = vunpack.c.l.b16 %v3544
  %v3561 = vunpack.c.l.b16 %v3545
  %v3562 = vunpack.c.l.b16 %v3546
  %v3563 = vunpack.c.l.b16 %v3547
  %v3564 = vunpack.c.l.b16 %v3548
  %v3565 = vunpack.c.l.b16 %v3549
  %v3566 = vpack.c.b16 %v3559, %v3558
  %v3567 = vpack.c.b16 %v3561, %v3560
  %v3568 = vpack.c.b16 %v3563, %v3562
  %v3569 = vpack.c.b16 %v3565, %v3564
  %v3575 = vsel %vm1255, %v3540, 0
  %3577 = vmatprep.subr.bf16.mxu0 0
  %3578 = vmatpush1.bf16.msra.mxu0 %v3566
  %3579 = vmatprep.subr.bf16.mxu0 0
  %3580 = vmatpush1.bf16.msra.mxu0 %v3567
  %3581 = vmatprep.subr.bf16.mxu0 0
  %3582 = vmatpush1.bf16.msra.mxu0 %v3568
  %3583 = vmatprep.subr.bf16.mxu0 0
  %3584 = vmatpush1.bf16.msra.mxu0 %v3569
  %3585 = vmatprep.subr.bf16.mxu0 0
  %3586 = vmatpush1.bf16.msra.mxu0 0
  %3587 = vmatprep.subr.bf16.mxu0 0
  %3588 = vmatpush1.bf16.msra.mxu0 0
  %3589 = vmatprep.subr.bf16.mxu0 0
  %3590 = vmatpush1.bf16.msra.mxu0 0
  %3591 = vmatprep.subr.bf16.mxu0 0
  %3592 = vmatpush1.bf16.msra.mxu0 0
  %3593 = vmatprep.subr.bf16.mxu0 0
  %3594 = vmatpush1.bf16.msra.mxu0 0
  %3595 = vmatprep.subr.bf16.mxu0 0
  %3596 = vmatpush1.bf16.msra.mxu0 0
  %3597 = vmatprep.subr.bf16.mxu0 0
  %3598 = vmatpush1.bf16.msra.mxu0 0
  %3599 = vmatprep.subr.bf16.mxu0 0
  %3600 = vmatpush1.bf16.msra.mxu0 0
  %3601 = vmatprep.subr.bf16.mxu0 0
  %3602 = vmatpush1.bf16.msra.mxu0 0
  %3603 = vmatprep.subr.bf16.mxu0 0
  %3604 = vmatpush1.bf16.msra.mxu0 0
  %3605 = vmatprep.subr.bf16.mxu0 0
  %3606 = vmatpush1.bf16.msra.mxu0 0
  %3607 = vmatprep.subr.bf16.mxu0 0
  %3608 = vmatpush1.bf16.msra.mxu0 0
  %3609 = vmatprep.mubr.bf16.mxu0 0
  %3610 = vmatmul.mubr.bf16.gmra.mrb[0].mxu0 %v3575
  %v3611 = vpop.f32.mrb[0].mxu0
  %v3612 = vadd.f32 0.0, %v3611
  %v3613 = vpop.f32.mrb[0].mxu0
  %v3614 = vpop.f32.mrb[0].mxu0
  %v3615 = vpop.f32.mrb[0].mxu0
  %3616 = vdwg.mxu0
  %v3617 = vadd.f32 %v3532, %v3612
  %v3618 = vld [vmem:[#allocation4 + $0x18] sm:$0xff]
  %v3619 = vadd.f32 %v3618, %v3377
  %v3620 = vmax.f32 %v3619, 0.0
  %v3621 = vpack.c.bf16 %v3620, %v3620
  %s3622 = scalar_lea.vmem %s6, 96
  %v3623 = vld [vmem:[%s3622] sm:$0xf]
  %v3624 = vld [vmem:[%s3622 + $0x4] sm:$0xf]
  %v3625 = vld [vmem:[%s3622 + $0x8] sm:$0xf]
  %v3626 = vld [vmem:[%s3622 + $0xc] sm:$0xf]
  %v3627 = vld [vmem:[%s3622 + $0x10] sm:$0xf]
  %v3628 = vld [vmem:[%s3622 + $0x14] sm:$0xf]
  %v3629 = vld [vmem:[%s3622 + $0x18] sm:$0xf]
  %v3630 = vld [vmem:[%s3622 + $0x1c] sm:$0xf]
  %v3639 = vunpack.c.l.b16 %v3623
  %v3640 = vunpack.c.l.b16 %v3624
  %v3641 = vunpack.c.l.b16 %v3625
  %v3642 = vunpack.c.l.b16 %v3626
  %v3643 = vunpack.c.l.b16 %v3627
  %v3644 = vunpack.c.l.b16 %v3628
  %v3645 = vunpack.c.l.b16 %v3629
  %v3646 = vunpack.c.l.b16 %v3630
  %v3647 = vpack.c.b16 %v3640, %v3639
  %v3648 = vpack.c.b16 %v3642, %v3641
  %v3649 = vpack.c.b16 %v3644, %v3643
  %v3650 = vpack.c.b16 %v3646, %v3645
  %v3656 = vsel %vm1255, %v3621, 0
  %3658 = vmatprep.subr.bf16.mxu0 0
  %3659 = vmatpush1.bf16.msra.mxu0 %v3647
  %3660 = vmatprep.subr.bf16.mxu0 0
  %3661 = vmatpush1.bf16.msra.mxu0 %v3648
  %3662 = vmatprep.subr.bf16.mxu0 0
  %3663 = vmatpush1.bf16.msra.mxu0 %v3649
  %3664 = vmatprep.subr.bf16.mxu0 0
  %3665 = vmatpush1.bf16.msra.mxu0 %v3650
  %3666 = vmatprep.subr.bf16.mxu0 0
  %3667 = vmatpush1.bf16.msra.mxu0 0
  %3668 = vmatprep.subr.bf16.mxu0 0
  %3669 = vmatpush1.bf16.msra.mxu0 0
  %3670 = vmatprep.subr.bf16.mxu0 0
  %3671 = vmatpush1.bf16.msra.mxu0 0
  %3672 = vmatprep.subr.bf16.mxu0 0
  %3673 = vmatpush1.bf16.msra.mxu0 0
  %3674 = vmatprep.subr.bf16.mxu0 0
  %3675 = vmatpush1.bf16.msra.mxu0 0
  %3676 = vmatprep.subr.bf16.mxu0 0
  %3677 = vmatpush1.bf16.msra.mxu0 0
  %3678 = vmatprep.subr.bf16.mxu0 0
  %3679 = vmatpush1.bf16.msra.mxu0 0
  %3680 = vmatprep.subr.bf16.mxu0 0
  %3681 = vmatpush1.bf16.msra.mxu0 0
  %3682 = vmatprep.subr.bf16.mxu0 0
  %3683 = vmatpush1.bf16.msra.mxu0 0
  %3684 = vmatprep.subr.bf16.mxu0 0
  %3685 = vmatpush1.bf16.msra.mxu0 0
  %3686 = vmatprep.subr.bf16.mxu0 0
  %3687 = vmatpush1.bf16.msra.mxu0 0
  %3688 = vmatprep.subr.bf16.mxu0 0
  %3689 = vmatpush1.bf16.msra.mxu0 0
  %3690 = vmatprep.mubr.bf16.mxu0 0
  %3691 = vmatmul.mubr.bf16.gmra.mrb[0].mxu0 %v3656
  %v3692 = vpop.f32.mrb[0].mxu0
  %v3693 = vadd.f32 0.0, %v3692
  %v3694 = vpop.f32.mrb[0].mxu0
  %v3695 = vpop.f32.mrb[0].mxu0
  %v3696 = vpop.f32.mrb[0].mxu0
  %3697 = vdwg.mxu0
  %v3698 = vadd.f32 %v3617, %v3693
  %v3699 = vld [vmem:[#allocation4 + $0x30] sm:$0xff]
  %v3700 = vadd.f32 %v3699, %v3377
  %v3701 = vmax.f32 %v3700, 0.0
  %v3702 = vpack.c.bf16 %v3701, %v3701
  %s3703 = scalar_lea.vmem %s6, 128
  %v3704 = vld [vmem:[%s3703] sm:$0xf]
  %v3705 = vld [vmem:[%s3703 + $0x4] sm:$0xf]
  %v3706 = vld [vmem:[%s3703 + $0x8] sm:$0xf]
  %v3707 = vld [vmem:[%s3703 + $0xc] sm:$0xf]
  %v3708 = vld [vmem:[%s3703 + $0x10] sm:$0xf]
  %v3709 = vld [vmem:[%s3703 + $0x14] sm:$0xf]
  %v3710 = vld [vmem:[%s3703 + $0x18] sm:$0xf]
  %v3711 = vld [vmem:[%s3703 + $0x1c] sm:$0xf]
  %v3720 = vunpack.c.l.b16 %v3704
  %v3721 = vunpack.c.l.b16 %v3705
  %v3722 = vunpack.c.l.b16 %v3706
  %v3723 = vunpack.c.l.b16 %v3707
  %v3724 = vunpack.c.l.b16 %v3708
  %v3725 = vunpack.c.l.b16 %v3709
  %v3726 = vunpack.c.l.b16 %v3710
  %v3727 = vunpack.c.l.b16 %v3711
  %v3728 = vpack.c.b16 %v3721, %v3720
  %v3729 = vpack.c.b16 %v3723, %v3722
  %v3730 = vpack.c.b16 %v3725, %v3724
  %v3731 = vpack.c.b16 %v3727, %v3726
  %v3737 = vsel %vm1255, %v3702, 0
  %3739 = vmatprep.subr.bf16.mxu0 0
  %3740 = vmatpush1.bf16.msra.mxu0 %v3728
  %3741 = vmatprep.subr.bf16.mxu0 0
  %3742 = vmatpush1.bf16.msra.mxu0 %v3729
  %3743 = vmatprep.subr.bf16.mxu0 0
  %3744 = vmatpush1.bf16.msra.mxu0 %v3730
  %3745 = vmatprep.subr.bf16.mxu0 0
  %3746 = vmatpush1.bf16.msra.mxu0 %v3731
  %3747 = vmatprep.subr.bf16.mxu0 0
  %3748 = vmatpush1.bf16.msra.mxu0 0
  %3749 = vmatprep.subr.bf16.mxu0 0
  %3750 = vmatpush1.bf16.msra.mxu0 0
  %3751 = vmatprep.subr.bf16.mxu0 0
  %3752 = vmatpush1.bf16.msra.mxu0 0
  %3753 = vmatprep.subr.bf16.mxu0 0
  %3754 = vmatpush1.bf16.msra.mxu0 0
  %3755 = vmatprep.subr.bf16.mxu0 0
  %3756 = vmatpush1.bf16.msra.mxu0 0
  %3757 = vmatprep.subr.bf16.mxu0 0
  %3758 = vmatpush1.bf16.msra.mxu0 0
  %3759 = vmatprep.subr.bf16.mxu0 0
  %3760 = vmatpush1.bf16.msra.mxu0 0
  %3761 = vmatprep.subr.bf16.mxu0 0
  %3762 = vmatpush1.bf16.msra.mxu0 0
  %3763 = vmatprep.subr.bf16.mxu0 0
  %3764 = vmatpush1.bf16.msra.mxu0 0
  %3765 = vmatprep.subr.bf16.mxu0 0
  %3766 = vmatpush1.bf16.msra.mxu0 0
  %3767 = vmatprep.subr.bf16.mxu0 0
  %3768 = vmatpush1.bf16.msra.mxu0 0
  %3769 = vmatprep.subr.bf16.mxu0 0
  %3770 = vmatpush1.bf16.msra.mxu0 0
  %3771 = vmatprep.mubr.bf16.mxu0 0
  %3772 = vmatmul.mubr.bf16.gmra.mrb[0].mxu0 %v3737
  %v3773 = vpop.f32.mrb[0].mxu0
  %v3774 = vadd.f32 0.0, %v3773
  %v3775 = vpop.f32.mrb[0].mxu0
  %v3776 = vpop.f32.mrb[0].mxu0
  %v3777 = vpop.f32.mrb[0].mxu0
  %3778 = vdwg.mxu0
  %v3779 = vadd.f32 %v3698, %v3774
  %v3780 = vld [vmem:[#allocation4 + $0x38] sm:$0xff]
  %v3781 = vadd.f32 %v3780, %v3377
  %v3782 = vmax.f32 %v3781, 0.0
  %v3783 = vpack.c.bf16 %v3782, %v3782
  %s3784 = scalar_lea.vmem %s6, 160
  %v3785 = vld [vmem:[%s3784] sm:$0xf]
  %v3786 = vld [vmem:[%s3784 + $0x4] sm:$0xf]
  %v3787 = vld [vmem:[%s3784 + $0x8] sm:$0xf]
  %v3788 = vld [vmem:[%s3784 + $0xc] sm:$0xf]
  %v3789 = vld [vmem:[%s3784 + $0x10] sm:$0xf]
  %v3790 = vld [vmem:[%s3784 + $0x14] sm:$0xf]
  %v3791 = vld [vmem:[%s3784 + $0x18] sm:$0xf]
  %v3792 = vld [vmem:[%s3784 + $0x1c] sm:$0xf]
  %v3801 = vunpack.c.l.b16 %v3785
  %v3802 = vunpack.c.l.b16 %v3786
  %v3803 = vunpack.c.l.b16 %v3787
  %v3804 = vunpack.c.l.b16 %v3788
  %v3805 = vunpack.c.l.b16 %v3789
  %v3806 = vunpack.c.l.b16 %v3790
  %v3807 = vunpack.c.l.b16 %v3791
  %v3808 = vunpack.c.l.b16 %v3792
  %v3809 = vpack.c.b16 %v3802, %v3801
  %v3810 = vpack.c.b16 %v3804, %v3803
  %v3811 = vpack.c.b16 %v3806, %v3805
  %v3812 = vpack.c.b16 %v3808, %v3807
  %v3818 = vsel %vm1255, %v3783, 0
  %3820 = vmatprep.subr.bf16.mxu0 0
  %3821 = vmatpush1.bf16.msra.mxu0 %v3809
  %3822 = vmatprep.subr.bf16.mxu0 0
  %3823 = vmatpush1.bf16.msra.mxu0 %v3810
  %3824 = vmatprep.subr.bf16.mxu0 0
  %3825 = vmatpush1.bf16.msra.mxu0 %v3811
  %3826 = vmatprep.subr.bf16.mxu0 0
  %3827 = vmatpush1.bf16.msra.mxu0 %v3812
  %3828 = vmatprep.subr.bf16.mxu0 0
  %3829 = vmatpush1.bf16.msra.mxu0 0
  %3830 = vmatprep.subr.bf16.mxu0 0
  %3831 = vmatpush1.bf16.msra.mxu0 0
  %3832 = vmatprep.subr.bf16.mxu0 0
  %3833 = vmatpush1.bf16.msra.mxu0 0
  %3834 = vmatprep.subr.bf16.mxu0 0
  %3835 = vmatpush1.bf16.msra.mxu0 0
  %3836 = vmatprep.subr.bf16.mxu0 0
  %3837 = vmatpush1.bf16.msra.mxu0 0
  %3838 = vmatprep.subr.bf16.mxu0 0
  %3839 = vmatpush1.bf16.msra.mxu0 0
  %3840 = vmatprep.subr.bf16.mxu0 0
  %3841 = vmatpush1.bf16.msra.mxu0 0
  %3842 = vmatprep.subr.bf16.mxu0 0
  %3843 = vmatpush1.bf16.msra.mxu0 0
  %3844 = vmatprep.subr.bf16.mxu0 0
  %3845 = vmatpush1.bf16.msra.mxu0 0
  %3846 = vmatprep.subr.bf16.mxu0 0
  %3847 = vmatpush1.bf16.msra.mxu0 0
  %3848 = vmatprep.subr.bf16.mxu0 0
  %3849 = vmatpush1.bf16.msra.mxu0 0
  %3850 = vmatprep.subr.bf16.mxu0 0
  %3851 = vmatpush1.bf16.msra.mxu0 0
  %3852 = vmatprep.mubr.bf16.mxu0 0
  %3853 = vmatmul.mubr.bf16.gmra.mrb[0].mxu0 %v3818
  %v3854 = vpop.f32.mrb[0].mxu0
  %v3855 = vadd.f32 0.0, %v3854
  %v3856 = vpop.f32.mrb[0].mxu0
  %v3857 = vpop.f32.mrb[0].mxu0
  %v3858 = vpop.f32.mrb[0].mxu0
  %3859 = vdwg.mxu0
  %v3860 = vadd.f32 %v3779, %v3855
  %v3861 = vld [vmem:[#allocation4 + $0x40] sm:$0xff]
  %v3862 = vadd.f32 %v3861, %v3377
  %v3863 = vmax.f32 %v3862, 0.0
  %v3864 = vpack.c.bf16 %v3863, %v3863
  %s3865 = scalar_lea.vmem %s6, 192
  %v3866 = vld [vmem:[%s3865] sm:$0xf]
  %v3867 = vld [vmem:[%s3865 + $0x4] sm:$0xf]
  %v3868 = vld [vmem:[%s3865 + $0x8] sm:$0xf]
  %v3869 = vld [vmem:[%s3865 + $0xc] sm:$0xf]
  %v3870 = vld [vmem:[%s3865 + $0x10] sm:$0xf]
  %v3871 = vld [vmem:[%s3865 + $0x14] sm:$0xf]
  %v3872 = vld [vmem:[%s3865 + $0x18] sm:$0xf]
  %v3873 = vld [vmem:[%s3865 + $0x1c] sm:$0xf]
  %v3882 = vunpack.c.l.b16 %v3866
  %v3883 = vunpack.c.l.b16 %v3867
  %v3884 = vunpack.c.l.b16 %v3868
  %v3885 = vunpack.c.l.b16 %v3869
  %v3886 = vunpack.c.l.b16 %v3870
  %v3887 = vunpack.c.l.b16 %v3871
  %v3888 = vunpack.c.l.b16 %v3872
  %v3889 = vunpack.c.l.b16 %v3873
  %v3890 = vpack.c.b16 %v3883, %v3882
  %v3891 = vpack.c.b16 %v3885, %v3884
  %v3892 = vpack.c.b16 %v3887, %v3886
  %v3893 = vpack.c.b16 %v3889, %v3888
  %v3899 = vsel %vm1255, %v3864, 0
  %3901 = vmatprep.subr.bf16.mxu0 0
  %3902 = vmatpush1.bf16.msra.mxu0 %v3890
  %3903 = vmatprep.subr.bf16.mxu0 0
  %3904 = vmatpush1.bf16.msra.mxu0 %v3891
  %3905 = vmatprep.subr.bf16.mxu0 0
  %3906 = vmatpush1.bf16.msra.mxu0 %v3892
  %3907 = vmatprep.subr.bf16.mxu0 0
  %3908 = vmatpush1.bf16.msra.mxu0 %v3893
  %3909 = vmatprep.subr.bf16.mxu0 0
  %3910 = vmatpush1.bf16.msra.mxu0 0
  %3911 = vmatprep.subr.bf16.mxu0 0
  %3912 = vmatpush1.bf16.msra.mxu0 0
  %3913 = vmatprep.subr.bf16.mxu0 0
  %3914 = vmatpush1.bf16.msra.mxu0 0
  %3915 = vmatprep.subr.bf16.mxu0 0
  %3916 = vmatpush1.bf16.msra.mxu0 0
  %3917 = vmatprep.subr.bf16.mxu0 0
  %3918 = vmatpush1.bf16.msra.mxu0 0
  %3919 = vmatprep.subr.bf16.mxu0 0
  %3920 = vmatpush1.bf16.msra.mxu0 0
  %3921 = vmatprep.subr.bf16.mxu0 0
  %3922 = vmatpush1.bf16.msra.mxu0 0
  %3923 = vmatprep.subr.bf16.mxu0 0
  %3924 = vmatpush1.bf16.msra.mxu0 0
  %3925 = vmatprep.subr.bf16.mxu0 0
  %3926 = vmatpush1.bf16.msra.mxu0 0
  %3927 = vmatprep.subr.bf16.mxu0 0
  %3928 = vmatpush1.bf16.msra.mxu0 0
  %3929 = vmatprep.subr.bf16.mxu0 0
  %3930 = vmatpush1.bf16.msra.mxu0 0
  %3931 = vmatprep.subr.bf16.mxu0 0
  %3932 = vmatpush1.bf16.msra.mxu0 0
  %3933 = vmatprep.mubr.bf16.mxu0 0
  %3934 = vmatmul.mubr.bf16.gmra.mrb[0].mxu0 %v3899
  %v3935 = vpop.f32.mrb[0].mxu0
  %v3936 = vadd.f32 0.0, %v3935
  %v3937 = vpop.f32.mrb[0].mxu0
  %v3938 = vpop.f32.mrb[0].mxu0
  %v3939 = vpop.f32.mrb[0].mxu0
  %3940 = vdwg.mxu0
  %v3941 = vadd.f32 %v3860, %v3936
  %v3942 = vld [vmem:[#allocation4 + $0x48] sm:$0xff]
  %v3943 = vadd.f32 %v3942, %v3377
  %v3944 = vmax.f32 %v3943, 0.0
  %v3945 = vpack.c.bf16 %v3944, %v3944
  %s3946 = scalar_lea.vmem %s6, 224
  %v3947 = vld [vmem:[%s3946] sm:$0xf]
  %v3948 = vld [vmem:[%s3946 + $0x4] sm:$0xf]
  %v3949 = vld [vmem:[%s3946 + $0x8] sm:$0xf]
  %v3950 = vld [vmem:[%s3946 + $0xc] sm:$0xf]
  %v3951 = vld [vmem:[%s3946 + $0x10] sm:$0xf]
  %v3952 = vld [vmem:[%s3946 + $0x14] sm:$0xf]
  %v3953 = vld [vmem:[%s3946 + $0x18] sm:$0xf]
  %v3954 = vld [vmem:[%s3946 + $0x1c] sm:$0xf]
  %v3963 = vunpack.c.l.b16 %v3947
  %v3964 = vunpack.c.l.b16 %v3948
  %v3965 = vunpack.c.l.b16 %v3949
  %v3966 = vunpack.c.l.b16 %v3950
  %v3967 = vunpack.c.l.b16 %v3951
  %v3968 = vunpack.c.l.b16 %v3952
  %v3969 = vunpack.c.l.b16 %v3953
  %v3970 = vunpack.c.l.b16 %v3954
  %v3971 = vpack.c.b16 %v3964, %v3963
  %v3972 = vpack.c.b16 %v3966, %v3965
  %v3973 = vpack.c.b16 %v3968, %v3967
  %v3974 = vpack.c.b16 %v3970, %v3969
  %v3980 = vsel %vm1255, %v3945, 0
  %3982 = vmatprep.subr.bf16.mxu0 0
  %3983 = vmatpush1.bf16.msra.mxu0 %v3971
  %3984 = vmatprep.subr.bf16.mxu0 0
  %3985 = vmatpush1.bf16.msra.mxu0 %v3972
  %3986 = vmatprep.subr.bf16.mxu0 0
  %3987 = vmatpush1.bf16.msra.mxu0 %v3973
  %3988 = vmatprep.subr.bf16.mxu0 0
  %3989 = vmatpush1.bf16.msra.mxu0 %v3974
  %3990 = vmatprep.subr.bf16.mxu0 0
  %3991 = vmatpush1.bf16.msra.mxu0 0
  %3992 = vmatprep.subr.bf16.mxu0 0
  %3993 = vmatpush1.bf16.msra.mxu0 0
  %3994 = vmatprep.subr.bf16.mxu0 0
  %3995 = vmatpush1.bf16.msra.mxu0 0
  %3996 = vmatprep.subr.bf16.mxu0 0
  %3997 = vmatpush1.bf16.msra.mxu0 0
  %3998 = vmatprep.subr.bf16.mxu0 0
  %3999 = vmatpush1.bf16.msra.mxu0 0
  %4000 = vmatprep.subr.bf16.mxu0 0
  %4001 = vmatpush1.bf16.msra.mxu0 0
  %4002 = vmatprep.subr.bf16.mxu0 0
  %4003 = vmatpush1.bf16.msra.mxu0 0
  %4004 = vmatprep.subr.bf16.mxu0 0
  %4005 = vmatpush1.bf16.msra.mxu0 0
  %4006 = vmatprep.subr.bf16.mxu0 0
  %4007 = vmatpush1.bf16.msra.mxu0 0
  %4008 = vmatprep.subr.bf16.mxu0 0
  %4009 = vmatpush1.bf16.msra.mxu0 0
  %4010 = vmatprep.subr.bf16.mxu0 0
  %4011 = vmatpush1.bf16.msra.mxu0 0
  %4012 = vmatprep.subr.bf16.mxu0 0
  %4013 = vmatpush1.bf16.msra.mxu0 0
  %4014 = vmatprep.mubr.bf16.mxu0 0
  %4015 = vmatmul.mubr.bf16.gmra.mrb[0].mxu0 %v3980
  %v4016 = vpop.f32.mrb[0].mxu0
  %v4017 = vadd.f32 0.0, %v4016
  %v4018 = vpop.f32.mrb[0].mxu0
  %v4019 = vpop.f32.mrb[0].mxu0
  %v4020 = vpop.f32.mrb[0].mxu0
  %4021 = vdwg.mxu0
  %v4022 = vadd.f32 %v3941, %v4017
  %v4023 = vld [vmem:[#allocation4 + $0x60] sm:$0xff]
  %v4024 = vadd.f32 %v4023, %v3377
  %v4025 = vmax.f32 %v4024, 0.0
  %v4026 = vpack.c.bf16 %v4025, %v4025
  %s4027 = scalar_lea.vmem %s6, 256
  %v4028 = vld [vmem:[%s4027] sm:$0xf]
  %v4029 = vld [vmem:[%s4027 + $0x4] sm:$0xf]
  %v4030 = vld [vmem:[%s4027 + $0x8] sm:$0xf]
  %v4031 = vld [vmem:[%s4027 + $0xc] sm:$0xf]
  %v4032 = vld [vmem:[%s4027 + $0x10] sm:$0xf]
  %v4033 = vld [vmem:[%s4027 + $0x14] sm:$0xf]
  %v4034 = vld [vmem:[%s4027 + $0x18] sm:$0xf]
  %v4035 = vld [vmem:[%s4027 + $0x1c] sm:$0xf]
  %v4044 = vunpack.c.l.b16 %v4028
  %v4045 = vunpack.c.l.b16 %v4029
  %v4046 = vunpack.c.l.b16 %v4030
  %v4047 = vunpack.c.l.b16 %v4031
  %v4048 = vunpack.c.l.b16 %v4032
  %v4049 = vunpack.c.l.b16 %v4033
  %v4050 = vunpack.c.l.b16 %v4034
  %v4051 = vunpack.c.l.b16 %v4035
  %v4052 = vpack.c.b16 %v4045, %v4044
  %v4053 = vpack.c.b16 %v4047, %v4046
  %v4054 = vpack.c.b16 %v4049, %v4048
  %v4055 = vpack.c.b16 %v4051, %v4050
  %v4061 = vsel %vm1255, %v4026, 0
  %4063 = vmatprep.subr.bf16.mxu0 0
  %4064 = vmatpush1.bf16.msra.mxu0 %v4052
  %4065 = vmatprep.subr.bf16.mxu0 0
  %4066 = vmatpush1.bf16.msra.mxu0 %v4053
  %4067 = vmatprep.subr.bf16.mxu0 0
  %4068 = vmatpush1.bf16.msra.mxu0 %v4054
  %4069 = vmatprep.subr.bf16.mxu0 0
  %4070 = vmatpush1.bf16.msra.mxu0 %v4055
  %4071 = vmatprep.subr.bf16.mxu0 0
  %4072 = vmatpush1.bf16.msra.mxu0 0
  %4073 = vmatprep.subr.bf16.mxu0 0
  %4074 = vmatpush1.bf16.msra.mxu0 0
  %4075 = vmatprep.subr.bf16.mxu0 0
  %4076 = vmatpush1.bf16.msra.mxu0 0
  %4077 = vmatprep.subr.bf16.mxu0 0
  %4078 = vmatpush1.bf16.msra.mxu0 0
  %4079 = vmatprep.subr.bf16.mxu0 0
  %4080 = vmatpush1.bf16.msra.mxu0 0
  %4081 = vmatprep.subr.bf16.mxu0 0
  %4082 = vmatpush1.bf16.msra.mxu0 0
  %4083 = vmatprep.subr.bf16.mxu0 0
  %4084 = vmatpush1.bf16.msra.mxu0 0
  %4085 = vmatprep.subr.bf16.mxu0 0
  %4086 = vmatpush1.bf16.msra.mxu0 0
  %4087 = vmatprep.subr.bf16.mxu0 0
  %4088 = vmatpush1.bf16.msra.mxu0 0
  %4089 = vmatprep.subr.bf16.mxu0 0
  %4090 = vmatpush1.bf16.msra.mxu0 0
  %4091 = vmatprep.subr.bf16.mxu0 0
  %4092 = vmatpush1.bf16.msra.mxu0 0
  %4093 = vmatprep.subr.bf16.mxu0 0
  %4094 = vmatpush1.bf16.msra.mxu0 0
  %4095 = vmatprep.mubr.bf16.mxu0 0
  %4096 = vmatmul.mubr.bf16.gmra.mrb[0].mxu0 %v4061
  %v4097 = vpop.f32.mrb[0].mxu0
  %v4098 = vadd.f32 0.0, %v4097
  %v4099 = vpop.f32.mrb[0].mxu0
  %v4100 = vpop.f32.mrb[0].mxu0
  %v4101 = vpop.f32.mrb[0].mxu0
  %4102 = vdwg.mxu0
  %v4103 = vadd.f32 %v4022, %v4098
  %v4104 = vld [vmem:[#allocation4 + $0x68] sm:$0xff]
  %v4105 = vadd.f32 %v4104, %v3377
  %v4106 = vmax.f32 %v4105, 0.0
  %v4107 = vpack.c.bf16 %v4106, %v4106
  %s4108 = scalar_lea.vmem %s6, 288
  %v4109 = vld [vmem:[%s4108] sm:$0xf]
  %v4110 = vld [vmem:[%s4108 + $0x4] sm:$0xf]
  %v4111 = vld [vmem:[%s4108 + $0x8] sm:$0xf]
  %v4112 = vld [vmem:[%s4108 + $0xc] sm:$0xf]
  %v4113 = vld [vmem:[%s4108 + $0x10] sm:$0xf]
  %v4114 = vld [vmem:[%s4108 + $0x14] sm:$0xf]
  %v4115 = vld [vmem:[%s4108 + $0x18] sm:$0xf]
  %v4116 = vld [vmem:[%s4108 + $0x1c] sm:$0xf]
  %v4125 = vunpack.c.l.b16 %v4109
  %v4126 = vunpack.c.l.b16 %v4110
  %v4127 = vunpack.c.l.b16 %v4111
  %v4128 = vunpack.c.l.b16 %v4112
  %v4129 = vunpack.c.l.b16 %v4113
  %v4130 = vunpack.c.l.b16 %v4114
  %v4131 = vunpack.c.l.b16 %v4115
  %v4132 = vunpack.c.l.b16 %v4116
  %v4133 = vpack.c.b16 %v4126, %v4125
  %v4134 = vpack.c.b16 %v4128, %v4127
  %v4135 = vpack.c.b16 %v4130, %v4129
  %v4136 = vpack.c.b16 %v4132, %v4131
  %v4142 = vsel %vm1255, %v4107, 0
  %4144 = vmatprep.subr.bf16.mxu0 0
  %4145 = vmatpush1.bf16.msra.mxu0 %v4133
  %4146 = vmatprep.subr.bf16.mxu0 0
  %4147 = vmatpush1.bf16.msra.mxu0 %v4134
  %4148 = vmatprep.subr.bf16.mxu0 0
  %4149 = vmatpush1.bf16.msra.mxu0 %v4135
  %4150 = vmatprep.subr.bf16.mxu0 0
  %4151 = vmatpush1.bf16.msra.mxu0 %v4136
  %4152 = vmatprep.subr.bf16.mxu0 0
  %4153 = vmatpush1.bf16.msra.mxu0 0
  %4154 = vmatprep.subr.bf16.mxu0 0
  %4155 = vmatpush1.bf16.msra.mxu0 0
  %4156 = vmatprep.subr.bf16.mxu0 0
  %4157 = vmatpush1.bf16.msra.mxu0 0
  %4158 = vmatprep.subr.bf16.mxu0 0
  %4159 = vmatpush1.bf16.msra.mxu0 0
  %4160 = vmatprep.subr.bf16.mxu0 0
  %4161 = vmatpush1.bf16.msra.mxu0 0
  %4162 = vmatprep.subr.bf16.mxu0 0
  %4163 = vmatpush1.bf16.msra.mxu0 0
  %4164 = vmatprep.subr.bf16.mxu0 0
  %4165 = vmatpush1.bf16.msra.mxu0 0
  %4166 = vmatprep.subr.bf16.mxu0 0
  %4167 = vmatpush1.bf16.msra.mxu0 0
  %4168 = vmatprep.subr.bf16.mxu0 0
  %4169 = vmatpush1.bf16.msra.mxu0 0
  %4170 = vmatprep.subr.bf16.mxu0 0
  %4171 = vmatpush1.bf16.msra.mxu0 0
  %4172 = vmatprep.subr.bf16.mxu0 0
  %4173 = vmatpush1.bf16.msra.mxu0 0
  %4174 = vmatprep.subr.bf16.mxu0 0
  %4175 = vmatpush1.bf16.msra.mxu0 0
  %4176 = vmatprep.mubr.bf16.mxu0 0
  %4177 = vmatmul.mubr.bf16.gmra.mrb[0].mxu0 %v4142
  %v4178 = vpop.f32.mrb[0].mxu0
  %v4179 = vadd.f32 0.0, %v4178
  %v4180 = vpop.f32.mrb[0].mxu0
  %v4181 = vpop.f32.mrb[0].mxu0
  %v4182 = vpop.f32.mrb[0].mxu0
  %4183 = vdwg.mxu0
  %v4184 = vadd.f32 %v4103, %v4179
  %v4185 = vld [vmem:[#allocation4 + $0x70] sm:$0xff]
  %v4186 = vadd.f32 %v4185, %v3377
  %v4187 = vmax.f32 %v4186, 0.0
  %v4188 = vpack.c.bf16 %v4187, %v4187
  %s4189 = scalar_lea.vmem %s6, 320
  %v4190 = vld [vmem:[%s4189] sm:$0xf]
  %v4191 = vld [vmem:[%s4189 + $0x4] sm:$0xf]
  %v4192 = vld [vmem:[%s4189 + $0x8] sm:$0xf]
  %v4193 = vld [vmem:[%s4189 + $0xc] sm:$0xf]
  %v4194 = vld [vmem:[%s4189 + $0x10] sm:$0xf]
  %v4195 = vld [vmem:[%s4189 + $0x14] sm:$0xf]
  %v4196 = vld [vmem:[%s4189 + $0x18] sm:$0xf]
  %v4197 = vld [vmem:[%s4189 + $0x1c] sm:$0xf]
  %v4206 = vunpack.c.l.b16 %v4190
  %v4207 = vunpack.c.l.b16 %v4191
  %v4208 = vunpack.c.l.b16 %v4192
  %v4209 = vunpack.c.l.b16 %v4193
  %v4210 = vunpack.c.l.b16 %v4194
  %v4211 = vunpack.c.l.b16 %v4195
  %v4212 = vunpack.c.l.b16 %v4196
  %v4213 = vunpack.c.l.b16 %v4197
  %v4214 = vpack.c.b16 %v4207, %v4206
  %v4215 = vpack.c.b16 %v4209, %v4208
  %v4216 = vpack.c.b16 %v4211, %v4210
  %v4217 = vpack.c.b16 %v4213, %v4212
  %v4223 = vsel %vm1255, %v4188, 0
  %4225 = vmatprep.subr.bf16.mxu0 0
  %4226 = vmatpush1.bf16.msra.mxu0 %v4214
  %4227 = vmatprep.subr.bf16.mxu0 0
  %4228 = vmatpush1.bf16.msra.mxu0 %v4215
  %4229 = vmatprep.subr.bf16.mxu0 0
  %4230 = vmatpush1.bf16.msra.mxu0 %v4216
  %4231 = vmatprep.subr.bf16.mxu0 0
  %4232 = vmatpush1.bf16.msra.mxu0 %v4217
  %4233 = vmatprep.subr.bf16.mxu0 0
  %4234 = vmatpush1.bf16.msra.mxu0 0
  %4235 = vmatprep.subr.bf16.mxu0 0
  %4236 = vmatpush1.bf16.msra.mxu0 0
  %4237 = vmatprep.subr.bf16.mxu0 0
  %4238 = vmatpush1.bf16.msra.mxu0 0
  %4239 = vmatprep.subr.bf16.mxu0 0
  %4240 = vmatpush1.bf16.msra.mxu0 0
  %4241 = vmatprep.subr.bf16.mxu0 0
  %4242 = vmatpush1.bf16.msra.mxu0 0
  %4243 = vmatprep.subr.bf16.mxu0 0
  %4244 = vmatpush1.bf16.msra.mxu0 0
  %4245 = vmatprep.subr.bf16.mxu0 0
  %4246 = vmatpush1.bf16.msra.mxu0 0
  %4247 = vmatprep.subr.bf16.mxu0 0
  %4248 = vmatpush1.bf16.msra.mxu0 0
  %4249 = vmatprep.subr.bf16.mxu0 0
  %4250 = vmatpush1.bf16.msra.mxu0 0
  %4251 = vmatprep.subr.bf16.mxu0 0
  %4252 = vmatpush1.bf16.msra.mxu0 0
  %4253 = vmatprep.subr.bf16.mxu0 0
  %4254 = vmatpush1.bf16.msra.mxu0 0
  %4255 = vmatprep.subr.bf16.mxu0 0
  %4256 = vmatpush1.bf16.msra.mxu0 0
  %4257 = vmatprep.mubr.bf16.mxu0 0
  %4258 = vmatmul.mubr.bf16.gmra.mrb[0].mxu0 %v4223
  %v4259 = vpop.f32.mrb[0].mxu0
  %v4260 = vadd.f32 0.0, %v4259
  %v4261 = vpop.f32.mrb[0].mxu0
  %v4262 = vpop.f32.mrb[0].mxu0
  %v4263 = vpop.f32.mrb[0].mxu0
  %4264 = vdwg.mxu0
  %v4265 = vadd.f32 %v4184, %v4260
  %v4266 = vld [vmem:[#allocation4 + $0x78] sm:$0xff]
  %v4267 = vadd.f32 %v4266, %v3377
  %v4268 = vmax.f32 %v4267, 0.0
  %v4269 = vpack.c.bf16 %v4268, %v4268
  %s4270 = scalar_lea.vmem %s6, 352
  %v4271 = vld [vmem:[%s4270] sm:$0xf]
  %v4272 = vld [vmem:[%s4270 + $0x4] sm:$0xf]
  %v4273 = vld [vmem:[%s4270 + $0x8] sm:$0xf]
  %v4274 = vld [vmem:[%s4270 + $0xc] sm:$0xf]
  %v4275 = vld [vmem:[%s4270 + $0x10] sm:$0xf]
  %v4276 = vld [vmem:[%s4270 + $0x14] sm:$0xf]
  %v4277 = vld [vmem:[%s4270 + $0x18] sm:$0xf]
  %v4278 = vld [vmem:[%s4270 + $0x1c] sm:$0xf]
  %v4287 = vunpack.c.l.b16 %v4271
  %v4288 = vunpack.c.l.b16 %v4272
  %v4289 = vunpack.c.l.b16 %v4273
  %v4290 = vunpack.c.l.b16 %v4274
  %v4291 = vunpack.c.l.b16 %v4275
  %v4292 = vunpack.c.l.b16 %v4276
  %v4293 = vunpack.c.l.b16 %v4277
  %v4294 = vunpack.c.l.b16 %v4278
  %v4295 = vpack.c.b16 %v4288, %v4287
  %v4296 = vpack.c.b16 %v4290, %v4289
  %v4297 = vpack.c.b16 %v4292, %v4291
  %v4298 = vpack.c.b16 %v4294, %v4293
  %v4304 = vsel %vm1255, %v4269, 0
  %4306 = vmatprep.subr.bf16.mxu0 0
  %4307 = vmatpush1.bf16.msra.mxu0 %v4295
  %4308 = vmatprep.subr.bf16.mxu0 0
  %4309 = vmatpush1.bf16.msra.mxu0 %v4296
  %4310 = vmatprep.subr.bf16.mxu0 0
  %4311 = vmatpush1.bf16.msra.mxu0 %v4297
  %4312 = vmatprep.subr.bf16.mxu0 0
  %4313 = vmatpush1.bf16.msra.mxu0 %v4298
  %4314 = vmatprep.subr.bf16.mxu0 0
  %4315 = vmatpush1.bf16.msra.mxu0 0
  %4316 = vmatprep.subr.bf16.mxu0 0
  %4317 = vmatpush1.bf16.msra.mxu0 0
  %4318 = vmatprep.subr.bf16.mxu0 0
  %4319 = vmatpush1.bf16.msra.mxu0 0
  %4320 = vmatprep.subr.bf16.mxu0 0
  %4321 = vmatpush1.bf16.msra.mxu0 0
  %4322 = vmatprep.subr.bf16.mxu0 0
  %4323 = vmatpush1.bf16.msra.mxu0 0
  %4324 = vmatprep.subr.bf16.mxu0 0
  %4325 = vmatpush1.bf16.msra.mxu0 0
  %4326 = vmatprep.subr.bf16.mxu0 0
  %4327 = vmatpush1.bf16.msra.mxu0 0
  %4328 = vmatprep.subr.bf16.mxu0 0
  %4329 = vmatpush1.bf16.msra.mxu0 0
  %4330 = vmatprep.subr.bf16.mxu0 0
  %4331 = vmatpush1.bf16.msra.mxu0 0
  %4332 = vmatprep.subr.bf16.mxu0 0
  %4333 = vmatpush1.bf16.msra.mxu0 0
  %4334 = vmatprep.subr.bf16.mxu0 0
  %4335 = vmatpush1.bf16.msra.mxu0 0
  %4336 = vmatprep.subr.bf16.mxu0 0
  %4337 = vmatpush1.bf16.msra.mxu0 0
  %4338 = vmatprep.mubr.bf16.mxu0 0
  %4339 = vmatmul.mubr.bf16.gmra.mrb[0].mxu0 %v4304
  %v4340 = vpop.f32.mrb[0].mxu0
  %v4341 = vadd.f32 0.0, %v4340
  %v4342 = vpop.f32.mrb[0].mxu0
  %v4343 = vpop.f32.mrb[0].mxu0
  %v4344 = vpop.f32.mrb[0].mxu0
  %4345 = vdwg.mxu0
  %v4346 = vadd.f32 %v4265, %v4341
  %v4347 = vld [vmem:[#allocation4 + $0x90] sm:$0xff]
  %v4348 = vadd.f32 %v4347, %v3377
  %v4349 = vmax.f32 %v4348, 0.0
  %v4350 = vpack.c.bf16 %v4349, %v4349
  %s4351 = scalar_lea.vmem %s6, 384
  %v4352 = vld [vmem:[%s4351] sm:$0xf]
  %v4353 = vld [vmem:[%s4351 + $0x4] sm:$0xf]
  %v4354 = vld [vmem:[%s4351 + $0x8] sm:$0xf]
  %v4355 = vld [vmem:[%s4351 + $0xc] sm:$0xf]
  %v4356 = vld [vmem:[%s4351 + $0x10] sm:$0xf]
  %v4357 = vld [vmem:[%s4351 + $0x14] sm:$0xf]
  %v4358 = vld [vmem:[%s4351 + $0x18] sm:$0xf]
  %v4359 = vld [vmem:[%s4351 + $0x1c] sm:$0xf]
  %v4368 = vunpack.c.l.b16 %v4352
  %v4369 = vunpack.c.l.b16 %v4353
  %v4370 = vunpack.c.l.b16 %v4354
  %v4371 = vunpack.c.l.b16 %v4355
  %v4372 = vunpack.c.l.b16 %v4356
  %v4373 = vunpack.c.l.b16 %v4357
  %v4374 = vunpack.c.l.b16 %v4358
  %v4375 = vunpack.c.l.b16 %v4359
  %v4376 = vpack.c.b16 %v4369, %v4368
  %v4377 = vpack.c.b16 %v4371, %v4370
  %v4378 = vpack.c.b16 %v4373, %v4372
  %v4379 = vpack.c.b16 %v4375, %v4374
  %v4385 = vsel %vm1255, %v4350, 0
  %4387 = vmatprep.subr.bf16.mxu0 0
  %4388 = vmatpush1.bf16.msra.mxu0 %v4376
  %4389 = vmatprep.subr.bf16.mxu0 0
  %4390 = vmatpush1.bf16.msra.mxu0 %v4377
  %4391 = vmatprep.subr.bf16.mxu0 0
  %4392 = vmatpush1.bf16.msra.mxu0 %v4378
  %4393 = vmatprep.subr.bf16.mxu0 0
  %4394 = vmatpush1.bf16.msra.mxu0 %v4379
  %4395 = vmatprep.subr.bf16.mxu0 0
  %4396 = vmatpush1.bf16.msra.mxu0 0
  %4397 = vmatprep.subr.bf16.mxu0 0
  %4398 = vmatpush1.bf16.msra.mxu0 0
  %4399 = vmatprep.subr.bf16.mxu0 0
  %4400 = vmatpush1.bf16.msra.mxu0 0
  %4401 = vmatprep.subr.bf16.mxu0 0
  %4402 = vmatpush1.bf16.msra.mxu0 0
  %4403 = vmatprep.subr.bf16.mxu0 0
  %4404 = vmatpush1.bf16.msra.mxu0 0
  %4405 = vmatprep.subr.bf16.mxu0 0
  %4406 = vmatpush1.bf16.msra.mxu0 0
  %4407 = vmatprep.subr.bf16.mxu0 0
  %4408 = vmatpush1.bf16.msra.mxu0 0
  %4409 = vmatprep.subr.bf16.mxu0 0
  %4410 = vmatpush1.bf16.msra.mxu0 0
  %4411 = vmatprep.subr.bf16.mxu0 0
  %4412 = vmatpush1.bf16.msra.mxu0 0
  %4413 = vmatprep.subr.bf16.mxu0 0
  %4414 = vmatpush1.bf16.msra.mxu0 0
  %4415 = vmatprep.subr.bf16.mxu0 0
  %4416 = vmatpush1.bf16.msra.mxu0 0
  %4417 = vmatprep.subr.bf16.mxu0 0
  %4418 = vmatpush1.bf16.msra.mxu0 0
  %4419 = vmatprep.mubr.bf16.mxu0 0
  %4420 = vmatmul.mubr.bf16.gmra.mrb[0].mxu0 %v4385
  %v4421 = vpop.f32.mrb[0].mxu0
  %v4422 = vadd.f32 0.0, %v4421
  %v4423 = vpop.f32.mrb[0].mxu0
  %v4424 = vpop.f32.mrb[0].mxu0
  %v4425 = vpop.f32.mrb[0].mxu0
  %4426 = vdwg.mxu0
  %v4427 = vadd.f32 %v4346, %v4422
  %v4428 = vld [vmem:[#allocation4 + $0x98] sm:$0xff]
  %v4429 = vadd.f32 %v4428, %v3377
  %v4430 = vmax.f32 %v4429, 0.0
  %v4431 = vpack.c.bf16 %v4430, %v4430
  %s4432 = scalar_lea.vmem %s6, 416
  %v4433 = vld [vmem:[%s4432] sm:$0xf]
  %v4434 = vld [vmem:[%s4432 + $0x4] sm:$0xf]
  %v4435 = vld [vmem:[%s4432 + $0x8] sm:$0xf]
  %v4436 = vld [vmem:[%s4432 + $0xc] sm:$0xf]
  %v4437 = vld [vmem:[%s4432 + $0x10] sm:$0xf]
  %v4438 = vld [vmem:[%s4432 + $0x14] sm:$0xf]
  %v4439 = vld [vmem:[%s4432 + $0x18] sm:$0xf]
  %v4440 = vld [vmem:[%s4432 + $0x1c] sm:$0xf]
  %v4449 = vunpack.c.l.b16 %v4433
  %v4450 = vunpack.c.l.b16 %v4434
  %v4451 = vunpack.c.l.b16 %v4435
  %v4452 = vunpack.c.l.b16 %v4436
  %v4453 = vunpack.c.l.b16 %v4437
  %v4454 = vunpack.c.l.b16 %v4438
  %v4455 = vunpack.c.l.b16 %v4439
  %v4456 = vunpack.c.l.b16 %v4440
  %v4457 = vpack.c.b16 %v4450, %v4449
  %v4458 = vpack.c.b16 %v4452, %v4451
  %v4459 = vpack.c.b16 %v4454, %v4453
  %v4460 = vpack.c.b16 %v4456, %v4455
  %v4466 = vsel %vm1255, %v4431, 0
  %4468 = vmatprep.subr.bf16.mxu0 0
  %4469 = vmatpush1.bf16.msra.mxu0 %v4457
  %4470 = vmatprep.subr.bf16.mxu0 0
  %4471 = vmatpush1.bf16.msra.mxu0 %v4458
  %4472 = vmatprep.subr.bf16.mxu0 0
  %4473 = vmatpush1.bf16.msra.mxu0 %v4459
  %4474 = vmatprep.subr.bf16.mxu0 0
  %4475 = vmatpush1.bf16.msra.mxu0 %v4460
  %4476 = vmatprep.subr.bf16.mxu0 0
  %4477 = vmatpush1.bf16.msra.mxu0 0
  %4478 = vmatprep.subr.bf16.mxu0 0
  %4479 = vmatpush1.bf16.msra.mxu0 0
  %4480 = vmatprep.subr.bf16.mxu0 0
  %4481 = vmatpush1.bf16.msra.mxu0 0
  %4482 = vmatprep.subr.bf16.mxu0 0
  %4483 = vmatpush1.bf16.msra.mxu0 0
  %4484 = vmatprep.subr.bf16.mxu0 0
  %4485 = vmatpush1.bf16.msra.mxu0 0
  %4486 = vmatprep.subr.bf16.mxu0 0
  %4487 = vmatpush1.bf16.msra.mxu0 0
  %4488 = vmatprep.subr.bf16.mxu0 0
  %4489 = vmatpush1.bf16.msra.mxu0 0
  %4490 = vmatprep.subr.bf16.mxu0 0
  %4491 = vmatpush1.bf16.msra.mxu0 0
  %4492 = vmatprep.subr.bf16.mxu0 0
  %4493 = vmatpush1.bf16.msra.mxu0 0
  %4494 = vmatprep.subr.bf16.mxu0 0
  %4495 = vmatpush1.bf16.msra.mxu0 0
  %4496 = vmatprep.subr.bf16.mxu0 0
  %4497 = vmatpush1.bf16.msra.mxu0 0
  %4498 = vmatprep.subr.bf16.mxu0 0
  %4499 = vmatpush1.bf16.msra.mxu0 0
  %4500 = vmatprep.mubr.bf16.mxu0 0
  %4501 = vmatmul.mubr.bf16.gmra.mrb[0].mxu0 %v4466
  %v4502 = vpop.f32.mrb[0].mxu0
  %v4503 = vadd.f32 0.0, %v4502
  %v4504 = vpop.f32.mrb[0].mxu0
  %v4505 = vpop.f32.mrb[0].mxu0
  %v4506 = vpop.f32.mrb[0].mxu0
  %4507 = vdwg.mxu0
  %v4508 = vadd.f32 %v4427, %v4503
  %v4509 = vld [vmem:[#allocation4 + $0xa0] sm:$0xff]
  %v4510 = vadd.f32 %v4509, %v3377
  %v4511 = vmax.f32 %v4510, 0.0
  %v4512 = vpack.c.bf16 %v4511, %v4511
  %s4513 = scalar_lea.vmem %s6, 448
  %v4514 = vld [vmem:[%s4513] sm:$0xf]
  %v4515 = vld [vmem:[%s4513 + $0x4] sm:$0xf]
  %v4516 = vld [vmem:[%s4513 + $0x8] sm:$0xf]
  %v4517 = vld [vmem:[%s4513 + $0xc] sm:$0xf]
  %v4518 = vld [vmem:[%s4513 + $0x10] sm:$0xf]
  %v4519 = vld [vmem:[%s4513 + $0x14] sm:$0xf]
  %v4520 = vld [vmem:[%s4513 + $0x18] sm:$0xf]
  %v4521 = vld [vmem:[%s4513 + $0x1c] sm:$0xf]
  %v4530 = vunpack.c.l.b16 %v4514
  %v4531 = vunpack.c.l.b16 %v4515
  %v4532 = vunpack.c.l.b16 %v4516
  %v4533 = vunpack.c.l.b16 %v4517
  %v4534 = vunpack.c.l.b16 %v4518
  %v4535 = vunpack.c.l.b16 %v4519
  %v4536 = vunpack.c.l.b16 %v4520
  %v4537 = vunpack.c.l.b16 %v4521
  %v4538 = vpack.c.b16 %v4531, %v4530
  %v4539 = vpack.c.b16 %v4533, %v4532
  %v4540 = vpack.c.b16 %v4535, %v4534
  %v4541 = vpack.c.b16 %v4537, %v4536
  %v4547 = vsel %vm1255, %v4512, 0
  %4549 = vmatprep.subr.bf16.mxu0 0
  %4550 = vmatpush1.bf16.msra.mxu0 %v4538
  %4551 = vmatprep.subr.bf16.mxu0 0
  %4552 = vmatpush1.bf16.msra.mxu0 %v4539
  %4553 = vmatprep.subr.bf16.mxu0 0
  %4554 = vmatpush1.bf16.msra.mxu0 %v4540
  %4555 = vmatprep.subr.bf16.mxu0 0
  %4556 = vmatpush1.bf16.msra.mxu0 %v4541
  %4557 = vmatprep.subr.bf16.mxu0 0
  %4558 = vmatpush1.bf16.msra.mxu0 0
  %4559 = vmatprep.subr.bf16.mxu0 0
  %4560 = vmatpush1.bf16.msra.mxu0 0
  %4561 = vmatprep.subr.bf16.mxu0 0
  %4562 = vmatpush1.bf16.msra.mxu0 0
  %4563 = vmatprep.subr.bf16.mxu0 0
  %4564 = vmatpush1.bf16.msra.mxu0 0
  %4565 = vmatprep.subr.bf16.mxu0 0
  %4566 = vmatpush1.bf16.msra.mxu0 0
  %4567 = vmatprep.subr.bf16.mxu0 0
  %4568 = vmatpush1.bf16.msra.mxu0 0
  %4569 = vmatprep.subr.bf16.mxu0 0
  %4570 = vmatpush1.bf16.msra.mxu0 0
  %4571 = vmatprep.subr.bf16.mxu0 0
  %4572 = vmatpush1.bf16.msra.mxu0 0
  %4573 = vmatprep.subr.bf16.mxu0 0
  %4574 = vmatpush1.bf16.msra.mxu0 0
  %4575 = vmatprep.subr.bf16.mxu0 0
  %4576 = vmatpush1.bf16.msra.mxu0 0
  %4577 = vmatprep.subr.bf16.mxu0 0
  %4578 = vmatpush1.bf16.msra.mxu0 0
  %4579 = vmatprep.subr.bf16.mxu0 0
  %4580 = vmatpush1.bf16.msra.mxu0 0
  %4581 = vmatprep.mubr.bf16.mxu0 0
  %4582 = vmatmul.mubr.bf16.gmra.mrb[0].mxu0 %v4547
  %v4583 = vpop.f32.mrb[0].mxu0
  %v4584 = vadd.f32 0.0, %v4583
  %v4585 = vpop.f32.mrb[0].mxu0
  %v4586 = vpop.f32.mrb[0].mxu0
  %v4587 = vpop.f32.mrb[0].mxu0
  %4588 = vdwg.mxu0
  %v4589 = vadd.f32 %v4508, %v4584
  %v4590 = vld [vmem:[#allocation4 + $0xa8] sm:$0xff]
  %v4591 = vadd.f32 %v4590, %v3377
  %v4592 = vmax.f32 %v4591, 0.0
  %v4593 = vpack.c.bf16 %v4592, %v4592
  %s4594 = scalar_lea.vmem %s6, 480
  %v4595 = vld [vmem:[%s4594] sm:$0xf]
  %v4596 = vld [vmem:[%s4594 + $0x4] sm:$0xf]
  %v4597 = vld [vmem:[%s4594 + $0x8] sm:$0xf]
  %v4598 = vld [vmem:[%s4594 + $0xc] sm:$0xf]
  %v4599 = vld [vmem:[%s4594 + $0x10] sm:$0xf]
  %v4600 = vld [vmem:[%s4594 + $0x14] sm:$0xf]
  %v4601 = vld [vmem:[%s4594 + $0x18] sm:$0xf]
  %v4602 = vld [vmem:[%s4594 + $0x1c] sm:$0xf]
  %v4611 = vunpack.c.l.b16 %v4595
  %v4612 = vunpack.c.l.b16 %v4596
  %v4613 = vunpack.c.l.b16 %v4597
  %v4614 = vunpack.c.l.b16 %v4598
  %v4615 = vunpack.c.l.b16 %v4599
  %v4616 = vunpack.c.l.b16 %v4600
  %v4617 = vunpack.c.l.b16 %v4601
  %v4618 = vunpack.c.l.b16 %v4602
  %v4619 = vpack.c.b16 %v4612, %v4611
  %v4620 = vpack.c.b16 %v4614, %v4613
  %v4621 = vpack.c.b16 %v4616, %v4615
  %v4622 = vpack.c.b16 %v4618, %v4617
  %v4628 = vsel %vm1255, %v4593, 0
  %4630 = vmatprep.subr.bf16.mxu0 0
  %4631 = vmatpush1.bf16.msra.mxu0 %v4619
  %4632 = vmatprep.subr.bf16.mxu0 0
  %4633 = vmatpush1.bf16.msra.mxu0 %v4620
  %4634 = vmatprep.subr.bf16.mxu0 0
  %4635 = vmatpush1.bf16.msra.mxu0 %v4621
  %4636 = vmatprep.subr.bf16.mxu0 0
  %4637 = vmatpush1.bf16.msra.mxu0 %v4622
  %4638 = vmatprep.subr.bf16.mxu0 0
  %4639 = vmatpush1.bf16.msra.mxu0 0
  %4640 = vmatprep.subr.bf16.mxu0 0
  %4641 = vmatpush1.bf16.msra.mxu0 0
  %4642 = vmatprep.subr.bf16.mxu0 0
  %4643 = vmatpush1.bf16.msra.mxu0 0
  %4644 = vmatprep.subr.bf16.mxu0 0
  %4645 = vmatpush1.bf16.msra.mxu0 0
  %4646 = vmatprep.subr.bf16.mxu0 0
  %4647 = vmatpush1.bf16.msra.mxu0 0
  %4648 = vmatprep.subr.bf16.mxu0 0
  %4649 = vmatpush1.bf16.msra.mxu0 0
  %4650 = vmatprep.subr.bf16.mxu0 0
  %4651 = vmatpush1.bf16.msra.mxu0 0
  %4652 = vmatprep.subr.bf16.mxu0 0
  %4653 = vmatpush1.bf16.msra.mxu0 0
  %4654 = vmatprep.subr.bf16.mxu0 0
  %4655 = vmatpush1.bf16.msra.mxu0 0
  %4656 = vmatprep.subr.bf16.mxu0 0
  %4657 = vmatpush1.bf16.msra.mxu0 0
  %4658 = vmatprep.subr.bf16.mxu0 0
  %4659 = vmatpush1.bf16.msra.mxu0 0
  %4660 = vmatprep.subr.bf16.mxu0 0
  %4661 = vmatpush1.bf16.msra.mxu0 0
  %4662 = vmatprep.mubr.bf16.mxu0 0
  %4663 = vmatmul.mubr.bf16.gmra.mrb[0].mxu0 %v4628
  %v4664 = vpop.f32.mrb[0].mxu0
  %v4665 = vadd.f32 0.0, %v4664
  %v4666 = vpop.f32.mrb[0].mxu0
  %v4667 = vpop.f32.mrb[0].mxu0
  %v4668 = vpop.f32.mrb[0].mxu0
  %4669 = vdwg.mxu0
  %v4670 = vadd.f32 %v4589, %v4665
  %v4671 = vld [vmem:[%s7] sm:$0x1]
  %v4673 = vlaneseq
  %v4674 = vshrl.u32 %v4673, 7
  %v4675 = vsub.s32 0, %v4674
  %v4676 = vrot.slane %v4671, %v4675
  %v4678 = vadd.f32 %v4670, %v4676
  %vm4679 = vcmask 80896
  %v4680 = vsel %vm4679, %v4678, -inf
  %4681 = vmax.xlane.f32.xlu0 %v4680
  %v4682 = vpop.xlane.xlu0 %4681
  %v4683 = vsub.f32 %v4678, %v4682
  %v4684 = vmul.f32 %v4683, 1.442695
  %v4685 = vpow.pop %v4684
  %v4686 = vsel %vm4679, %v4685, 0.0
  %4687 = vadd.xlane.f32.xlu0 %v4686
  %v4688 = vpop.xlane.xlu0 %4687
  %v4689 = vrcp.pop %v4688
  %v4690 = vmul.f32 %v4685, %v4689
  %4691 = vst.msk [vmem:[%s8] sm:$0xff] %vm4679, %v4690
  // Predicated region
  $region34: #{netv3_forward.1} parent=0 // pred_check
    _
  $region35: #{netv3_forward.1} parent=0 // pred_check_branch
    %4693 = sbr.rel (0) target = $region37
  $region36: #{netv3_forward.1} parent=0 // pred_region
    _
  $region37: #{netv3_forward.1} parent=0 // pred_fallthru
    _
  // Predicated region
  $region38: #{netv3_forward.1} parent=0 // pred_check
    _
  $region39: #{netv3_forward.1} parent=0 // pred_check_branch
    %4695 = sbr.rel (0) target = $region41
  $region40: #{netv3_forward.1} parent=0 // pred_region
    _
  $region41: #{netv3_forward.1} parent=0 // pred_fallthru
    _

</llo_original>
